<compile_context>
chip_gen: v7x
topology: tpu7x:2x2x1
jax: 0.10.0
libtpu: 0.0.40
codegen_flags: <defaults>
</compile_context>

<pallas_src>
import jax
import jax.numpy as jnp
import numpy as np
from jax import lax
from jax.experimental import pallas as pl
from jax.experimental.pallas import tpu as pltpu


# ----------------------------------------------------------------------------
# Fused Inception kernel
# ----------------------------------------------------------------------------
def _make_inception_kernel(H, W, n1x1, n3x3red, n3x3, n5x5red1, n5x5red2,
                           n5x5, pool_planes):
  HW = H * W

  def _fill_halo(pad_ref, fill_value):
    """Write only the 1-pixel border of a (H+2, W+2, C) scratch.

    The interior is fully overwritten every step, so ~80% of a full memset
    would be wasted vector stores (the scarcest VLIW slot).
    """
    c = pad_ref.shape[-1]
    row = jnp.full((1, W + 2, c), fill_value, pad_ref.dtype)
    col = jnp.full((H, 1, c), fill_value, pad_ref.dtype)
    pad_ref[0:1, :, :] = row
    pad_ref[H + 1:H + 2, :, :] = row
    pad_ref[1:H + 1, 0:1, :] = col
    pad_ref[1:H + 1, W + 1:W + 2, :] = col

  def _conv3x3_bn_relu(pad_ref, src_hw, w_ref, s_ref, b_ref):
    """3x3 conv (stride 1, pad 1) + folded-BN affine + ReLU via im2col.

    pad_ref: (H+2, W+2, cin) f32 VMEM scratch (zero halo, interior = src).
    src_hw:  (H, W, cin) f32 value.
    w_ref:   (9*cin, cout) bf16 (rows ordered (dy, dx, cin)).
    s_ref/b_ref: (1, cout) f32.
    """
    cin = pad_ref.shape[-1]
    _fill_halo(pad_ref, 0.0)
    pad_ref[1:H + 1, 1:W + 1, :] = src_hw
    # 3 sublane-offset slices (dx); dy offsets are free leading-dim slices.
    # Cast once per slab (not once per tap).
    slabs = [pad_ref[:, dx:dx + W, :].astype(jnp.bfloat16) for dx in range(3)]
    pieces = [slabs[dx][dy:dy + H].reshape(HW, cin)
              for dy in range(3) for dx in range(3)]      # (dy, dx) order
    patch = jnp.concatenate(pieces, axis=-1)              # (HW, 9*cin) bf16
    acc = jnp.dot(patch, w_ref[...], preferred_element_type=jnp.float32)
    return jnp.maximum(acc * s_ref[...] + b_ref[...], 0.0)

  def kernel(x_ref,
             w1_ref, s1_ref, b1_ref,        # merged 1x1 stage (b1 | b3red | b5red)
             w32_ref, s32_ref, b32_ref,     # branch3x3: 3x3 conv (im2col weights)
             w52_ref, s52_ref, b52_ref,     # branch5x5: first 3x3 conv
             w53_ref, s53_ref, b53_ref,     # branch5x5: second 3x3 conv
             wp_ref, sp_ref, bp_ref,        # pool branch: 1x1 conv
             o_ref,
             pad3_ref, pad5a_ref, pad5b_ref, padp_ref):
    cin = x_ref.shape[-1]
    x_hw = x_ref[0]                                    # (H, W, Cin) f32
    xb_flat = x_hw.reshape(HW, cin).astype(jnp.bfloat16)

    # --- merged 1x1 convs that read x: one wider MXU matmul ------------------
    y = jnp.dot(xb_flat, w1_ref[...], preferred_element_type=jnp.float32)
    y = jnp.maximum(y * s1_ref[...] + b1_ref[...], 0.0)   # (HW, n1+r3+r5a)
    y1 = y[:, :n1x1]                                       # branch1x1 output
    t3 = y[:, n1x1:n1x1 + n3x3red]                         # 3x3-reduce output
    t5 = y[:, n1x1 + n3x3red:]                             # 5x5-reduce output

    # --- branch 3x3 -----------------------------------------------------------
    y2 = _conv3x3_bn_relu(pad3_ref, t3.reshape(H, W, n3x3red),
                          w32_ref, s32_ref, b32_ref)

    # --- branch 5x5 (two stacked 3x3 convs), intermediates stay in VMEM ------
    t5 = _conv3x3_bn_relu(pad5a_ref, t5.reshape(H, W, n5x5red1),
                          w52_ref, s52_ref, b52_ref)
    y3 = _conv3x3_bn_relu(pad5b_ref, t5.reshape(H, W, n5x5red2),
                          w53_ref, s53_ref, b53_ref)

    # --- pool branch: MaxPool(3, stride 1, pad 1) fused with 1x1 conv --------
    _fill_halo(padp_ref, -jnp.inf)
    padp_ref[1:H + 1, 1:W + 1, :] = x_hw
    m = None
    for dx in range(3):                                   # 3 dx slabs only
      slab = padp_ref[:, dx:dx + W, :]                    # (H+2, W, Cin)
      for dy in range(3):
        v = slab[dy:dy + H]
        m = v if m is None else jnp.maximum(m, v)
    y4 = jnp.dot(m.reshape(HW, cin).astype(jnp.bfloat16), wp_ref[...],
                 preferred_element_type=jnp.float32)
    y4 = jnp.maximum(y4 * sp_ref[...] + bp_ref[...], 0.0)

    # --- channel concat once, single store of the full (HW, Ctot) block ------
    o_ref[0] = jnp.concatenate([y1, y2, y3, y4], axis=-1)

  return kernel


def _rep_spec(arr):
  """BlockSpec for a small replicated (per-grid-step) operand."""
  nd = arr.ndim
  return pl.BlockSpec(arr.shape, lambda n, _nd=nd: (0,) * _nd)


def inception_pallas(x_nhwc, params):
  """x_nhwc: (N, H, W, Cin) f32 -> (N, H, W, n1x1+n3x3+n5x5+pool) f32."""
  N, H, W, Cin = x_nhwc.shape
  HW = H * W
  p = params
  n1 = p["b1"]["w"].shape[-1]
  r3 = p["b3_1"]["w"].shape[-1]
  n3 = p["b3_2"]["w"].shape[-1]
  r5a = p["b5_1"]["w"].shape[-1]
  r5b = p["b5_2"]["w"].shape[-1]
  n5 = p["b5_3"]["w"].shape[-1]
  pp = p["bp"]["w"].shape[-1]
  ctot = n1 + n3 + n5 + pp

  # Merge the three 1x1 convs that read x into one (Cin, n1+r3+r5a) matmul.
  w1 = jnp.concatenate([p["b1"]["w"][0], p["b3_1"]["w"][0], p["b5_1"]["w"][0]],
                       axis=-1)
  s1 = jnp.concatenate([p["b1"]["scale"], p["b3_1"]["scale"],
                        p["b5_1"]["scale"]]).reshape(1, -1)
  b1 = jnp.concatenate([p["b1"]["bias"], p["b3_1"]["bias"],
                        p["b5_1"]["bias"]]).reshape(1, -1)

  def _w9(name):          # (9, cin, cout) -> (9*cin, cout) for im2col matmul
    w = p[name]["w"]
    return w.reshape(w.shape[0] * w.shape[1], w.shape[2])

  def _sb(name):
    return (p[name]["scale"].reshape(1, -1), p[name]["bias"].reshape(1, -1))

  s32, b32 = _sb("b3_2")
  s52, b52 = _sb("b5_2")
  s53, b53 = _sb("b5_3")
  sp, bp = _sb("bp")

  operands = (x_nhwc,
              w1, s1, b1,
              _w9("b3_2"), s32, b32,
              _w9("b5_2"), s52, b52,
              _w9("b5_3"), s53, b53,
              p["bp"]["w"][0], sp, bp)

  in_specs = [pl.BlockSpec((1, H, W, Cin), lambda n: (n, 0, 0, 0))]
  in_specs += [_rep_spec(a) for a in operands[1:]]

  kernel = _make_inception_kernel(H, W, n1, r3, n3, r5a, r5b, n5, pp)

  out = pl.pallas_call(
      kernel,
      # (N, H*W, Ctot): single lane-dense output store per grid step; the
      # reshape back to (N, H, W, Ctot) below is free in XLA.
      out_shape=jax.ShapeDtypeStruct((N, HW, ctot), jnp.float32),
      grid=(N,),
      in_specs=in_specs,
      out_specs=pl.BlockSpec((1, HW, ctot), lambda n: (n, 0, 0)),
      scratch_shapes=[
          pltpu.VMEM((H + 2, W + 2, r3), jnp.float32),    # pad for branch3x3
          pltpu.VMEM((H + 2, W + 2, r5a), jnp.float32),   # pad for branch5x5 #1
          pltpu.VMEM((H + 2, W + 2, r5b), jnp.float32),   # pad for branch5x5 #2
          pltpu.VMEM((H + 2, W + 2, Cin), jnp.float32),   # -inf pad for maxpool
      ],
      # grid over batch marked parallel -> both TensorCores used on v7x.
      compiler_params=pltpu.CompilerParams(
          dimension_semantics=("parallel",)),
  )(*operands)
  return out.reshape(N, H, W, ctot)


# ----------------------------------------------------------------------------
# Parameter construction (deterministic, synthetic) and BN folding
# ----------------------------------------------------------------------------
def _conv_bn_params(key, cin, cout, K, eps=1e-5):
  kw, kb, kg, kbe, km, kv = jax.random.split(key, 6)
  # conv weight in (K*K, Cin, Cout) layout; stored bf16 for the MXU.
  w = (jax.random.normal(kw, (K * K, cin, cout), jnp.float32) * 0.1)
  b = jax.random.normal(kb, (cout,), jnp.float32) * 0.1
  gamma = jax.random.uniform(kg, (cout,), jnp.float32, 0.5, 1.5)
  beta = jax.random.normal(kbe, (cout,), jnp.float32) * 0.1
  mean = jax.random.normal(km, (cout,), jnp.float32) * 0.1
  var = jax.random.uniform(kv, (cout,), jnp.float32, 0.5, 1.5)
  scale = gamma / jnp.sqrt(var + eps)        # folded BN (eval mode)
  bias = (b - mean) * scale + beta
  return {"w": w.astype(jnp.bfloat16), "scale": scale, "bias": bias}


def make_inception_params(key, in_planes, n1x1, n3x3red, n3x3,
                          n5x5red1, n5x5red2, n5x5, pool_planes):
  keys = jax.random.split(key, 7)
  return {
      "b1":   _conv_bn_params(keys[0], in_planes, n1x1, 1),
      "b3_1": _conv_bn_params(keys[1], in_planes, n3x3red, 1),
      "b3_2": _conv_bn_params(keys[2], n3x3red, n3x3, 3),
      "b5_1": _conv_bn_params(keys[3], in_planes, n5x5red1, 1),
      "b5_2": _conv_bn_params(keys[4], n5x5red1, n5x5red2, 3),
      "b5_3": _conv_bn_params(keys[5], n5x5red2, n5x5, 3),
      "bp":   _conv_bn_params(keys[6], in_planes, pool_planes, 1),
  }


# ----------------------------------------------------------------------------
# Inception forward — accepts NCHW, returns NCHW like the PyTorch module
# ----------------------------------------------------------------------------
@jax.jit
def inception_forward(x_nchw, params):
  x = jnp.transpose(x_nchw, (0, 2, 3, 1))    # NCHW -> NHWC (channels on lanes)
  out = inception_pallas(x, params)          # one fused Pallas kernel
  return jnp.transpose(out, (0, 3, 1, 2))    # NHWC -> NCHW


# ----------------------------------------------------------------------------
# Pure-JAX reference (mirrors the kernel's bf16-in / f32-accumulate convs)
# ----------------------------------------------------------------------------
def _ref_conv_bn_relu(x, w, scale, bias, K):
  cin, cout = w.shape[1], w.shape[2]
  w_hwio = w.reshape(K, K, cin, cout)              # bf16 weights
  y = lax.conv_general_dilated(
      x.astype(jnp.bfloat16), w_hwio, window_strides=(1, 1), padding="SAME",
      dimension_numbers=("NHWC", "HWIO", "NHWC"),
      preferred_element_type=jnp.float32)
  return jnp.maximum(y * scale + bias, 0.0)


def _ref_forward(x_nchw, params):
  x = jnp.transpose(x_nchw, (0, 2, 3, 1))
  y1 = _ref_conv_bn_relu(x, params["b1"]["w"], params["b1"]["scale"],
                         params["b1"]["bias"], 1)
  t = _ref_conv_bn_relu(x, params["b3_1"]["w"], params["b3_1"]["scale"],
                        params["b3_1"]["bias"], 1)
  y2 = _ref_conv_bn_relu(t, params["b3_2"]["w"], params["b3_2"]["scale"],
                         params["b3_2"]["bias"], 3)
  t = _ref_conv_bn_relu(x, params["b5_1"]["w"], params["b5_1"]["scale"],
                        params["b5_1"]["bias"], 1)
  t = _ref_conv_bn_relu(t, params["b5_2"]["w"], params["b5_2"]["scale"],
                        params["b5_2"]["bias"], 3)
  y3 = _ref_conv_bn_relu(t, params["b5_3"]["w"], params["b5_3"]["scale"],
                         params["b5_3"]["bias"], 3)
  pooled = lax.reduce_window(x, -jnp.inf, lax.max,
                             (1, 3, 3, 1), (1, 1, 1, 1), "SAME")
  y4 = _ref_conv_bn_relu(pooled, params["bp"]["w"], params["bp"]["scale"],
                         params["bp"]["bias"], 1)
  out = jnp.concatenate([y1, y2, y3, y4], axis=-1)
  return jnp.transpose(out, (0, 3, 1, 2))


# ----------------------------------------------------------------------------
if __name__ == "__main__":
  # Small Inception config: in_planes=8, n1x1=16, n3x3red=8, n3x3=16,
  # n5x5red1=8, n5x5red2=8, n5x5=16, pool_planes=16  ->  out channels = 64
  key = jax.random.PRNGKey(0)
  kx, kp = jax.random.split(key)

  N, C, H, W = 2, 8, 16, 16
  x = jax.random.normal(kx, (N, C, H, W), jnp.float32)  # NCHW like PyTorch

  params = make_inception_params(kp, in_planes=C, n1x1=16, n3x3red=8, n3x3=16,
                                 n5x5red1=8, n5x5red2=8, n5x5=16,
                                 pool_planes=16)

  out = jax.block_until_ready(inception_forward(x, params))
  ref = jax.block_until_ready(_ref_forward(x, params))

  assert out.shape == (N, 16 + 16 + 16 + 16, H, W), out.shape
  # Tolerance reflects bf16 MXU inputs (f32 accumulation) in both kernel & ref.
  np.testing.assert_allclose(np.asarray(out), np.asarray(ref),
                             rtol=1e-2, atol=1e-2)

  print("KERNEL_OK")
</pallas_src>

<mosaic_0001>
module attributes {stable_mosaic.version = 11 : i64} {
  func.func @kernel(%arg0: i32, %arg1: memref<1x16x16x8xf32, #tpu.memory_space<vmem>>, %arg2: memref<8x32xbf16, #tpu.memory_space<vmem>>, %arg3: memref<1x32xf32, #tpu.memory_space<vmem>>, %arg4: memref<1x32xf32, #tpu.memory_space<vmem>>, %arg5: memref<72x16xbf16, #tpu.memory_space<vmem>>, %arg6: memref<1x16xf32, #tpu.memory_space<vmem>>, %arg7: memref<1x16xf32, #tpu.memory_space<vmem>>, %arg8: memref<72x8xbf16, #tpu.memory_space<vmem>>, %arg9: memref<1x8xf32, #tpu.memory_space<vmem>>, %arg10: memref<1x8xf32, #tpu.memory_space<vmem>>, %arg11: memref<72x16xbf16, #tpu.memory_space<vmem>>, %arg12: memref<1x16xf32, #tpu.memory_space<vmem>>, %arg13: memref<1x16xf32, #tpu.memory_space<vmem>>, %arg14: memref<8x16xbf16, #tpu.memory_space<vmem>>, %arg15: memref<1x16xf32, #tpu.memory_space<vmem>>, %arg16: memref<1x16xf32, #tpu.memory_space<vmem>>, %arg17: memref<1x256x64xf32, #tpu.memory_space<vmem>>, %arg18: memref<18x18x8xf32, #tpu.memory_space<vmem>>, %arg19: memref<18x18x8xf32, #tpu.memory_space<vmem>>, %arg20: memref<18x18x8xf32, #tpu.memory_space<vmem>>, %arg21: memref<18x18x8xf32, #tpu.memory_space<vmem>>) attributes {dimension_semantics = [#tpu.dimension_semantics<parallel>], iteration_bounds = array<i64: 2>, scalar_prefetch = 0 : i64, scratch_operands = 4 : i64, tpu.core_type = #tpu.core_type<tc>, window_params = [{transform_indices = @transform_0, window_bounds = array<i64: 1, 16, 16, 8>}, {pipeline_mode = #tpu.pipeline_mode<synchronous>, transform_indices = @transform_1, window_bounds = array<i64: 8, 32>}, {pipeline_mode = #tpu.pipeline_mode<synchronous>, transform_indices = @transform_2, window_bounds = array<i64: 1, 32>}, {pipeline_mode = #tpu.pipeline_mode<synchronous>, transform_indices = @transform_3, window_bounds = array<i64: 1, 32>}, {pipeline_mode = #tpu.pipeline_mode<synchronous>, transform_indices = @transform_4, window_bounds = array<i64: 72, 16>}, {pipeline_mode = #tpu.pipeline_mode<synchronous>, transform_indices = @transform_5, window_bounds = array<i64: 1, 16>}, {pipeline_mode = #tpu.pipeline_mode<synchronous>, transform_indices = @transform_6, window_bounds = array<i64: 1, 16>}, {pipeline_mode = #tpu.pipeline_mode<synchronous>, transform_indices = @transform_7, window_bounds = array<i64: 72, 8>}, {pipeline_mode = #tpu.pipeline_mode<synchronous>, transform_indices = @transform_8, window_bounds = array<i64: 1, 8>}, {pipeline_mode = #tpu.pipeline_mode<synchronous>, transform_indices = @transform_9, window_bounds = array<i64: 1, 8>}, {pipeline_mode = #tpu.pipeline_mode<synchronous>, transform_indices = @transform_10, window_bounds = array<i64: 72, 16>}, {pipeline_mode = #tpu.pipeline_mode<synchronous>, transform_indices = @transform_11, window_bounds = array<i64: 1, 16>}, {pipeline_mode = #tpu.pipeline_mode<synchronous>, transform_indices = @transform_12, window_bounds = array<i64: 1, 16>}, {pipeline_mode = #tpu.pipeline_mode<synchronous>, transform_indices = @transform_13, window_bounds = array<i64: 8, 16>}, {pipeline_mode = #tpu.pipeline_mode<synchronous>, transform_indices = @transform_14, window_bounds = array<i64: 1, 16>}, {pipeline_mode = #tpu.pipeline_mode<synchronous>, transform_indices = @transform_15, window_bounds = array<i64: 1, 16>}, {transform_indices = @transform_16, window_bounds = array<i64: 1, 256, 64>}]} {
    %c0 = arith.constant 0 : index
    %c0_0 = arith.constant 0 : index
    %c0_1 = arith.constant 0 : index
    %c0_2 = arith.constant 0 : index
    %0 = vector.load %arg1[%c0, %c0_0, %c0_1, %c0_2] : memref<1x16x16x8xf32, #tpu.memory_space<vmem>>, vector<1x16x16x8xf32>
    %1 = vector.shape_cast %0 : vector<1x16x16x8xf32> to vector<16x16x8xf32>
    %2 = vector.shape_cast %1 : vector<16x16x8xf32> to vector<256x8xf32>
    %3 = arith.truncf %2 : vector<256x8xf32> to vector<256x8xbf16>
    %c0_3 = arith.constant 0 : index
    %c0_4 = arith.constant 0 : index
    %4 = vector.load %arg2[%c0_3, %c0_4] : memref<8x32xbf16, #tpu.memory_space<vmem>>, vector<8x32xbf16>
    %cst = arith.constant dense<0.000000e+00> : vector<256x32xf32>
    %5 = tpu.matmul %3, %4, %cst {dimension_numbers = #tpu.dot_dimension_numbers<[1], [0], [0], [1], [0, 0, 1, 1], [], []>} : vector<256x8xbf16>, vector<8x32xbf16>, vector<256x32xf32> -> vector<256x32xf32>
    %c0_5 = arith.constant 0 : index
    %c0_6 = arith.constant 0 : index
    %6 = vector.load %arg3[%c0_5, %c0_6] : memref<1x32xf32, #tpu.memory_space<vmem>>, vector<1x32xf32>
    %7 = vector.broadcast %6 : vector<1x32xf32> to vector<256x32xf32>
    %8 = arith.mulf %5, %7 : vector<256x32xf32>
    %c0_7 = arith.constant 0 : index
    %c0_8 = arith.constant 0 : index
    %9 = vector.load %arg4[%c0_7, %c0_8] : memref<1x32xf32, #tpu.memory_space<vmem>>, vector<1x32xf32>
    %10 = vector.broadcast %9 : vector<1x32xf32> to vector<256x32xf32>
    %11 = arith.addf %8, %10 : vector<256x32xf32>
    %cst_9 = arith.constant 0.000000e+00 : f32
    %12 = vector.broadcast %cst_9 : f32 to vector<256x32xf32>
    %13 = arith.maximumf %11, %12 : vector<256x32xf32>
    %14 = vector.extract_strided_slice %13 {offsets = [0, 0], sizes = [256, 16], strides = [1, 1]} : vector<256x32xf32> to vector<256x16xf32>
    %15 = vector.extract_strided_slice %13 {offsets = [0, 16], sizes = [256, 8], strides = [1, 1]} : vector<256x32xf32> to vector<256x8xf32>
    %16 = vector.extract_strided_slice %13 {offsets = [0, 24], sizes = [256, 8], strides = [1, 1]} : vector<256x32xf32> to vector<256x8xf32>
    %17 = vector.shape_cast %15 : vector<256x8xf32> to vector<16x16x8xf32>
    %cst_10 = arith.constant 0.000000e+00 : f32
    %18 = vector.broadcast %cst_10 : f32 to vector<1x18x8xf32>
    %cst_11 = arith.constant 0.000000e+00 : f32
    %19 = vector.broadcast %cst_11 : f32 to vector<16x1x8xf32>
    %c0_12 = arith.constant 0 : index
    %c0_13 = arith.constant 0 : index
    %c0_14 = arith.constant 0 : index
    %20 = vector.load %arg18[%c0_12, %c0_13, %c0_14] : memref<18x18x8xf32, #tpu.memory_space<vmem>>, vector<1x18x8xf32>
    tpu.vector_store %arg18[%c0_12, %c0_13, %c0_14], %18 {strides = array<i32>} : memref<18x18x8xf32, #tpu.memory_space<vmem>>, vector<1x18x8xf32>,
    %c17 = arith.constant 17 : index
    %c0_15 = arith.constant 0 : index
    %c0_16 = arith.constant 0 : index
    %21 = vector.load %arg18[%c17, %c0_15, %c0_16] : memref<18x18x8xf32, #tpu.memory_space<vmem>>, vector<1x18x8xf32>
    tpu.vector_store %arg18[%c17, %c0_15, %c0_16], %18 {strides = array<i32>} : memref<18x18x8xf32, #tpu.memory_space<vmem>>, vector<1x18x8xf32>,
    %c1 = arith.constant 1 : index
    %c0_17 = arith.constant 0 : index
    %c0_18 = arith.constant 0 : index
    %22 = vector.load %arg18[%c1, %c0_17, %c0_18] : memref<18x18x8xf32, #tpu.memory_space<vmem>>, vector<16x1x8xf32>
    tpu.vector_store %arg18[%c1, %c0_17, %c0_18], %19 {strides = array<i32>} : memref<18x18x8xf32, #tpu.memory_space<vmem>>, vector<16x1x8xf32>,
    %c1_19 = arith.constant 1 : index
    %c17_20 = arith.constant 17 : index
    %c0_21 = arith.constant 0 : index
    %23 = vector.load %arg18[%c1_19, %c17_20, %c0_21] : memref<18x18x8xf32, #tpu.memory_space<vmem>>, vector<16x1x8xf32>
    tpu.vector_store %arg18[%c1_19, %c17_20, %c0_21], %19 {strides = array<i32>} : memref<18x18x8xf32, #tpu.memory_space<vmem>>, vector<16x1x8xf32>,
    %c1_22 = arith.constant 1 : index
    %c1_23 = arith.constant 1 : index
    %c0_24 = arith.constant 0 : index
    %24 = vector.load %arg18[%c1_22, %c1_23, %c0_24] : memref<18x18x8xf32, #tpu.memory_space<vmem>>, vector<16x16x8xf32>
    tpu.vector_store %arg18[%c1_22, %c1_23, %c0_24], %17 {strides = array<i32>} : memref<18x18x8xf32, #tpu.memory_space<vmem>>, vector<16x16x8xf32>,
    %c0_25 = arith.constant 0 : index
    %c0_26 = arith.constant 0 : index
    %c0_27 = arith.constant 0 : index
    %25 = vector.load %arg18[%c0_25, %c0_26, %c0_27] : memref<18x18x8xf32, #tpu.memory_space<vmem>>, vector<18x16x8xf32>
    %26 = arith.truncf %25 : vector<18x16x8xf32> to vector<18x16x8xbf16>
    %c0_28 = arith.constant 0 : index
    %c1_29 = arith.constant 1 : index
    %c0_30 = arith.constant 0 : index
    %27 = vector.load %arg18[%c0_28, %c1_29, %c0_30] : memref<18x18x8xf32, #tpu.memory_space<vmem>>, vector<18x16x8xf32>
    %28 = arith.truncf %27 : vector<18x16x8xf32> to vector<18x16x8xbf16>
    %c0_31 = arith.constant 0 : index
    %c2 = arith.constant 2 : index
    %c0_32 = arith.constant 0 : index
    %29 = vector.load %arg18[%c0_31, %c2, %c0_32] : memref<18x18x8xf32, #tpu.memory_space<vmem>>, vector<18x16x8xf32>
    %30 = arith.truncf %29 : vector<18x16x8xf32> to vector<18x16x8xbf16>
    %31 = vector.extract_strided_slice %26 {offsets = [0, 0, 0], sizes = [16, 16, 8], strides = [1, 1, 1]} : vector<18x16x8xbf16> to vector<16x16x8xbf16>
    %32 = vector.shape_cast %31 : vector<16x16x8xbf16> to vector<256x8xbf16>
    %33 = vector.extract_strided_slice %28 {offsets = [0, 0, 0], sizes = [16, 16, 8], strides = [1, 1, 1]} : vector<18x16x8xbf16> to vector<16x16x8xbf16>
    %34 = vector.shape_cast %33 : vector<16x16x8xbf16> to vector<256x8xbf16>
    %35 = vector.extract_strided_slice %30 {offsets = [0, 0, 0], sizes = [16, 16, 8], strides = [1, 1, 1]} : vector<18x16x8xbf16> to vector<16x16x8xbf16>
    %36 = vector.shape_cast %35 : vector<16x16x8xbf16> to vector<256x8xbf16>
    %37 = vector.extract_strided_slice %26 {offsets = [1, 0, 0], sizes = [16, 16, 8], strides = [1, 1, 1]} : vector<18x16x8xbf16> to vector<16x16x8xbf16>
    %38 = vector.shape_cast %37 : vector<16x16x8xbf16> to vector<256x8xbf16>
    %39 = vector.extract_strided_slice %28 {offsets = [1, 0, 0], sizes = [16, 16, 8], strides = [1, 1, 1]} : vector<18x16x8xbf16> to vector<16x16x8xbf16>
    %40 = vector.shape_cast %39 : vector<16x16x8xbf16> to vector<256x8xbf16>
    %41 = vector.extract_strided_slice %30 {offsets = [1, 0, 0], sizes = [16, 16, 8], strides = [1, 1, 1]} : vector<18x16x8xbf16> to vector<16x16x8xbf16>
    %42 = vector.shape_cast %41 : vector<16x16x8xbf16> to vector<256x8xbf16>
    %43 = vector.extract_strided_slice %26 {offsets = [2, 0, 0], sizes = [16, 16, 8], strides = [1, 1, 1]} : vector<18x16x8xbf16> to vector<16x16x8xbf16>
    %44 = vector.shape_cast %43 : vector<16x16x8xbf16> to vector<256x8xbf16>
    %45 = vector.extract_strided_slice %28 {offsets = [2, 0, 0], sizes = [16, 16, 8], strides = [1, 1, 1]} : vector<18x16x8xbf16> to vector<16x16x8xbf16>
    %46 = vector.shape_cast %45 : vector<16x16x8xbf16> to vector<256x8xbf16>
    %47 = vector.extract_strided_slice %30 {offsets = [2, 0, 0], sizes = [16, 16, 8], strides = [1, 1, 1]} : vector<18x16x8xbf16> to vector<16x16x8xbf16>
    %48 = vector.shape_cast %47 : vector<16x16x8xbf16> to vector<256x8xbf16>
    %49 = tpu.concatenate %32, %34, %36, %38, %40, %42, %44, %46, %48 in 1 : vector<256x8xbf16>, vector<256x8xbf16>, vector<256x8xbf16>, vector<256x8xbf16>, vector<256x8xbf16>, vector<256x8xbf16>, vector<256x8xbf16>, vector<256x8xbf16>, vector<256x8xbf16> -> vector<256x72xbf16>
    %c0_33 = arith.constant 0 : index
    %c0_34 = arith.constant 0 : index
    %50 = vector.load %arg5[%c0_33, %c0_34] : memref<72x16xbf16, #tpu.memory_space<vmem>>, vector<72x16xbf16>
    %cst_35 = arith.constant dense<0.000000e+00> : vector<256x16xf32>
    %51 = tpu.matmul %49, %50, %cst_35 {dimension_numbers = #tpu.dot_dimension_numbers<[1], [0], [0], [1], [0, 0, 1, 1], [], []>} : vector<256x72xbf16>, vector<72x16xbf16>, vector<256x16xf32> -> vector<256x16xf32>
    %c0_36 = arith.constant 0 : index
    %c0_37 = arith.constant 0 : index
    %52 = vector.load %arg6[%c0_36, %c0_37] : memref<1x16xf32, #tpu.memory_space<vmem>>, vector<1x16xf32>
    %53 = vector.broadcast %52 : vector<1x16xf32> to vector<256x16xf32>
    %54 = arith.mulf %51, %53 : vector<256x16xf32>
    %c0_38 = arith.constant 0 : index
    %c0_39 = arith.constant 0 : index
    %55 = vector.load %arg7[%c0_38, %c0_39] : memref<1x16xf32, #tpu.memory_space<vmem>>, vector<1x16xf32>
    %56 = vector.broadcast %55 : vector<1x16xf32> to vector<256x16xf32>
    %57 = arith.addf %54, %56 : vector<256x16xf32>
    %cst_40 = arith.constant 0.000000e+00 : f32
    %58 = vector.broadcast %cst_40 : f32 to vector<256x16xf32>
    %59 = arith.maximumf %57, %58 : vector<256x16xf32>
    %60 = vector.shape_cast %16 : vector<256x8xf32> to vector<16x16x8xf32>
    %cst_41 = arith.constant 0.000000e+00 : f32
    %61 = vector.broadcast %cst_41 : f32 to vector<1x18x8xf32>
    %cst_42 = arith.constant 0.000000e+00 : f32
    %62 = vector.broadcast %cst_42 : f32 to vector<16x1x8xf32>
    %c0_43 = arith.constant 0 : index
    %c0_44 = arith.constant 0 : index
    %c0_45 = arith.constant 0 : index
    %63 = vector.load %arg19[%c0_43, %c0_44, %c0_45] : memref<18x18x8xf32, #tpu.memory_space<vmem>>, vector<1x18x8xf32>
    tpu.vector_store %arg19[%c0_43, %c0_44, %c0_45], %61 {strides = array<i32>} : memref<18x18x8xf32, #tpu.memory_space<vmem>>, vector<1x18x8xf32>,
    %c17_46 = arith.constant 17 : index
    %c0_47 = arith.constant 0 : index
    %c0_48 = arith.constant 0 : index
    %64 = vector.load %arg19[%c17_46, %c0_47, %c0_48] : memref<18x18x8xf32, #tpu.memory_space<vmem>>, vector<1x18x8xf32>
    tpu.vector_store %arg19[%c17_46, %c0_47, %c0_48], %61 {strides = array<i32>} : memref<18x18x8xf32, #tpu.memory_space<vmem>>, vector<1x18x8xf32>,
    %c1_49 = arith.constant 1 : index
    %c0_50 = arith.constant 0 : index
    %c0_51 = arith.constant 0 : index
    %65 = vector.load %arg19[%c1_49, %c0_50, %c0_51] : memref<18x18x8xf32, #tpu.memory_space<vmem>>, vector<16x1x8xf32>
    tpu.vector_store %arg19[%c1_49, %c0_50, %c0_51], %62 {strides = array<i32>} : memref<18x18x8xf32, #tpu.memory_space<vmem>>, vector<16x1x8xf32>,
    %c1_52 = arith.constant 1 : index
    %c17_53 = arith.constant 17 : index
    %c0_54 = arith.constant 0 : index
    %66 = vector.load %arg19[%c1_52, %c17_53, %c0_54] : memref<18x18x8xf32, #tpu.memory_space<vmem>>, vector<16x1x8xf32>
    tpu.vector_store %arg19[%c1_52, %c17_53, %c0_54], %62 {strides = array<i32>} : memref<18x18x8xf32, #tpu.memory_space<vmem>>, vector<16x1x8xf32>,
    %c1_55 = arith.constant 1 : index
    %c1_56 = arith.constant 1 : index
    %c0_57 = arith.constant 0 : index
    %67 = vector.load %arg19[%c1_55, %c1_56, %c0_57] : memref<18x18x8xf32, #tpu.memory_space<vmem>>, vector<16x16x8xf32>
    tpu.vector_store %arg19[%c1_55, %c1_56, %c0_57], %60 {strides = array<i32>} : memref<18x18x8xf32, #tpu.memory_space<vmem>>, vector<16x16x8xf32>,
    %c0_58 = arith.constant 0 : index
    %c0_59 = arith.constant 0 : index
    %c0_60 = arith.constant 0 : index
    %68 = vector.load %arg19[%c0_58, %c0_59, %c0_60] : memref<18x18x8xf32, #tpu.memory_space<vmem>>, vector<18x16x8xf32>
    %69 = arith.truncf %68 : vector<18x16x8xf32> to vector<18x16x8xbf16>
    %c0_61 = arith.constant 0 : index
    %c1_62 = arith.constant 1 : index
    %c0_63 = arith.constant 0 : index
    %70 = vector.load %arg19[%c0_61, %c1_62, %c0_63] : memref<18x18x8xf32, #tpu.memory_space<vmem>>, vector<18x16x8xf32>
    %71 = arith.truncf %70 : vector<18x16x8xf32> to vector<18x16x8xbf16>
    %c0_64 = arith.constant 0 : index
    %c2_65 = arith.constant 2 : index
    %c0_66 = arith.constant 0 : index
    %72 = vector.load %arg19[%c0_64, %c2_65, %c0_66] : memref<18x18x8xf32, #tpu.memory_space<vmem>>, vector<18x16x8xf32>
    %73 = arith.truncf %72 : vector<18x16x8xf32> to vector<18x16x8xbf16>
    %74 = vector.extract_strided_slice %69 {offsets = [0, 0, 0], sizes = [16, 16, 8], strides = [1, 1, 1]} : vector<18x16x8xbf16> to vector<16x16x8xbf16>
    %75 = vector.shape_cast %74 : vector<16x16x8xbf16> to vector<256x8xbf16>
    %76 = vector.extract_strided_slice %71 {offsets = [0, 0, 0], sizes = [16, 16, 8], strides = [1, 1, 1]} : vector<18x16x8xbf16> to vector<16x16x8xbf16>
    %77 = vector.shape_cast %76 : vector<16x16x8xbf16> to vector<256x8xbf16>
    %78 = vector.extract_strided_slice %73 {offsets = [0, 0, 0], sizes = [16, 16, 8], strides = [1, 1, 1]} : vector<18x16x8xbf16> to vector<16x16x8xbf16>
    %79 = vector.shape_cast %78 : vector<16x16x8xbf16> to vector<256x8xbf16>
    %80 = vector.extract_strided_slice %69 {offsets = [1, 0, 0], sizes = [16, 16, 8], strides = [1, 1, 1]} : vector<18x16x8xbf16> to vector<16x16x8xbf16>
    %81 = vector.shape_cast %80 : vector<16x16x8xbf16> to vector<256x8xbf16>
    %82 = vector.extract_strided_slice %71 {offsets = [1, 0, 0], sizes = [16, 16, 8], strides = [1, 1, 1]} : vector<18x16x8xbf16> to vector<16x16x8xbf16>
    %83 = vector.shape_cast %82 : vector<16x16x8xbf16> to vector<256x8xbf16>
    %84 = vector.extract_strided_slice %73 {offsets = [1, 0, 0], sizes = [16, 16, 8], strides = [1, 1, 1]} : vector<18x16x8xbf16> to vector<16x16x8xbf16>
    %85 = vector.shape_cast %84 : vector<16x16x8xbf16> to vector<256x8xbf16>
    %86 = vector.extract_strided_slice %69 {offsets = [2, 0, 0], sizes = [16, 16, 8], strides = [1, 1, 1]} : vector<18x16x8xbf16> to vector<16x16x8xbf16>
    %87 = vector.shape_cast %86 : vector<16x16x8xbf16> to vector<256x8xbf16>
    %88 = vector.extract_strided_slice %71 {offsets = [2, 0, 0], sizes = [16, 16, 8], strides = [1, 1, 1]} : vector<18x16x8xbf16> to vector<16x16x8xbf16>
    %89 = vector.shape_cast %88 : vector<16x16x8xbf16> to vector<256x8xbf16>
    %90 = vector.extract_strided_slice %73 {offsets = [2, 0, 0], sizes = [16, 16, 8], strides = [1, 1, 1]} : vector<18x16x8xbf16> to vector<16x16x8xbf16>
    %91 = vector.shape_cast %90 : vector<16x16x8xbf16> to vector<256x8xbf16>
    %92 = tpu.concatenate %75, %77, %79, %81, %83, %85, %87, %89, %91 in 1 : vector<256x8xbf16>, vector<256x8xbf16>, vector<256x8xbf16>, vector<256x8xbf16>, vector<256x8xbf16>, vector<256x8xbf16>, vector<256x8xbf16>, vector<256x8xbf16>, vector<256x8xbf16> -> vector<256x72xbf16>
    %c0_67 = arith.constant 0 : index
    %c0_68 = arith.constant 0 : index
    %93 = vector.load %arg8[%c0_67, %c0_68] : memref<72x8xbf16, #tpu.memory_space<vmem>>, vector<72x8xbf16>
    %cst_69 = arith.constant dense<0.000000e+00> : vector<256x8xf32>
    %94 = tpu.matmul %92, %93, %cst_69 {dimension_numbers = #tpu.dot_dimension_numbers<[1], [0], [0], [1], [0, 0, 1, 1], [], []>} : vector<256x72xbf16>, vector<72x8xbf16>, vector<256x8xf32> -> vector<256x8xf32>
    %c0_70 = arith.constant 0 : index
    %c0_71 = arith.constant 0 : index
    %95 = vector.load %arg9[%c0_70, %c0_71] : memref<1x8xf32, #tpu.memory_space<vmem>>, vector<1x8xf32>
    %96 = vector.broadcast %95 : vector<1x8xf32> to vector<256x8xf32>
    %97 = arith.mulf %94, %96 : vector<256x8xf32>
    %c0_72 = arith.constant 0 : index
    %c0_73 = arith.constant 0 : index
    %98 = vector.load %arg10[%c0_72, %c0_73] : memref<1x8xf32, #tpu.memory_space<vmem>>, vector<1x8xf32>
    %99 = vector.broadcast %98 : vector<1x8xf32> to vector<256x8xf32>
    %100 = arith.addf %97, %99 : vector<256x8xf32>
    %cst_74 = arith.constant 0.000000e+00 : f32
    %101 = vector.broadcast %cst_74 : f32 to vector<256x8xf32>
    %102 = arith.maximumf %100, %101 : vector<256x8xf32>
    %103 = vector.shape_cast %102 : vector<256x8xf32> to vector<16x16x8xf32>
    %cst_75 = arith.constant 0.000000e+00 : f32
    %104 = vector.broadcast %cst_75 : f32 to vector<1x18x8xf32>
    %cst_76 = arith.constant 0.000000e+00 : f32
    %105 = vector.broadcast %cst_76 : f32 to vector<16x1x8xf32>
    %c0_77 = arith.constant 0 : index
    %c0_78 = arith.constant 0 : index
    %c0_79 = arith.constant 0 : index
    %106 = vector.load %arg20[%c0_77, %c0_78, %c0_79] : memref<18x18x8xf32, #tpu.memory_space<vmem>>, vector<1x18x8xf32>
    tpu.vector_store %arg20[%c0_77, %c0_78, %c0_79], %104 {strides = array<i32>} : memref<18x18x8xf32, #tpu.memory_space<vmem>>, vector<1x18x8xf32>,
    %c17_80 = arith.constant 17 : index
    %c0_81 = arith.constant 0 : index
    %c0_82 = arith.constant 0 : index
    %107 = vector.load %arg20[%c17_80, %c0_81, %c0_82] : memref<18x18x8xf32, #tpu.memory_space<vmem>>, vector<1x18x8xf32>
    tpu.vector_store %arg20[%c17_80, %c0_81, %c0_82], %104 {strides = array<i32>} : memref<18x18x8xf32, #tpu.memory_space<vmem>>, vector<1x18x8xf32>,
    %c1_83 = arith.constant 1 : index
    %c0_84 = arith.constant 0 : index
    %c0_85 = arith.constant 0 : index
    %108 = vector.load %arg20[%c1_83, %c0_84, %c0_85] : memref<18x18x8xf32, #tpu.memory_space<vmem>>, vector<16x1x8xf32>
    tpu.vector_store %arg20[%c1_83, %c0_84, %c0_85], %105 {strides = array<i32>} : memref<18x18x8xf32, #tpu.memory_space<vmem>>, vector<16x1x8xf32>,
    %c1_86 = arith.constant 1 : index
    %c17_87 = arith.constant 17 : index
    %c0_88 = arith.constant 0 : index
    %109 = vector.load %arg20[%c1_86, %c17_87, %c0_88] : memref<18x18x8xf32, #tpu.memory_space<vmem>>, vector<16x1x8xf32>
    tpu.vector_store %arg20[%c1_86, %c17_87, %c0_88], %105 {strides = array<i32>} : memref<18x18x8xf32, #tpu.memory_space<vmem>>, vector<16x1x8xf32>,
    %c1_89 = arith.constant 1 : index
    %c1_90 = arith.constant 1 : index
    %c0_91 = arith.constant 0 : index
    %110 = vector.load %arg20[%c1_89, %c1_90, %c0_91] : memref<18x18x8xf32, #tpu.memory_space<vmem>>, vector<16x16x8xf32>
    tpu.vector_store %arg20[%c1_89, %c1_90, %c0_91], %103 {strides = array<i32>} : memref<18x18x8xf32, #tpu.memory_space<vmem>>, vector<16x16x8xf32>,
    %c0_92 = arith.constant 0 : index
    %c0_93 = arith.constant 0 : index
    %c0_94 = arith.constant 0 : index
    %111 = vector.load %arg20[%c0_92, %c0_93, %c0_94] : memref<18x18x8xf32, #tpu.memory_space<vmem>>, vector<18x16x8xf32>
    %112 = arith.truncf %111 : vector<18x16x8xf32> to vector<18x16x8xbf16>
    %c0_95 = arith.constant 0 : index
    %c1_96 = arith.constant 1 : index
    %c0_97 = arith.constant 0 : index
    %113 = vector.load %arg20[%c0_95, %c1_96, %c0_97] : memref<18x18x8xf32, #tpu.memory_space<vmem>>, vector<18x16x8xf32>
    %114 = arith.truncf %113 : vector<18x16x8xf32> to vector<18x16x8xbf16>
    %c0_98 = arith.constant 0 : index
    %c2_99 = arith.constant 2 : index
    %c0_100 = arith.constant 0 : index
    %115 = vector.load %arg20[%c0_98, %c2_99, %c0_100] : memref<18x18x8xf32, #tpu.memory_space<vmem>>, vector<18x16x8xf32>
    %116 = arith.truncf %115 : vector<18x16x8xf32> to vector<18x16x8xbf16>
    %117 = vector.extract_strided_slice %112 {offsets = [0, 0, 0], sizes = [16, 16, 8], strides = [1, 1, 1]} : vector<18x16x8xbf16> to vector<16x16x8xbf16>
    %118 = vector.shape_cast %117 : vector<16x16x8xbf16> to vector<256x8xbf16>
    %119 = vector.extract_strided_slice %114 {offsets = [0, 0, 0], sizes = [16, 16, 8], strides = [1, 1, 1]} : vector<18x16x8xbf16> to vector<16x16x8xbf16>
    %120 = vector.shape_cast %119 : vector<16x16x8xbf16> to vector<256x8xbf16>
    %121 = vector.extract_strided_slice %116 {offsets = [0, 0, 0], sizes = [16, 16, 8], strides = [1, 1, 1]} : vector<18x16x8xbf16> to vector<16x16x8xbf16>
    %122 = vector.shape_cast %121 : vector<16x16x8xbf16> to vector<256x8xbf16>
    %123 = vector.extract_strided_slice %112 {offsets = [1, 0, 0], sizes = [16, 16, 8], strides = [1, 1, 1]} : vector<18x16x8xbf16> to vector<16x16x8xbf16>
    %124 = vector.shape_cast %123 : vector<16x16x8xbf16> to vector<256x8xbf16>
    %125 = vector.extract_strided_slice %114 {offsets = [1, 0, 0], sizes = [16, 16, 8], strides = [1, 1, 1]} : vector<18x16x8xbf16> to vector<16x16x8xbf16>
    %126 = vector.shape_cast %125 : vector<16x16x8xbf16> to vector<256x8xbf16>
    %127 = vector.extract_strided_slice %116 {offsets = [1, 0, 0], sizes = [16, 16, 8], strides = [1, 1, 1]} : vector<18x16x8xbf16> to vector<16x16x8xbf16>
    %128 = vector.shape_cast %127 : vector<16x16x8xbf16> to vector<256x8xbf16>
    %129 = vector.extract_strided_slice %112 {offsets = [2, 0, 0], sizes = [16, 16, 8], strides = [1, 1, 1]} : vector<18x16x8xbf16> to vector<16x16x8xbf16>
    %130 = vector.shape_cast %129 : vector<16x16x8xbf16> to vector<256x8xbf16>
    %131 = vector.extract_strided_slice %114 {offsets = [2, 0, 0], sizes = [16, 16, 8], strides = [1, 1, 1]} : vector<18x16x8xbf16> to vector<16x16x8xbf16>
    %132 = vector.shape_cast %131 : vector<16x16x8xbf16> to vector<256x8xbf16>
    %133 = vector.extract_strided_slice %116 {offsets = [2, 0, 0], sizes = [16, 16, 8], strides = [1, 1, 1]} : vector<18x16x8xbf16> to vector<16x16x8xbf16>
    %134 = vector.shape_cast %133 : vector<16x16x8xbf16> to vector<256x8xbf16>
    %135 = tpu.concatenate %118, %120, %122, %124, %126, %128, %130, %132, %134 in 1 : vector<256x8xbf16>, vector<256x8xbf16>, vector<256x8xbf16>, vector<256x8xbf16>, vector<256x8xbf16>, vector<256x8xbf16>, vector<256x8xbf16>, vector<256x8xbf16>, vector<256x8xbf16> -> vector<256x72xbf16>
    %c0_101 = arith.constant 0 : index
    %c0_102 = arith.constant 0 : index
    %136 = vector.load %arg11[%c0_101, %c0_102] : memref<72x16xbf16, #tpu.memory_space<vmem>>, vector<72x16xbf16>
    %cst_103 = arith.constant dense<0.000000e+00> : vector<256x16xf32>
    %137 = tpu.matmul %135, %136, %cst_103 {dimension_numbers = #tpu.dot_dimension_numbers<[1], [0], [0], [1], [0, 0, 1, 1], [], []>} : vector<256x72xbf16>, vector<72x16xbf16>, vector<256x16xf32> -> vector<256x16xf32>
    %c0_104 = arith.constant 0 : index
    %c0_105 = arith.constant 0 : index
    %138 = vector.load %arg12[%c0_104, %c0_105] : memref<1x16xf32, #tpu.memory_space<vmem>>, vector<1x16xf32>
    %139 = vector.broadcast %138 : vector<1x16xf32> to vector<256x16xf32>
    %140 = arith.mulf %137, %139 : vector<256x16xf32>
    %c0_106 = arith.constant 0 : index
    %c0_107 = arith.constant 0 : index
    %141 = vector.load %arg13[%c0_106, %c0_107] : memref<1x16xf32, #tpu.memory_space<vmem>>, vector<1x16xf32>
    %142 = vector.broadcast %141 : vector<1x16xf32> to vector<256x16xf32>
    %143 = arith.addf %140, %142 : vector<256x16xf32>
    %cst_108 = arith.constant 0.000000e+00 : f32
    %144 = vector.broadcast %cst_108 : f32 to vector<256x16xf32>
    %145 = arith.maximumf %143, %144 : vector<256x16xf32>
    %cst_109 = arith.constant 0xFF800000 : f32
    %146 = vector.broadcast %cst_109 : f32 to vector<1x18x8xf32>
    %cst_110 = arith.constant 0xFF800000 : f32
    %147 = vector.broadcast %cst_110 : f32 to vector<16x1x8xf32>
    %c0_111 = arith.constant 0 : index
    %c0_112 = arith.constant 0 : index
    %c0_113 = arith.constant 0 : index
    %148 = vector.load %arg21[%c0_111, %c0_112, %c0_113] : memref<18x18x8xf32, #tpu.memory_space<vmem>>, vector<1x18x8xf32>
    tpu.vector_store %arg21[%c0_111, %c0_112, %c0_113], %146 {strides = array<i32>} : memref<18x18x8xf32, #tpu.memory_space<vmem>>, vector<1x18x8xf32>,
    %c17_114 = arith.constant 17 : index
    %c0_115 = arith.constant 0 : index
    %c0_116 = arith.constant 0 : index
    %149 = vector.load %arg21[%c17_114, %c0_115, %c0_116] : memref<18x18x8xf32, #tpu.memory_space<vmem>>, vector<1x18x8xf32>
    tpu.vector_store %arg21[%c17_114, %c0_115, %c0_116], %146 {strides = array<i32>} : memref<18x18x8xf32, #tpu.memory_space<vmem>>, vector<1x18x8xf32>,
    %c1_117 = arith.constant 1 : index
    %c0_118 = arith.constant 0 : index
    %c0_119 = arith.constant 0 : index
    %150 = vector.load %arg21[%c1_117, %c0_118, %c0_119] : memref<18x18x8xf32, #tpu.memory_space<vmem>>, vector<16x1x8xf32>
    tpu.vector_store %arg21[%c1_117, %c0_118, %c0_119], %147 {strides = array<i32>} : memref<18x18x8xf32, #tpu.memory_space<vmem>>, vector<16x1x8xf32>,
    %c1_120 = arith.constant 1 : index
    %c17_121 = arith.constant 17 : index
    %c0_122 = arith.constant 0 : index
    %151 = vector.load %arg21[%c1_120, %c17_121, %c0_122] : memref<18x18x8xf32, #tpu.memory_space<vmem>>, vector<16x1x8xf32>
    tpu.vector_store %arg21[%c1_120, %c17_121, %c0_122], %147 {strides = array<i32>} : memref<18x18x8xf32, #tpu.memory_space<vmem>>, vector<16x1x8xf32>,
    %c1_123 = arith.constant 1 : index
    %c1_124 = arith.constant 1 : index
    %c0_125 = arith.constant 0 : index
    %152 = vector.load %arg21[%c1_123, %c1_124, %c0_125] : memref<18x18x8xf32, #tpu.memory_space<vmem>>, vector<16x16x8xf32>
    tpu.vector_store %arg21[%c1_123, %c1_124, %c0_125], %1 {strides = array<i32>} : memref<18x18x8xf32, #tpu.memory_space<vmem>>, vector<16x16x8xf32>,
    %c0_126 = arith.constant 0 : index
    %c0_127 = arith.constant 0 : index
    %c0_128 = arith.constant 0 : index
    %153 = vector.load %arg21[%c0_126, %c0_127, %c0_128] : memref<18x18x8xf32, #tpu.memory_space<vmem>>, vector<18x16x8xf32>
    %154 = vector.extract_strided_slice %153 {offsets = [0, 0, 0], sizes = [16, 16, 8], strides = [1, 1, 1]} : vector<18x16x8xf32> to vector<16x16x8xf32>
    %155 = vector.extract_strided_slice %153 {offsets = [1, 0, 0], sizes = [16, 16, 8], strides = [1, 1, 1]} : vector<18x16x8xf32> to vector<16x16x8xf32>
    %156 = arith.maximumf %154, %155 : vector<16x16x8xf32>
    %157 = vector.extract_strided_slice %153 {offsets = [2, 0, 0], sizes = [16, 16, 8], strides = [1, 1, 1]} : vector<18x16x8xf32> to vector<16x16x8xf32>
    %158 = arith.maximumf %156, %157 : vector<16x16x8xf32>
    %c0_129 = arith.constant 0 : index
    %c1_130 = arith.constant 1 : index
    %c0_131 = arith.constant 0 : index
    %159 = vector.load %arg21[%c0_129, %c1_130, %c0_131] : memref<18x18x8xf32, #tpu.memory_space<vmem>>, vector<18x16x8xf32>
    %160 = vector.extract_strided_slice %159 {offsets = [0, 0, 0], sizes = [16, 16, 8], strides = [1, 1, 1]} : vector<18x16x8xf32> to vector<16x16x8xf32>
    %161 = arith.maximumf %158, %160 : vector<16x16x8xf32>
    %162 = vector.extract_strided_slice %159 {offsets = [1, 0, 0], sizes = [16, 16, 8], strides = [1, 1, 1]} : vector<18x16x8xf32> to vector<16x16x8xf32>
    %163 = arith.maximumf %161, %162 : vector<16x16x8xf32>
    %164 = vector.extract_strided_slice %159 {offsets = [2, 0, 0], sizes = [16, 16, 8], strides = [1, 1, 1]} : vector<18x16x8xf32> to vector<16x16x8xf32>
    %165 = arith.maximumf %163, %164 : vector<16x16x8xf32>
    %c0_132 = arith.constant 0 : index
    %c2_133 = arith.constant 2 : index
    %c0_134 = arith.constant 0 : index
    %166 = vector.load %arg21[%c0_132, %c2_133, %c0_134] : memref<18x18x8xf32, #tpu.memory_space<vmem>>, vector<18x16x8xf32>
    %167 = vector.extract_strided_slice %166 {offsets = [0, 0, 0], sizes = [16, 16, 8], strides = [1, 1, 1]} : vector<18x16x8xf32> to vector<16x16x8xf32>
    %168 = arith.maximumf %165, %167 : vector<16x16x8xf32>
    %169 = vector.extract_strided_slice %166 {offsets = [1, 0, 0], sizes = [16, 16, 8], strides = [1, 1, 1]} : vector<18x16x8xf32> to vector<16x16x8xf32>
    %170 = arith.maximumf %168, %169 : vector<16x16x8xf32>
    %171 = vector.extract_strided_slice %166 {offsets = [2, 0, 0], sizes = [16, 16, 8], strides = [1, 1, 1]} : vector<18x16x8xf32> to vector<16x16x8xf32>
    %172 = arith.maximumf %170, %171 : vector<16x16x8xf32>
    %173 = vector.shape_cast %172 : vector<16x16x8xf32> to vector<256x8xf32>
    %174 = arith.truncf %173 : vector<256x8xf32> to vector<256x8xbf16>
    %c0_135 = arith.constant 0 : index
    %c0_136 = arith.constant 0 : index
    %175 = vector.load %arg14[%c0_135, %c0_136] : memref<8x16xbf16, #tpu.memory_space<vmem>>, vector<8x16xbf16>
    %cst_137 = arith.constant dense<0.000000e+00> : vector<256x16xf32>
    %176 = tpu.matmul %174, %175, %cst_137 {dimension_numbers = #tpu.dot_dimension_numbers<[1], [0], [0], [1], [0, 0, 1, 1], [], []>} : vector<256x8xbf16>, vector<8x16xbf16>, vector<256x16xf32> -> vector<256x16xf32>
    %c0_138 = arith.constant 0 : index
    %c0_139 = arith.constant 0 : index
    %177 = vector.load %arg15[%c0_138, %c0_139] : memref<1x16xf32, #tpu.memory_space<vmem>>, vector<1x16xf32>
    %178 = vector.broadcast %177 : vector<1x16xf32> to vector<256x16xf32>
    %179 = arith.mulf %176, %178 : vector<256x16xf32>
    %c0_140 = arith.constant 0 : index
    %c0_141 = arith.constant 0 : index
    %180 = vector.load %arg16[%c0_140, %c0_141] : memref<1x16xf32, #tpu.memory_space<vmem>>, vector<1x16xf32>
    %181 = vector.broadcast %180 : vector<1x16xf32> to vector<256x16xf32>
    %182 = arith.addf %179, %181 : vector<256x16xf32>
    %cst_142 = arith.constant 0.000000e+00 : f32
    %183 = vector.broadcast %cst_142 : f32 to vector<256x16xf32>
    %184 = arith.maximumf %182, %183 : vector<256x16xf32>
    %185 = tpu.concatenate %14, %59, %145, %184 in 1 : vector<256x16xf32>, vector<256x16xf32>, vector<256x16xf32>, vector<256x16xf32> -> vector<256x64xf32>
    %c0_143 = arith.constant 0 : index
    %c0_144 = arith.constant 0 : index
    %c0_145 = arith.constant 0 : index
    %186 = vector.load %arg17[%c0_143, %c0_144, %c0_145] : memref<1x256x64xf32, #tpu.memory_space<vmem>>, vector<1x256x64xf32>
    %187 = vector.shape_cast %186 : vector<1x256x64xf32> to vector<256x64xf32>
    %188 = vector.shape_cast %185 : vector<256x64xf32> to vector<1x256x64xf32>
    tpu.vector_store %arg17[%c0_143, %c0_144, %c0_145], %188 {strides = array<i32>} : memref<1x256x64xf32, #tpu.memory_space<vmem>>, vector<1x256x64xf32>,
    return
  }
  func.func @transform_0(%arg0: i32) -> (i32, i32, i32, i32) {
    %c0_i32 = arith.constant 0 : i32
    %c0_i32_0 = arith.constant 0 : i32
    %c0_i32_1 = arith.constant 0 : i32
    %c0_i32_2 = arith.constant 0 : i32
    return %arg0, %c0_i32, %c0_i32_0, %c0_i32_1 : i32, i32, i32, i32
  }
  func.func @transform_1(%arg0: i32) -> (i32, i32) {
    %c0_i32 = arith.constant 0 : i32
    %c0_i32_0 = arith.constant 0 : i32
    %c0_i32_1 = arith.constant 0 : i32
    return %c0_i32, %c0_i32_0 : i32, i32
  }
  func.func @transform_2(%arg0: i32) -> (i32, i32) {
    %c0_i32 = arith.constant 0 : i32
    %c0_i32_0 = arith.constant 0 : i32
    %c0_i32_1 = arith.constant 0 : i32
    return %c0_i32, %c0_i32_0 : i32, i32
  }
  func.func @transform_3(%arg0: i32) -> (i32, i32) {
    %c0_i32 = arith.constant 0 : i32
    %c0_i32_0 = arith.constant 0 : i32
    %c0_i32_1 = arith.constant 0 : i32
    return %c0_i32, %c0_i32_0 : i32, i32
  }
  func.func @transform_4(%arg0: i32) -> (i32, i32) {
    %c0_i32 = arith.constant 0 : i32
    %c0_i32_0 = arith.constant 0 : i32
    %c0_i32_1 = arith.constant 0 : i32
    return %c0_i32, %c0_i32_0 : i32, i32
  }
  func.func @transform_5(%arg0: i32) -> (i32, i32) {
    %c0_i32 = arith.constant 0 : i32
    %c0_i32_0 = arith.constant 0 : i32
    %c0_i32_1 = arith.constant 0 : i32
    return %c0_i32, %c0_i32_0 : i32, i32
  }
  func.func @transform_6(%arg0: i32) -> (i32, i32) {
    %c0_i32 = arith.constant 0 : i32
    %c0_i32_0 = arith.constant 0 : i32
    %c0_i32_1 = arith.constant 0 : i32
    return %c0_i32, %c0_i32_0 : i32, i32
  }
  func.func @transform_7(%arg0: i32) -> (i32, i32) {
    %c0_i32 = arith.constant 0 : i32
    %c0_i32_0 = arith.constant 0 : i32
    %c0_i32_1 = arith.constant 0 : i32
    return %c0_i32, %c0_i32_0 : i32, i32
  }
  func.func @transform_8(%arg0: i32) -> (i32, i32) {
    %c0_i32 = arith.constant 0 : i32
    %c0_i32_0 = arith.constant 0 : i32
    %c0_i32_1 = arith.constant 0 : i32
    return %c0_i32, %c0_i32_0 : i32, i32
  }
  func.func @transform_9(%arg0: i32) -> (i32, i32) {
    %c0_i32 = arith.constant 0 : i32
    %c0_i32_0 = arith.constant 0 : i32
    %c0_i32_1 = arith.constant 0 : i32
    return %c0_i32, %c0_i32_0 : i32, i32
  }
  func.func @transform_10(%arg0: i32) -> (i32, i32) {
    %c0_i32 = arith.constant 0 : i32
    %c0_i32_0 = arith.constant 0 : i32
    %c0_i32_1 = arith.constant 0 : i32
    return %c0_i32, %c0_i32_0 : i32, i32
  }
  func.func @transform_11(%arg0: i32) -> (i32, i32) {
    %c0_i32 = arith.constant 0 : i32
    %c0_i32_0 = arith.constant 0 : i32
    %c0_i32_1 = arith.constant 0 : i32
    return %c0_i32, %c0_i32_0 : i32, i32
  }
  func.func @transform_12(%arg0: i32) -> (i32, i32) {
    %c0_i32 = arith.constant 0 : i32
    %c0_i32_0 = arith.constant 0 : i32
    %c0_i32_1 = arith.constant 0 : i32
    return %c0_i32, %c0_i32_0 : i32, i32
  }
  func.func @transform_13(%arg0: i32) -> (i32, i32) {
    %c0_i32 = arith.constant 0 : i32
    %c0_i32_0 = arith.constant 0 : i32
    %c0_i32_1 = arith.constant 0 : i32
    return %c0_i32, %c0_i32_0 : i32, i32
  }
  func.func @transform_14(%arg0: i32) -> (i32, i32) {
    %c0_i32 = arith.constant 0 : i32
    %c0_i32_0 = arith.constant 0 : i32
    %c0_i32_1 = arith.constant 0 : i32
    return %c0_i32, %c0_i32_0 : i32, i32
  }
  func.func @transform_15(%arg0: i32) -> (i32, i32) {
    %c0_i32 = arith.constant 0 : i32
    %c0_i32_0 = arith.constant 0 : i32
    %c0_i32_1 = arith.constant 0 : i32
    return %c0_i32, %c0_i32_0 : i32, i32
  }
  func.func @transform_16(%arg0: i32) -> (i32, i32, i32) {
    %c0_i32 = arith.constant 0 : i32
    %c0_i32_0 = arith.constant 0 : i32
    %c0_i32_1 = arith.constant 0 : i32
    return %arg0, %c0_i32, %c0_i32_0 : i32, i32, i32
  }
}

</mosaic_0001>

<llo_original>
// kernel: inception_forward.1
$region0: #{inception_forward.1}
  #allocation0 [shape = 'u32[]', space=smem, size = 0x4, offset = 0x4, fixed_abs, tag = 'smem constant byte address 0x4 - core index']
  #allocation1 [shape = 'u32[144,128]{1,0:T(1,128)}', space=vmem, size = 0x12000, scoped, tag = 'internal scratch']
  #allocation2 [shape = 'f32[18,18,8]{2,1,0:T(8,128)}', space=vmem, size = 0x36000, scoped, tag = 'scratch operand']
  #allocation3 [shape = 'f32[18,18,8]{2,1,0:T(8,128)}', space=vmem, size = 0x36000, scoped, tag = 'scratch operand']
  #allocation4 [shape = 'f32[18,18,8]{2,1,0:T(8,128)}', space=vmem, size = 0x36000, scoped, tag = 'scratch operand']
  #allocation5 [shape = 'f32[18,18,8]{2,1,0:T(8,128)}', space=vmem, size = 0x36000, scoped, tag = 'scratch operand']
  %s0 = inlined_call_operand.vmem [shape: f32[2,16,16,8], index: 0, kind: input, shape index: {}]
  %s1 = inlined_call_operand.vmem [shape: bf16[8,32], index: 1, kind: input, shape index: {}]
  %s2 = inlined_call_operand.vmem [shape: f32[1,32], index: 2, kind: input, shape index: {}]
  %s3 = inlined_call_operand.vmem [shape: f32[1,32], index: 3, kind: input, shape index: {}]
  %s4 = inlined_call_operand.vmem [shape: bf16[72,16], index: 4, kind: input, shape index: {}]
  %s5 = inlined_call_operand.vmem [shape: f32[1,16], index: 5, kind: input, shape index: {}]
  %s6 = inlined_call_operand.vmem [shape: f32[1,16], index: 6, kind: input, shape index: {}]
  %s7 = inlined_call_operand.vmem [shape: bf16[72,8], index: 7, kind: input, shape index: {}]
  %s8 = inlined_call_operand.vmem [shape: f32[1,8], index: 8, kind: input, shape index: {}]
  %s9 = inlined_call_operand.vmem [shape: f32[1,8], index: 9, kind: input, shape index: {}]
  %s10 = inlined_call_operand.vmem [shape: bf16[72,16], index: 10, kind: input, shape index: {}]
  %s11 = inlined_call_operand.vmem [shape: f32[1,16], index: 11, kind: input, shape index: {}]
  %s12 = inlined_call_operand.vmem [shape: f32[1,16], index: 12, kind: input, shape index: {}]
  %s13 = inlined_call_operand.vmem [shape: bf16[8,16], index: 13, kind: input, shape index: {}]
  %s14 = inlined_call_operand.vmem [shape: f32[1,16], index: 14, kind: input, shape index: {}]
  %s15 = inlined_call_operand.vmem [shape: f32[1,16], index: 15, kind: input, shape index: {}]
  %s16 = inlined_call_operand.hbm [shape: f32[2,256,64], index: 16, kind: output, shape index: {}]
  %s17 = sld [smem:[#allocation0]]
  $region97: #{inception_forward.1} parent=0
    _
  %s19 = ssub.s32 1, %s17
  %s20 = scalar_select 0, %s19, %s17
  $region1: #{inception_forward.1} parent=0
    #allocation6 [shape = 'u8[262144]{0}', space=vmem, size = 0x40000, scoped, tag = 'output window, operand 0']
    #allocation7 [shape = 's32[2]{0}', space=sflag, size = 0x8, scoped, tag = 'scoped memory for inception_forward.1']
    %21 = vsyncpa [#allocation7], 0
    %s22 = scalar_lea.sflag [#allocation7], 1
    %23 = vsyncpa %s22, 0
    loop: start=0, step=1, limit=4
    $region2: #{inception_forward.1} parent=1 // loop_pre_header
      _
    $region3: #{inception_forward.1} parent=1 // loop_header
      %s25 = sphi 0, %s29
      %p26 = scmp.ge.s32.totalorder %s25, 4
      %s35 = sphi 0, %s37
      %s38 = sphi 0, %s35
      %s39 = sphi 0, %s38
      %s55 = sphi 0, %s39
      %s59 = sphi 0, %s59
      %s61 = sphi 0, %s59
      %s62 = sphi 0, %s61
      %s76 = sphi 0, %s62
      %s80 = sphi 0, %s80
      %s82 = sphi 0, %s80
      %s83 = sphi 0, %s82
      %s97 = sphi 0, %s83
      %s101 = sphi 0, %s101
      %s103 = sphi 0, %s101
      %s104 = sphi 0, %s103
      %s118 = sphi 0, %s104
      %s122 = sphi 0, %s122
      %s124 = sphi 0, %s122
      %s125 = sphi 0, %s124
      %s139 = sphi 0, %s125
      %s143 = sphi 0, %s143
      %s145 = sphi 0, %s143
      %s146 = sphi 0, %s145
      %s160 = sphi 0, %s146
      %s164 = sphi 0, %s164
      %s166 = sphi 0, %s164
      %s167 = sphi 0, %s166
      %s181 = sphi 0, %s167
      %s185 = sphi 0, %s185
      %s187 = sphi 0, %s185
      %s188 = sphi 0, %s187
      %s202 = sphi 0, %s188
      %s206 = sphi 0, %s206
      %s208 = sphi 0, %s206
      %s209 = sphi 0, %s208
      %s223 = sphi 0, %s209
      %s227 = sphi 0, %s227
      %s229 = sphi 0, %s227
      %s230 = sphi 0, %s229
      %s244 = sphi 0, %s230
      %s248 = sphi 0, %s248
      %s250 = sphi 0, %s248
      %s251 = sphi 0, %s250
      %s265 = sphi 0, %s251
      %s269 = sphi 0, %s269
      %s271 = sphi 0, %s269
      %s272 = sphi 0, %s271
      %s286 = sphi 0, %s272
      %s290 = sphi 0, %s290
      %s292 = sphi 0, %s290
      %s293 = sphi 0, %s292
      %s307 = sphi 0, %s293
      %s311 = sphi 0, %s311
      %s313 = sphi 0, %s311
      %s314 = sphi 0, %s313
      %s328 = sphi 0, %s314
      %s332 = sphi 0, %s332
      %s334 = sphi 0, %s332
      %s335 = sphi 0, %s334
      %s349 = sphi 0, %s335
      %s353 = sphi 0, %s353
      %s355 = sphi 0, %s353
      %s356 = sphi 0, %s355
      %s370 = sphi 0, %s356
      %s376 = sphi 0, %s378
      %s379 = sphi 0, %s376
      %s380 = sphi 0, %s379
      %s396 = sphi 0, %s380
    $region4: #{inception_forward.1} parent=1 // loop_header_branch
      %28 = sbr.rel (%p26) target = $region8
    $region5: #{inception_forward.1} parent=1 // loop_body
      %s30 = ssub.s32 %s25, 1
      %s31 = ssub.s32 %s25, 2
      %s32 = sadd.s32 %s25, 1
      %s33 = ssub.s32 %s25, %s32
      %p34 = scmp.eq.s32.totalorder %s33, 0
      %s36 = sadd.s32 %s35, 1
      %s37 = scalar_select %p34, %s35, %s36
      %p40 = pneg %p34
      %p41 = scmp.eq.s32.totalorder %s25, 1
      %p42 = por %p40, %p41
      %p43 = scmp.ne.s32.totalorder %s35, %s38
      %p44 = scmp.eq.s32.totalorder %s25, 0
      %p45 = por %p43, %p44
      %p46 = scmp.ne.s32.totalorder %s35, %s38
      %p47 = scmp.eq.s32.totalorder %s30, 1
      %p48 = por %p46, %p47
      %p49 = scmp.ne.s32.totalorder %s38, %s39
      %p50 = scmp.eq.s32.totalorder %s30, 0
      %p51 = por %p49, %p50
      %p52 = scmp.ne.s32.totalorder %s38, %s39
      %p53 = scmp.eq.s32.totalorder %s31, 1
      %p54 = por %p52, %p53
      %p56 = scmp.ne.s32.totalorder %s39, %s55
      %p57 = scmp.eq.s32.totalorder %s31, 0
      %p58 = por %p56, %p57
      %s60 = sadd.s32 %s59, 1
      %p63 = scmp.eq.s32.totalorder %s25, 1
      %p64 = scmp.ne.s32.totalorder %s59, %s61
      %p65 = scmp.eq.s32.totalorder %s25, 0
      %p66 = por %p64, %p65
      %p67 = scmp.ne.s32.totalorder %s59, %s61
      %p68 = scmp.eq.s32.totalorder %s30, 1
      %p69 = por %p67, %p68
      %p70 = scmp.ne.s32.totalorder %s61, %s62
      %p71 = scmp.eq.s32.totalorder %s30, 0
      %p72 = por %p70, %p71
      %p73 = scmp.ne.s32.totalorder %s61, %s62
      %p74 = scmp.eq.s32.totalorder %s31, 1
      %p75 = por %p73, %p74
      %p77 = scmp.ne.s32.totalorder %s62, %s76
      %p78 = scmp.eq.s32.totalorder %s31, 0
      %p79 = por %p77, %p78
      %s81 = sadd.s32 %s80, 1
      %p84 = scmp.eq.s32.totalorder %s25, 1
      %p85 = scmp.ne.s32.totalorder %s80, %s82
      %p86 = scmp.eq.s32.totalorder %s25, 0
      %p87 = por %p85, %p86
      %p88 = scmp.ne.s32.totalorder %s80, %s82
      %p89 = scmp.eq.s32.totalorder %s30, 1
      %p90 = por %p88, %p89
      %p91 = scmp.ne.s32.totalorder %s82, %s83
      %p92 = scmp.eq.s32.totalorder %s30, 0
      %p93 = por %p91, %p92
      %p94 = scmp.ne.s32.totalorder %s82, %s83
      %p95 = scmp.eq.s32.totalorder %s31, 1
      %p96 = por %p94, %p95
      %p98 = scmp.ne.s32.totalorder %s83, %s97
      %p99 = scmp.eq.s32.totalorder %s31, 0
      %p100 = por %p98, %p99
      %s102 = sadd.s32 %s101, 1
      %p105 = scmp.eq.s32.totalorder %s25, 1
      %p106 = scmp.ne.s32.totalorder %s101, %s103
      %p107 = scmp.eq.s32.totalorder %s25, 0
      %p108 = por %p106, %p107
      %p109 = scmp.ne.s32.totalorder %s101, %s103
      %p110 = scmp.eq.s32.totalorder %s30, 1
      %p111 = por %p109, %p110
      %p112 = scmp.ne.s32.totalorder %s103, %s104
      %p113 = scmp.eq.s32.totalorder %s30, 0
      %p114 = por %p112, %p113
      %p115 = scmp.ne.s32.totalorder %s103, %s104
      %p116 = scmp.eq.s32.totalorder %s31, 1
      %p117 = por %p115, %p116
      %p119 = scmp.ne.s32.totalorder %s104, %s118
      %p120 = scmp.eq.s32.totalorder %s31, 0
      %p121 = por %p119, %p120
      %s123 = sadd.s32 %s122, 1
      %p126 = scmp.eq.s32.totalorder %s25, 1
      %p127 = scmp.ne.s32.totalorder %s122, %s124
      %p128 = scmp.eq.s32.totalorder %s25, 0
      %p129 = por %p127, %p128
      %p130 = scmp.ne.s32.totalorder %s122, %s124
      %p131 = scmp.eq.s32.totalorder %s30, 1
      %p132 = por %p130, %p131
      %p133 = scmp.ne.s32.totalorder %s124, %s125
      %p134 = scmp.eq.s32.totalorder %s30, 0
      %p135 = por %p133, %p134
      %p136 = scmp.ne.s32.totalorder %s124, %s125
      %p137 = scmp.eq.s32.totalorder %s31, 1
      %p138 = por %p136, %p137
      %p140 = scmp.ne.s32.totalorder %s125, %s139
      %p141 = scmp.eq.s32.totalorder %s31, 0
      %p142 = por %p140, %p141
      %s144 = sadd.s32 %s143, 1
      %p147 = scmp.eq.s32.totalorder %s25, 1
      %p148 = scmp.ne.s32.totalorder %s143, %s145
      %p149 = scmp.eq.s32.totalorder %s25, 0
      %p150 = por %p148, %p149
      %p151 = scmp.ne.s32.totalorder %s143, %s145
      %p152 = scmp.eq.s32.totalorder %s30, 1
      %p153 = por %p151, %p152
      %p154 = scmp.ne.s32.totalorder %s145, %s146
      %p155 = scmp.eq.s32.totalorder %s30, 0
      %p156 = por %p154, %p155
      %p157 = scmp.ne.s32.totalorder %s145, %s146
      %p158 = scmp.eq.s32.totalorder %s31, 1
      %p159 = por %p157, %p158
      %p161 = scmp.ne.s32.totalorder %s146, %s160
      %p162 = scmp.eq.s32.totalorder %s31, 0
      %p163 = por %p161, %p162
      %s165 = sadd.s32 %s164, 1
      %p168 = scmp.eq.s32.totalorder %s25, 1
      %p169 = scmp.ne.s32.totalorder %s164, %s166
      %p170 = scmp.eq.s32.totalorder %s25, 0
      %p171 = por %p169, %p170
      %p172 = scmp.ne.s32.totalorder %s164, %s166
      %p173 = scmp.eq.s32.totalorder %s30, 1
      %p174 = por %p172, %p173
      %p175 = scmp.ne.s32.totalorder %s166, %s167
      %p176 = scmp.eq.s32.totalorder %s30, 0
      %p177 = por %p175, %p176
      %p178 = scmp.ne.s32.totalorder %s166, %s167
      %p179 = scmp.eq.s32.totalorder %s31, 1
      %p180 = por %p178, %p179
      %p182 = scmp.ne.s32.totalorder %s167, %s181
      %p183 = scmp.eq.s32.totalorder %s31, 0
      %p184 = por %p182, %p183
      %s186 = sadd.s32 %s185, 1
      %p189 = scmp.eq.s32.totalorder %s25, 1
      %p190 = scmp.ne.s32.totalorder %s185, %s187
      %p191 = scmp.eq.s32.totalorder %s25, 0
      %p192 = por %p190, %p191
      %p193 = scmp.ne.s32.totalorder %s185, %s187
      %p194 = scmp.eq.s32.totalorder %s30, 1
      %p195 = por %p193, %p194
      %p196 = scmp.ne.s32.totalorder %s187, %s188
      %p197 = scmp.eq.s32.totalorder %s30, 0
      %p198 = por %p196, %p197
      %p199 = scmp.ne.s32.totalorder %s187, %s188
      %p200 = scmp.eq.s32.totalorder %s31, 1
      %p201 = por %p199, %p200
      %p203 = scmp.ne.s32.totalorder %s188, %s202
      %p204 = scmp.eq.s32.totalorder %s31, 0
      %p205 = por %p203, %p204
      %s207 = sadd.s32 %s206, 1
      %p210 = scmp.eq.s32.totalorder %s25, 1
      %p211 = scmp.ne.s32.totalorder %s206, %s208
      %p212 = scmp.eq.s32.totalorder %s25, 0
      %p213 = por %p211, %p212
      %p214 = scmp.ne.s32.totalorder %s206, %s208
      %p215 = scmp.eq.s32.totalorder %s30, 1
      %p216 = por %p214, %p215
      %p217 = scmp.ne.s32.totalorder %s208, %s209
      %p218 = scmp.eq.s32.totalorder %s30, 0
      %p219 = por %p217, %p218
      %p220 = scmp.ne.s32.totalorder %s208, %s209
      %p221 = scmp.eq.s32.totalorder %s31, 1
      %p222 = por %p220, %p221
      %p224 = scmp.ne.s32.totalorder %s209, %s223
      %p225 = scmp.eq.s32.totalorder %s31, 0
      %p226 = por %p224, %p225
      %s228 = sadd.s32 %s227, 1
      %p231 = scmp.eq.s32.totalorder %s25, 1
      %p232 = scmp.ne.s32.totalorder %s227, %s229
      %p233 = scmp.eq.s32.totalorder %s25, 0
      %p234 = por %p232, %p233
      %p235 = scmp.ne.s32.totalorder %s227, %s229
      %p236 = scmp.eq.s32.totalorder %s30, 1
      %p237 = por %p235, %p236
      %p238 = scmp.ne.s32.totalorder %s229, %s230
      %p239 = scmp.eq.s32.totalorder %s30, 0
      %p240 = por %p238, %p239
      %p241 = scmp.ne.s32.totalorder %s229, %s230
      %p242 = scmp.eq.s32.totalorder %s31, 1
      %p243 = por %p241, %p242
      %p245 = scmp.ne.s32.totalorder %s230, %s244
      %p246 = scmp.eq.s32.totalorder %s31, 0
      %p247 = por %p245, %p246
      %s249 = sadd.s32 %s248, 1
      %p252 = scmp.eq.s32.totalorder %s25, 1
      %p253 = scmp.ne.s32.totalorder %s248, %s250
      %p254 = scmp.eq.s32.totalorder %s25, 0
      %p255 = por %p253, %p254
      %p256 = scmp.ne.s32.totalorder %s248, %s250
      %p257 = scmp.eq.s32.totalorder %s30, 1
      %p258 = por %p256, %p257
      %p259 = scmp.ne.s32.totalorder %s250, %s251
      %p260 = scmp.eq.s32.totalorder %s30, 0
      %p261 = por %p259, %p260
      %p262 = scmp.ne.s32.totalorder %s250, %s251
      %p263 = scmp.eq.s32.totalorder %s31, 1
      %p264 = por %p262, %p263
      %p266 = scmp.ne.s32.totalorder %s251, %s265
      %p267 = scmp.eq.s32.totalorder %s31, 0
      %p268 = por %p266, %p267
      %s270 = sadd.s32 %s269, 1
      %p273 = scmp.eq.s32.totalorder %s25, 1
      %p274 = scmp.ne.s32.totalorder %s269, %s271
      %p275 = scmp.eq.s32.totalorder %s25, 0
      %p276 = por %p274, %p275
      %p277 = scmp.ne.s32.totalorder %s269, %s271
      %p278 = scmp.eq.s32.totalorder %s30, 1
      %p279 = por %p277, %p278
      %p280 = scmp.ne.s32.totalorder %s271, %s272
      %p281 = scmp.eq.s32.totalorder %s30, 0
      %p282 = por %p280, %p281
      %p283 = scmp.ne.s32.totalorder %s271, %s272
      %p284 = scmp.eq.s32.totalorder %s31, 1
      %p285 = por %p283, %p284
      %p287 = scmp.ne.s32.totalorder %s272, %s286
      %p288 = scmp.eq.s32.totalorder %s31, 0
      %p289 = por %p287, %p288
      %s291 = sadd.s32 %s290, 1
      %p294 = scmp.eq.s32.totalorder %s25, 1
      %p295 = scmp.ne.s32.totalorder %s290, %s292
      %p296 = scmp.eq.s32.totalorder %s25, 0
      %p297 = por %p295, %p296
      %p298 = scmp.ne.s32.totalorder %s290, %s292
      %p299 = scmp.eq.s32.totalorder %s30, 1
      %p300 = por %p298, %p299
      %p301 = scmp.ne.s32.totalorder %s292, %s293
      %p302 = scmp.eq.s32.totalorder %s30, 0
      %p303 = por %p301, %p302
      %p304 = scmp.ne.s32.totalorder %s292, %s293
      %p305 = scmp.eq.s32.totalorder %s31, 1
      %p306 = por %p304, %p305
      %p308 = scmp.ne.s32.totalorder %s293, %s307
      %p309 = scmp.eq.s32.totalorder %s31, 0
      %p310 = por %p308, %p309
      %s312 = sadd.s32 %s311, 1
      %p315 = scmp.eq.s32.totalorder %s25, 1
      %p316 = scmp.ne.s32.totalorder %s311, %s313
      %p317 = scmp.eq.s32.totalorder %s25, 0
      %p318 = por %p316, %p317
      %p319 = scmp.ne.s32.totalorder %s311, %s313
      %p320 = scmp.eq.s32.totalorder %s30, 1
      %p321 = por %p319, %p320
      %p322 = scmp.ne.s32.totalorder %s313, %s314
      %p323 = scmp.eq.s32.totalorder %s30, 0
      %p324 = por %p322, %p323
      %p325 = scmp.ne.s32.totalorder %s313, %s314
      %p326 = scmp.eq.s32.totalorder %s31, 1
      %p327 = por %p325, %p326
      %p329 = scmp.ne.s32.totalorder %s314, %s328
      %p330 = scmp.eq.s32.totalorder %s31, 0
      %p331 = por %p329, %p330
      %s333 = sadd.s32 %s332, 1
      %p336 = scmp.eq.s32.totalorder %s25, 1
      %p337 = scmp.ne.s32.totalorder %s332, %s334
      %p338 = scmp.eq.s32.totalorder %s25, 0
      %p339 = por %p337, %p338
      %p340 = scmp.ne.s32.totalorder %s332, %s334
      %p341 = scmp.eq.s32.totalorder %s30, 1
      %p342 = por %p340, %p341
      %p343 = scmp.ne.s32.totalorder %s334, %s335
      %p344 = scmp.eq.s32.totalorder %s30, 0
      %p345 = por %p343, %p344
      %p346 = scmp.ne.s32.totalorder %s334, %s335
      %p347 = scmp.eq.s32.totalorder %s31, 1
      %p348 = por %p346, %p347
      %p350 = scmp.ne.s32.totalorder %s335, %s349
      %p351 = scmp.eq.s32.totalorder %s31, 0
      %p352 = por %p350, %p351
      %s354 = sadd.s32 %s353, 1
      %p357 = scmp.eq.s32.totalorder %s25, 1
      %p358 = scmp.ne.s32.totalorder %s353, %s355
      %p359 = scmp.eq.s32.totalorder %s25, 0
      %p360 = por %p358, %p359
      %p361 = scmp.ne.s32.totalorder %s353, %s355
      %p362 = scmp.eq.s32.totalorder %s30, 1
      %p363 = por %p361, %p362
      %p364 = scmp.ne.s32.totalorder %s355, %s356
      %p365 = scmp.eq.s32.totalorder %s30, 0
      %p366 = por %p364, %p365
      %p367 = scmp.ne.s32.totalorder %s355, %s356
      %p368 = scmp.eq.s32.totalorder %s31, 1
      %p369 = por %p367, %p368
      %p371 = scmp.ne.s32.totalorder %s356, %s370
      %p372 = scmp.eq.s32.totalorder %s31, 0
      %p373 = por %p371, %p372
      %s374 = ssub.s32 %s25, %s32
      %p375 = scmp.eq.s32.totalorder %s374, 0
      %s377 = sadd.s32 %s376, 1
      %s378 = scalar_select %p375, %s376, %s377
      %p381 = pneg %p375
      %p382 = scmp.eq.s32.totalorder %s25, 1
      %p383 = por %p381, %p382
      %p384 = scmp.ne.s32.totalorder %s376, %s379
      %p385 = scmp.eq.s32.totalorder %s25, 0
      %p386 = por %p384, %p385
      %p387 = scmp.ne.s32.totalorder %s376, %s379
      %p388 = scmp.eq.s32.totalorder %s30, 1
      %p389 = por %p387, %p388
      %p390 = scmp.ne.s32.totalorder %s379, %s380
      %p391 = scmp.eq.s32.totalorder %s30, 0
      %p392 = por %p390, %p391
      %p393 = scmp.ne.s32.totalorder %s379, %s380
      %p394 = scmp.eq.s32.totalorder %s31, 1
      %p395 = por %p393, %p394
      %p397 = scmp.ne.s32.totalorder %s380, %s396
      %p398 = scmp.eq.s32.totalorder %s31, 0
      %p399 = por %p397, %p398
      %p400 = scmp.le.s32.totalorder 1, %s25
      %p401 = scmp.lt.s32.totalorder %s25, 3
      %p402 = pnand %p400, %p401
      %p403 = pneg %p402
      // Predicated region
      $region9: #{inception_forward.1} parent=5 // pred_check
        _
      $region10: #{inception_forward.1} parent=5 // pred_check_branch
        %405 = sbr.rel (%p402) target = $region12
      $region11: #{inception_forward.1} parent=5 // pred_region
        %s406 = ssub.s32 %s25, 1
        // Predicated region
        $region13: #{inception_forward.1} parent=11 // pred_check
          %p407 = pneg %p72
        $region14: #{inception_forward.1} parent=11 // pred_check_branch
          %409 = sbr.rel (%p407) target = $region16
        $region15: #{inception_forward.1} parent=11 // pred_region
          _
        $region16: #{inception_forward.1} parent=11 // pred_fallthru
          _
        // Predicated region
        $region17: #{inception_forward.1} parent=11 // pred_check
          %p410 = pneg %p93
        $region18: #{inception_forward.1} parent=11 // pred_check_branch
          %412 = sbr.rel (%p410) target = $region20
        $region19: #{inception_forward.1} parent=11 // pred_region
          _
        $region20: #{inception_forward.1} parent=11 // pred_fallthru
          _
        // Predicated region
        $region21: #{inception_forward.1} parent=11 // pred_check
          %p413 = pneg %p114
        $region22: #{inception_forward.1} parent=11 // pred_check_branch
          %415 = sbr.rel (%p413) target = $region24
        $region23: #{inception_forward.1} parent=11 // pred_region
          _
        $region24: #{inception_forward.1} parent=11 // pred_fallthru
          _
        // Predicated region
        $region25: #{inception_forward.1} parent=11 // pred_check
          %p416 = pneg %p135
        $region26: #{inception_forward.1} parent=11 // pred_check_branch
          %418 = sbr.rel (%p416) target = $region28
        $region27: #{inception_forward.1} parent=11 // pred_region
          _
        $region28: #{inception_forward.1} parent=11 // pred_fallthru
          _
        // Predicated region
        $region29: #{inception_forward.1} parent=11 // pred_check
          %p419 = pneg %p156
        $region30: #{inception_forward.1} parent=11 // pred_check_branch
          %421 = sbr.rel (%p419) target = $region32
        $region31: #{inception_forward.1} parent=11 // pred_region
          _
        $region32: #{inception_forward.1} parent=11 // pred_fallthru
          _
        // Predicated region
        $region33: #{inception_forward.1} parent=11 // pred_check
          %p422 = pneg %p177
        $region34: #{inception_forward.1} parent=11 // pred_check_branch
          %424 = sbr.rel (%p422) target = $region36
        $region35: #{inception_forward.1} parent=11 // pred_region
          _
        $region36: #{inception_forward.1} parent=11 // pred_fallthru
          _
        // Predicated region
        $region37: #{inception_forward.1} parent=11 // pred_check
          %p425 = pneg %p198
        $region38: #{inception_forward.1} parent=11 // pred_check_branch
          %427 = sbr.rel (%p425) target = $region40
        $region39: #{inception_forward.1} parent=11 // pred_region
          _
        $region40: #{inception_forward.1} parent=11 // pred_fallthru
          _
        // Predicated region
        $region41: #{inception_forward.1} parent=11 // pred_check
          %p428 = pneg %p219
        $region42: #{inception_forward.1} parent=11 // pred_check_branch
          %430 = sbr.rel (%p428) target = $region44
        $region43: #{inception_forward.1} parent=11 // pred_region
          _
        $region44: #{inception_forward.1} parent=11 // pred_fallthru
          _
        // Predicated region
        $region45: #{inception_forward.1} parent=11 // pred_check
          %p431 = pneg %p240
        $region46: #{inception_forward.1} parent=11 // pred_check_branch
          %433 = sbr.rel (%p431) target = $region48
        $region47: #{inception_forward.1} parent=11 // pred_region
          _
        $region48: #{inception_forward.1} parent=11 // pred_fallthru
          _
        // Predicated region
        $region49: #{inception_forward.1} parent=11 // pred_check
          %p434 = pneg %p261
        $region50: #{inception_forward.1} parent=11 // pred_check_branch
          %436 = sbr.rel (%p434) target = $region52
        $region51: #{inception_forward.1} parent=11 // pred_region
          _
        $region52: #{inception_forward.1} parent=11 // pred_fallthru
          _
        // Predicated region
        $region53: #{inception_forward.1} parent=11 // pred_check
          %p437 = pneg %p282
        $region54: #{inception_forward.1} parent=11 // pred_check_branch
          %439 = sbr.rel (%p437) target = $region56
        $region55: #{inception_forward.1} parent=11 // pred_region
          _
        $region56: #{inception_forward.1} parent=11 // pred_fallthru
          _
        // Predicated region
        $region57: #{inception_forward.1} parent=11 // pred_check
          %p440 = pneg %p303
        $region58: #{inception_forward.1} parent=11 // pred_check_branch
          %442 = sbr.rel (%p440) target = $region60
        $region59: #{inception_forward.1} parent=11 // pred_region
          _
        $region60: #{inception_forward.1} parent=11 // pred_fallthru
          _
        // Predicated region
        $region61: #{inception_forward.1} parent=11 // pred_check
          %p443 = pneg %p324
        $region62: #{inception_forward.1} parent=11 // pred_check_branch
          %445 = sbr.rel (%p443) target = $region64
        $region63: #{inception_forward.1} parent=11 // pred_region
          _
        $region64: #{inception_forward.1} parent=11 // pred_fallthru
          _
        // Predicated region
        $region65: #{inception_forward.1} parent=11 // pred_check
          %p446 = pneg %p345
        $region66: #{inception_forward.1} parent=11 // pred_check_branch
          %448 = sbr.rel (%p446) target = $region68
        $region67: #{inception_forward.1} parent=11 // pred_region
          _
        $region68: #{inception_forward.1} parent=11 // pred_fallthru
          _
        // Predicated region
        $region69: #{inception_forward.1} parent=11 // pred_check
          %p449 = pneg %p366
        $region70: #{inception_forward.1} parent=11 // pred_check_branch
          %451 = sbr.rel (%p449) target = $region72
        $region71: #{inception_forward.1} parent=11 // pred_region
          _
        $region72: #{inception_forward.1} parent=11 // pred_fallthru
          _
      $region12: #{inception_forward.1} parent=5 // pred_fallthru
        _
      %p452 = scmp.lt.s32.totalorder %s25, 2
      // Predicated region
      $region73: #{inception_forward.1} parent=5 // pred_check
        %p453 = pneg %p452
      $region74: #{inception_forward.1} parent=5 // pred_check_branch
        %455 = sbr.rel (%p453) target = $region76
      $region75: #{inception_forward.1} parent=5 // pred_region
        // Predicated region
        $region77: #{inception_forward.1} parent=75 // pred_check
          %p456 = pneg %p45
        $region78: #{inception_forward.1} parent=75 // pred_check_branch
          %458 = sbr.rel (%p456) target = $region80
        $region79: #{inception_forward.1} parent=75 // pred_region
          %p459 = scmp.lt.s32.totalorder %s25, 1
          %s460 = scalar_select %p459, %s25, 1
          %s461 = smul.addr %s460, 32
          %s462 = smul.addr %s461, 8
          %s463 = scalar_lea.vmem %s0, %s462
        $region80: #{inception_forward.1} parent=75 // pred_fallthru
          _
      $region76: #{inception_forward.1} parent=5 // pred_fallthru
        _
      %p464 = scmp.le.s32.totalorder 1, %s25
      %p465 = scmp.lt.s32.totalorder %s25, 3
      %p466 = pnand %p464, %p465
      %p467 = pneg %p466
      // Predicated region
      $region81: #{inception_forward.1} parent=5 // pred_check
        _
      $region82: #{inception_forward.1} parent=5 // pred_check_branch
        %469 = sbr.rel (%p466) target = $region84
      $region83: #{inception_forward.1} parent=5 // pred_region
        %s470 = ssub.s32 %s25, 1
        %p471 = scmp.lt.s32.totalorder %s30, 1
        %s472 = scalar_select %p471, %s30, 1
        %s473 = smul.addr %s472, 32
        %s474 = smul.addr %s473, 8
        %s475 = scalar_lea.vmem %s0, %s474
        %p476 = pneg %p51
        %p477 = pneg %p48
        %p478 = pneg %p72
        %p479 = pneg %p69
        %p480 = pneg %p93
        %p481 = pneg %p90
        %p482 = pneg %p114
        %p483 = pneg %p111
        %p484 = pneg %p135
        %p485 = pneg %p132
        %p486 = pneg %p156
        %p487 = pneg %p153
        %p488 = pneg %p177
        %p489 = pneg %p174
        %p490 = pneg %p198
        %p491 = pneg %p195
        %p492 = pneg %p219
        %p493 = pneg %p216
        %p494 = pneg %p240
        %p495 = pneg %p237
        %p496 = pneg %p261
        %p497 = pneg %p258
        %p498 = pneg %p282
        %p499 = pneg %p279
        %p500 = pneg %p303
        %p501 = pneg %p300
        %p502 = pneg %p324
        %p503 = pneg %p321
        %p504 = pneg %p345
        %p505 = pneg %p342
        %p506 = pneg %p366
        %p507 = pneg %p363
        %p508 = pneg %p392
        %p509 = pneg %p389
        %s510 = sand.u32 %s379, 1
        %s511 = scalar_lea.sflag [#allocation7], %s510
        %s512 = sand.u32 %s379, 1
        %s513 = smul.addr %s512, 256
        %s514 = scalar_lea.vmem [#allocation6], %s513
        %p515 = scmp.lt.s32.totalorder %s30, 1
        %s516 = scalar_select %p515, %s30, 1
        %s517 = smul.addr %s516, 32
        %s518 = smul.addr %s517, 8
        %s519 = scalar_lea.vmem %s0, %s518
        %v521 = vld [vmem:[%s519] sm:$0xff]
        %v522 = vld [vmem:[%s519 + $0x8] sm:$0xff]
        %v523 = vld [vmem:[%s519 + $0x10] sm:$0xff]
        %v524 = vld [vmem:[%s519 + $0x18] sm:$0xff]
        %v525 = vld [vmem:[%s519 + $0x20] sm:$0xff]
        %v526 = vld [vmem:[%s519 + $0x28] sm:$0xff]
        %v527 = vld [vmem:[%s519 + $0x30] sm:$0xff]
        %v528 = vld [vmem:[%s519 + $0x38] sm:$0xff]
        %v529 = vld [vmem:[%s519 + $0x40] sm:$0xff]
        %v530 = vld [vmem:[%s519 + $0x48] sm:$0xff]
        %v531 = vld [vmem:[%s519 + $0x50] sm:$0xff]
        %v532 = vld [vmem:[%s519 + $0x58] sm:$0xff]
        %v533 = vld [vmem:[%s519 + $0x60] sm:$0xff]
        %v534 = vld [vmem:[%s519 + $0x68] sm:$0xff]
        %v535 = vld [vmem:[%s519 + $0x70] sm:$0xff]
        %v536 = vld [vmem:[%s519 + $0x78] sm:$0xff]
        %v537 = vld [vmem:[%s519 + $0x80] sm:$0xff]
        %v538 = vld [vmem:[%s519 + $0x88] sm:$0xff]
        %v539 = vld [vmem:[%s519 + $0x90] sm:$0xff]
        %v540 = vld [vmem:[%s519 + $0x98] sm:$0xff]
        %v541 = vld [vmem:[%s519 + $0xa0] sm:$0xff]
        %v542 = vld [vmem:[%s519 + $0xa8] sm:$0xff]
        %v543 = vld [vmem:[%s519 + $0xb0] sm:$0xff]
        %v544 = vld [vmem:[%s519 + $0xb8] sm:$0xff]
        %v545 = vld [vmem:[%s519 + $0xc0] sm:$0xff]
        %v546 = vld [vmem:[%s519 + $0xc8] sm:$0xff]
        %v547 = vld [vmem:[%s519 + $0xd0] sm:$0xff]
        %v548 = vld [vmem:[%s519 + $0xd8] sm:$0xff]
        %v549 = vld [vmem:[%s519 + $0xe0] sm:$0xff]
        %v550 = vld [vmem:[%s519 + $0xe8] sm:$0xff]
        %v551 = vld [vmem:[%s519 + $0xf0] sm:$0xff]
        %v552 = vld [vmem:[%s519 + $0xf8] sm:$0xff]
        %v553 = vpack.c.bf16 %v522, %v521
        %v554 = vpack.c.bf16 %v524, %v523
        %v555 = vpack.c.bf16 %v526, %v525
        %v556 = vpack.c.bf16 %v528, %v527
        %v557 = vpack.c.bf16 %v530, %v529
        %v558 = vpack.c.bf16 %v532, %v531
        %v559 = vpack.c.bf16 %v534, %v533
        %v560 = vpack.c.bf16 %v536, %v535
        %v561 = vpack.c.bf16 %v538, %v537
        %v562 = vpack.c.bf16 %v540, %v539
        %v563 = vpack.c.bf16 %v542, %v541
        %v564 = vpack.c.bf16 %v544, %v543
        %v565 = vpack.c.bf16 %v546, %v545
        %v566 = vpack.c.bf16 %v548, %v547
        %v567 = vpack.c.bf16 %v550, %v549
        %v568 = vpack.c.bf16 %v552, %v551
        %v569 = vld [vmem:[%s1] sm:$0xf]
        %vm570 = vcmask 64512
        %v572 = vsel %vm570, %v553, 0
        %v575 = vsel %vm570, %v554, 0
        %v578 = vsel %vm570, %v555, 0
        %v581 = vsel %vm570, %v556, 0
        %v584 = vsel %vm570, %v557, 0
        %v587 = vsel %vm570, %v558, 0
        %v590 = vsel %vm570, %v559, 0
        %v593 = vsel %vm570, %v560, 0
        %v596 = vsel %vm570, %v561, 0
        %v599 = vsel %vm570, %v562, 0
        %v602 = vsel %vm570, %v563, 0
        %v605 = vsel %vm570, %v564, 0
        %v608 = vsel %vm570, %v565, 0
        %v611 = vsel %vm570, %v566, 0
        %v614 = vsel %vm570, %v567, 0
        %v617 = vsel %vm570, %v568, 0
        %vm619 = vcmask 1043456
        %v621 = vsel %vm619, %v569, 0
        %623 = vmatprep.subr.bf16.mxu0 0
        %624 = vmatpush1.bf16.msra.mxu0 %v621
        %625 = vmatprep.subr.bf16.mxu0 0
        %626 = vmatpush1.bf16.msra.mxu0 0
        %627 = vmatprep.subr.bf16.mxu0 0
        %628 = vmatpush1.bf16.msra.mxu0 0
        %629 = vmatprep.subr.bf16.mxu0 0
        %630 = vmatpush1.bf16.msra.mxu0 0
        %631 = vmatprep.subr.bf16.mxu0 0
        %632 = vmatpush1.bf16.msra.mxu0 0
        %633 = vmatprep.subr.bf16.mxu0 0
        %634 = vmatpush1.bf16.msra.mxu0 0
        %635 = vmatprep.subr.bf16.mxu0 0
        %636 = vmatpush1.bf16.msra.mxu0 0
        %637 = vmatprep.subr.bf16.mxu0 0
        %638 = vmatpush1.bf16.msra.mxu0 0
        %639 = vmatprep.subr.bf16.mxu0 0
        %640 = vmatpush1.bf16.msra.mxu0 0
        %641 = vmatprep.subr.bf16.mxu0 0
        %642 = vmatpush1.bf16.msra.mxu0 0
        %643 = vmatprep.subr.bf16.mxu0 0
        %644 = vmatpush1.bf16.msra.mxu0 0
        %645 = vmatprep.subr.bf16.mxu0 0
        %646 = vmatpush1.bf16.msra.mxu0 0
        %647 = vmatprep.subr.bf16.mxu0 0
        %648 = vmatpush1.bf16.msra.mxu0 0
        %649 = vmatprep.subr.bf16.mxu0 0
        %650 = vmatpush1.bf16.msra.mxu0 0
        %651 = vmatprep.subr.bf16.mxu0 0
        %652 = vmatpush1.bf16.msra.mxu0 0
        %653 = vmatprep.subr.bf16.mxu0 0
        %654 = vmatpush1.bf16.msra.mxu0 0
        %655 = vmatprep.mubr.bf16.mxu0 0
        %656 = vmatmul.mubr.bf16.gmra.mrb[0].mxu0 %v572
        %v657 = vpop.f32.mrb[0].mxu0
        %v658 = vadd.f32 0.0, %v657
        %v659 = vpop.f32.mrb[0].mxu0
        %v660 = vpop.f32.mrb[0].mxu0
        %v661 = vadd.f32 0.0, %v660
        %v662 = vpop.f32.mrb[0].mxu0
        %663 = vmatprep.mubr.bf16.mxu0 0
        %664 = vmatmul.mubr.bf16.gmra.mrb[0].mxu0 %v575
        %v665 = vpop.f32.mrb[0].mxu0
        %v666 = vadd.f32 0.0, %v665
        %v667 = vpop.f32.mrb[0].mxu0
        %v668 = vpop.f32.mrb[0].mxu0
        %v669 = vadd.f32 0.0, %v668
        %v670 = vpop.f32.mrb[0].mxu0
        %671 = vmatprep.mubr.bf16.mxu0 0
        %672 = vmatmul.mubr.bf16.gmra.mrb[0].mxu0 %v578
        %v673 = vpop.f32.mrb[0].mxu0
        %v674 = vadd.f32 0.0, %v673
        %v675 = vpop.f32.mrb[0].mxu0
        %v676 = vpop.f32.mrb[0].mxu0
        %v677 = vadd.f32 0.0, %v676
        %v678 = vpop.f32.mrb[0].mxu0
        %679 = vmatprep.mubr.bf16.mxu0 0
        %680 = vmatmul.mubr.bf16.gmra.mrb[0].mxu0 %v581
        %v681 = vpop.f32.mrb[0].mxu0
        %v682 = vadd.f32 0.0, %v681
        %v683 = vpop.f32.mrb[0].mxu0
        %v684 = vpop.f32.mrb[0].mxu0
        %v685 = vadd.f32 0.0, %v684
        %v686 = vpop.f32.mrb[0].mxu0
        %687 = vmatprep.mubr.bf16.mxu0 0
        %688 = vmatmul.mubr.bf16.gmra.mrb[0].mxu0 %v584
        %v689 = vpop.f32.mrb[0].mxu0
        %v690 = vadd.f32 0.0, %v689
        %v691 = vpop.f32.mrb[0].mxu0
        %v692 = vpop.f32.mrb[0].mxu0
        %v693 = vadd.f32 0.0, %v692
        %v694 = vpop.f32.mrb[0].mxu0
        %695 = vmatprep.mubr.bf16.mxu0 0
        %696 = vmatmul.mubr.bf16.gmra.mrb[0].mxu0 %v587
        %v697 = vpop.f32.mrb[0].mxu0
        %v698 = vadd.f32 0.0, %v697
        %v699 = vpop.f32.mrb[0].mxu0
        %v700 = vpop.f32.mrb[0].mxu0
        %v701 = vadd.f32 0.0, %v700
        %v702 = vpop.f32.mrb[0].mxu0
        %703 = vmatprep.mubr.bf16.mxu0 0
        %704 = vmatmul.mubr.bf16.gmra.mrb[0].mxu0 %v590
        %v705 = vpop.f32.mrb[0].mxu0
        %v706 = vadd.f32 0.0, %v705
        %v707 = vpop.f32.mrb[0].mxu0
        %v708 = vpop.f32.mrb[0].mxu0
        %v709 = vadd.f32 0.0, %v708
        %v710 = vpop.f32.mrb[0].mxu0
        %711 = vmatprep.mubr.bf16.mxu0 0
        %712 = vmatmul.mubr.bf16.gmra.mrb[0].mxu0 %v593
        %v713 = vpop.f32.mrb[0].mxu0
        %v714 = vadd.f32 0.0, %v713
        %v715 = vpop.f32.mrb[0].mxu0
        %v716 = vpop.f32.mrb[0].mxu0
        %v717 = vadd.f32 0.0, %v716
        %v718 = vpop.f32.mrb[0].mxu0
        %719 = vmatprep.mubr.bf16.mxu0 0
        %720 = vmatmul.mubr.bf16.gmra.mrb[0].mxu0 %v596
        %v721 = vpop.f32.mrb[0].mxu0
        %v722 = vadd.f32 0.0, %v721
        %v723 = vpop.f32.mrb[0].mxu0
        %v724 = vpop.f32.mrb[0].mxu0
        %v725 = vadd.f32 0.0, %v724
        %v726 = vpop.f32.mrb[0].mxu0
        %727 = vmatprep.mubr.bf16.mxu0 0
        %728 = vmatmul.mubr.bf16.gmra.mrb[0].mxu0 %v599
        %v729 = vpop.f32.mrb[0].mxu0
        %v730 = vadd.f32 0.0, %v729
        %v731 = vpop.f32.mrb[0].mxu0
        %v732 = vpop.f32.mrb[0].mxu0
        %v733 = vadd.f32 0.0, %v732
        %v734 = vpop.f32.mrb[0].mxu0
        %735 = vmatprep.mubr.bf16.mxu0 0
        %736 = vmatmul.mubr.bf16.gmra.mrb[0].mxu0 %v602
        %v737 = vpop.f32.mrb[0].mxu0
        %v738 = vadd.f32 0.0, %v737
        %v739 = vpop.f32.mrb[0].mxu0
        %v740 = vpop.f32.mrb[0].mxu0
        %v741 = vadd.f32 0.0, %v740
        %v742 = vpop.f32.mrb[0].mxu0
        %743 = vmatprep.mubr.bf16.mxu0 0
        %744 = vmatmul.mubr.bf16.gmra.mrb[0].mxu0 %v605
        %v745 = vpop.f32.mrb[0].mxu0
        %v746 = vadd.f32 0.0, %v745
        %v747 = vpop.f32.mrb[0].mxu0
        %v748 = vpop.f32.mrb[0].mxu0
        %v749 = vadd.f32 0.0, %v748
        %v750 = vpop.f32.mrb[0].mxu0
        %751 = vmatprep.mubr.bf16.mxu0 0
        %752 = vmatmul.mubr.bf16.gmra.mrb[0].mxu0 %v608
        %v753 = vpop.f32.mrb[0].mxu0
        %v754 = vadd.f32 0.0, %v753
        %v755 = vpop.f32.mrb[0].mxu0
        %v756 = vpop.f32.mrb[0].mxu0
        %v757 = vadd.f32 0.0, %v756
        %v758 = vpop.f32.mrb[0].mxu0
        %759 = vmatprep.mubr.bf16.mxu0 0
        %760 = vmatmul.mubr.bf16.gmra.mrb[0].mxu0 %v611
        %v761 = vpop.f32.mrb[0].mxu0
        %v762 = vadd.f32 0.0, %v761
        %v763 = vpop.f32.mrb[0].mxu0
        %v764 = vpop.f32.mrb[0].mxu0
        %v765 = vadd.f32 0.0, %v764
        %v766 = vpop.f32.mrb[0].mxu0
        %767 = vmatprep.mubr.bf16.mxu0 0
        %768 = vmatmul.mubr.bf16.gmra.mrb[0].mxu0 %v614
        %v769 = vpop.f32.mrb[0].mxu0
        %v770 = vadd.f32 0.0, %v769
        %v771 = vpop.f32.mrb[0].mxu0
        %v772 = vpop.f32.mrb[0].mxu0
        %v773 = vadd.f32 0.0, %v772
        %v774 = vpop.f32.mrb[0].mxu0
        %775 = vmatprep.mubr.bf16.mxu0 0
        %776 = vmatmul.mubr.bf16.gmra.mrb[0].mxu0 %v617
        %v777 = vpop.f32.mrb[0].mxu0
        %v778 = vadd.f32 0.0, %v777
        %v779 = vpop.f32.mrb[0].mxu0
        %v780 = vpop.f32.mrb[0].mxu0
        %v781 = vadd.f32 0.0, %v780
        %v782 = vpop.f32.mrb[0].mxu0
        %783 = vdwg.mxu0
        %v784 = vld [vmem:[%s2] sm:$0x1]
        %v786 = vlaneseq
        %v787 = vshrl.u32 %v786, 7
        %v788 = vsub.s32 0, %v787
        %v789 = vrot.slane %v784, %v788
        %v791 = vmul.f32 %v658, %v789
        %v792 = vmul.f32 %v661, %v789
        %v793 = vmul.f32 %v666, %v789
        %v794 = vmul.f32 %v669, %v789
        %v795 = vmul.f32 %v674, %v789
        %v796 = vmul.f32 %v677, %v789
        %v797 = vmul.f32 %v682, %v789
        %v798 = vmul.f32 %v685, %v789
        %v799 = vmul.f32 %v690, %v789
        %v800 = vmul.f32 %v693, %v789
        %v801 = vmul.f32 %v698, %v789
        %v802 = vmul.f32 %v701, %v789
        %v803 = vmul.f32 %v706, %v789
        %v804 = vmul.f32 %v709, %v789
        %v805 = vmul.f32 %v714, %v789
        %v806 = vmul.f32 %v717, %v789
        %v807 = vmul.f32 %v722, %v789
        %v808 = vmul.f32 %v725, %v789
        %v809 = vmul.f32 %v730, %v789
        %v810 = vmul.f32 %v733, %v789
        %v811 = vmul.f32 %v738, %v789
        %v812 = vmul.f32 %v741, %v789
        %v813 = vmul.f32 %v746, %v789
        %v814 = vmul.f32 %v749, %v789
        %v815 = vmul.f32 %v754, %v789
        %v816 = vmul.f32 %v757, %v789
        %v817 = vmul.f32 %v762, %v789
        %v818 = vmul.f32 %v765, %v789
        %v819 = vmul.f32 %v770, %v789
        %v820 = vmul.f32 %v773, %v789
        %v821 = vmul.f32 %v778, %v789
        %v822 = vmul.f32 %v781, %v789
        %v823 = vld [vmem:[%s3] sm:$0x1]
        %v825 = vlaneseq
        %v826 = vshrl.u32 %v825, 7
        %v827 = vsub.s32 0, %v826
        %v828 = vrot.slane %v823, %v827
        %v830 = vadd.f32 %v791, %v828
        %v831 = vadd.f32 %v792, %v828
        %v832 = vadd.f32 %v793, %v828
        %v833 = vadd.f32 %v794, %v828
        %v834 = vadd.f32 %v795, %v828
        %v835 = vadd.f32 %v796, %v828
        %v836 = vadd.f32 %v797, %v828
        %v837 = vadd.f32 %v798, %v828
        %v838 = vadd.f32 %v799, %v828
        %v839 = vadd.f32 %v800, %v828
        %v840 = vadd.f32 %v801, %v828
        %v841 = vadd.f32 %v802, %v828
        %v842 = vadd.f32 %v803, %v828
        %v843 = vadd.f32 %v804, %v828
        %v844 = vadd.f32 %v805, %v828
        %v845 = vadd.f32 %v806, %v828
        %v846 = vadd.f32 %v807, %v828
        %v847 = vadd.f32 %v808, %v828
        %v848 = vadd.f32 %v809, %v828
        %v849 = vadd.f32 %v810, %v828
        %v850 = vadd.f32 %v811, %v828
        %v851 = vadd.f32 %v812, %v828
        %v852 = vadd.f32 %v813, %v828
        %v853 = vadd.f32 %v814, %v828
        %v854 = vadd.f32 %v815, %v828
        %v855 = vadd.f32 %v816, %v828
        %v856 = vadd.f32 %v817, %v828
        %v857 = vadd.f32 %v818, %v828
        %v858 = vadd.f32 %v819, %v828
        %v859 = vadd.f32 %v820, %v828
        %v860 = vadd.f32 %v821, %v828
        %v861 = vadd.f32 %v822, %v828
        %v862 = vmax.f32 %v830, 0.0
        %v863 = vmax.f32 %v831, 0.0
        %v864 = vmax.f32 %v832, 0.0
        %v865 = vmax.f32 %v833, 0.0
        %v866 = vmax.f32 %v834, 0.0
        %v867 = vmax.f32 %v835, 0.0
        %v868 = vmax.f32 %v836, 0.0
        %v869 = vmax.f32 %v837, 0.0
        %v870 = vmax.f32 %v838, 0.0
        %v871 = vmax.f32 %v839, 0.0
        %v872 = vmax.f32 %v840, 0.0
        %v873 = vmax.f32 %v841, 0.0
        %v874 = vmax.f32 %v842, 0.0
        %v875 = vmax.f32 %v843, 0.0
        %v876 = vmax.f32 %v844, 0.0
        %v877 = vmax.f32 %v845, 0.0
        %v878 = vmax.f32 %v846, 0.0
        %v879 = vmax.f32 %v847, 0.0
        %v880 = vmax.f32 %v848, 0.0
        %v881 = vmax.f32 %v849, 0.0
        %v882 = vmax.f32 %v850, 0.0
        %v883 = vmax.f32 %v851, 0.0
        %v884 = vmax.f32 %v852, 0.0
        %v885 = vmax.f32 %v853, 0.0
        %v886 = vmax.f32 %v854, 0.0
        %v887 = vmax.f32 %v855, 0.0
        %v888 = vmax.f32 %v856, 0.0
        %v889 = vmax.f32 %v857, 0.0
        %v890 = vmax.f32 %v858, 0.0
        %v891 = vmax.f32 %v859, 0.0
        %v892 = vmax.f32 %v860, 0.0
        %v893 = vmax.f32 %v861, 0.0
        %894 = vst.msk [vmem:[#allocation2] sm:$0xff] %vm570, 0.0
        %895 = vst.msk [vmem:[#allocation2 + $0x8] sm:$0xff] %vm570, 0.0
        %vm896 = vcmask 58368
        %897 = vst.msk [vmem:[#allocation2 + $0x10] sm:$0x3] %vm896, 0.0
        %s898 = scalar_lea.vmem [#allocation2], 408
        %899 = vst.msk [vmem:[%s898] sm:$0xff] %vm570, 0.0
        %900 = vst.msk [vmem:[%s898 + $0x8] sm:$0xff] %vm570, 0.0
        %901 = vst.msk [vmem:[%s898 + $0x10] sm:$0x3] %vm896, 0.0
        %s902 = scalar_lea.vmem [#allocation2], 24
        %vm903 = vcmask 57344
        %904 = vst.msk [vmem:[%s902] sm:$0x1] %vm903, 0.0
        %905 = vst.msk [vmem:[%s902 + $0x18] sm:$0x1] %vm903, 0.0
        %906 = vst.msk [vmem:[%s902 + $0x30] sm:$0x1] %vm903, 0.0
        %907 = vst.msk [vmem:[%s902 + $0x48] sm:$0x1] %vm903, 0.0
        %908 = vst.msk [vmem:[%s902 + $0x60] sm:$0x1] %vm903, 0.0
        %909 = vst.msk [vmem:[%s902 + $0x78] sm:$0x1] %vm903, 0.0
        %910 = vst.msk [vmem:[%s902 + $0x90] sm:$0x1] %vm903, 0.0
        %911 = vst.msk [vmem:[%s902 + $0xa8] sm:$0x1] %vm903, 0.0
        %912 = vst.msk [vmem:[%s902 + $0xc0] sm:$0x1] %vm903, 0.0
        %913 = vst.msk [vmem:[%s902 + $0xd8] sm:$0x1] %vm903, 0.0
        %914 = vst.msk [vmem:[%s902 + $0xf0] sm:$0x1] %vm903, 0.0
        %915 = vst.msk [vmem:[%s902 + $0x108] sm:$0x1] %vm903, 0.0
        %916 = vst.msk [vmem:[%s902 + $0x120] sm:$0x1] %vm903, 0.0
        %917 = vst.msk [vmem:[%s902 + $0x138] sm:$0x1] %vm903, 0.0
        %918 = vst.msk [vmem:[%s902 + $0x150] sm:$0x1] %vm903, 0.0
        %919 = vst.msk [vmem:[%s902 + $0x168] sm:$0x1] %vm903, 0.0
        %920 = vst.msk [vmem:[%s902 + $0x11] sm:$0x1] %vm903, 0.0
        %921 = vst.msk [vmem:[%s902 + $0x29] sm:$0x1] %vm903, 0.0
        %922 = vst.msk [vmem:[%s902 + $0x41] sm:$0x1] %vm903, 0.0
        %923 = vst.msk [vmem:[%s902 + $0x59] sm:$0x1] %vm903, 0.0
        %924 = vst.msk [vmem:[%s902 + $0x71] sm:$0x1] %vm903, 0.0
        %925 = vst.msk [vmem:[%s902 + $0x89] sm:$0x1] %vm903, 0.0
        %926 = vst.msk [vmem:[%s902 + $0xa1] sm:$0x1] %vm903, 0.0
        %927 = vst.msk [vmem:[%s902 + $0xb9] sm:$0x1] %vm903, 0.0
        %928 = vst.msk [vmem:[%s902 + $0xd1] sm:$0x1] %vm903, 0.0
        %929 = vst.msk [vmem:[%s902 + $0xe9] sm:$0x1] %vm903, 0.0
        %930 = vst.msk [vmem:[%s902 + $0x101] sm:$0x1] %vm903, 0.0
        %931 = vst.msk [vmem:[%s902 + $0x119] sm:$0x1] %vm903, 0.0
        %932 = vst.msk [vmem:[%s902 + $0x131] sm:$0x1] %vm903, 0.0
        %933 = vst.msk [vmem:[%s902 + $0x149] sm:$0x1] %vm903, 0.0
        %934 = vst.msk [vmem:[%s902 + $0x161] sm:$0x1] %vm903, 0.0
        %935 = vst.msk [vmem:[%s902 + $0x179] sm:$0x1] %vm903, 0.0
        %968 = vrot.lane.b32.xlu0 %v862, 112
        %v969 = vpop.permute.xlu0 %968
        %970 = vrot.lane.b32.xlu0 %v863, 112
        %v971 = vpop.permute.xlu0 %970
        %972 = vrot.lane.b32.xlu0 %v864, 112
        %v973 = vpop.permute.xlu0 %972
        %974 = vrot.lane.b32.xlu0 %v865, 112
        %v975 = vpop.permute.xlu0 %974
        %976 = vrot.lane.b32.xlu0 %v866, 112
        %v977 = vpop.permute.xlu0 %976
        %978 = vrot.lane.b32.xlu0 %v867, 112
        %v979 = vpop.permute.xlu0 %978
        %980 = vrot.lane.b32.xlu0 %v868, 112
        %v981 = vpop.permute.xlu0 %980
        %982 = vrot.lane.b32.xlu0 %v869, 112
        %v983 = vpop.permute.xlu0 %982
        %984 = vrot.lane.b32.xlu0 %v870, 112
        %v985 = vpop.permute.xlu0 %984
        %986 = vrot.lane.b32.xlu0 %v871, 112
        %v987 = vpop.permute.xlu0 %986
        %988 = vrot.lane.b32.xlu0 %v872, 112
        %v989 = vpop.permute.xlu0 %988
        %990 = vrot.lane.b32.xlu0 %v873, 112
        %v991 = vpop.permute.xlu0 %990
        %992 = vrot.lane.b32.xlu0 %v874, 112
        %v993 = vpop.permute.xlu0 %992
        %994 = vrot.lane.b32.xlu0 %v875, 112
        %v995 = vpop.permute.xlu0 %994
        %996 = vrot.lane.b32.xlu0 %v876, 112
        %v997 = vpop.permute.xlu0 %996
        %998 = vrot.lane.b32.xlu0 %v877, 112
        %v999 = vpop.permute.xlu0 %998
        %1000 = vrot.lane.b32.xlu0 %v878, 112
        %v1001 = vpop.permute.xlu0 %1000
        %1002 = vrot.lane.b32.xlu0 %v879, 112
        %v1003 = vpop.permute.xlu0 %1002
        %1004 = vrot.lane.b32.xlu0 %v880, 112
        %v1005 = vpop.permute.xlu0 %1004
        %1006 = vrot.lane.b32.xlu0 %v881, 112
        %v1007 = vpop.permute.xlu0 %1006
        %1008 = vrot.lane.b32.xlu0 %v882, 112
        %v1009 = vpop.permute.xlu0 %1008
        %1010 = vrot.lane.b32.xlu0 %v883, 112
        %v1011 = vpop.permute.xlu0 %1010
        %1012 = vrot.lane.b32.xlu0 %v884, 112
        %v1013 = vpop.permute.xlu0 %1012
        %1014 = vrot.lane.b32.xlu0 %v885, 112
        %v1015 = vpop.permute.xlu0 %1014
        %1016 = vrot.lane.b32.xlu0 %v886, 112
        %v1017 = vpop.permute.xlu0 %1016
        %1018 = vrot.lane.b32.xlu0 %v887, 112
        %v1019 = vpop.permute.xlu0 %1018
        %1020 = vrot.lane.b32.xlu0 %v888, 112
        %v1021 = vpop.permute.xlu0 %1020
        %1022 = vrot.lane.b32.xlu0 %v889, 112
        %v1023 = vpop.permute.xlu0 %1022
        %1024 = vrot.lane.b32.xlu0 %v890, 112
        %v1025 = vpop.permute.xlu0 %1024
        %1026 = vrot.lane.b32.xlu0 %v891, 112
        %v1027 = vpop.permute.xlu0 %1026
        %1028 = vrot.lane.b32.xlu0 %v892, 112
        %v1029 = vpop.permute.xlu0 %1028
        %1030 = vrot.lane.b32.xlu0 %v893, 112
        %v1031 = vpop.permute.xlu0 %1030
        %1064 = vst.msk [vmem:[%s902 + $0x1] sm:$0xff] %vm570, %v969
        %1065 = vst.msk [vmem:[%s902 + $0x9] sm:$0xff] %vm570, %v971
        %1066 = vst.msk [vmem:[%s902 + $0x19] sm:$0xff] %vm570, %v973
        %1067 = vst.msk [vmem:[%s902 + $0x21] sm:$0xff] %vm570, %v975
        %1068 = vst.msk [vmem:[%s902 + $0x31] sm:$0xff] %vm570, %v977
        %1069 = vst.msk [vmem:[%s902 + $0x39] sm:$0xff] %vm570, %v979
        %1070 = vst.msk [vmem:[%s902 + $0x49] sm:$0xff] %vm570, %v981
        %1071 = vst.msk [vmem:[%s902 + $0x51] sm:$0xff] %vm570, %v983
        %1072 = vst.msk [vmem:[%s902 + $0x61] sm:$0xff] %vm570, %v985
        %1073 = vst.msk [vmem:[%s902 + $0x69] sm:$0xff] %vm570, %v987
        %1074 = vst.msk [vmem:[%s902 + $0x79] sm:$0xff] %vm570, %v989
        %1075 = vst.msk [vmem:[%s902 + $0x81] sm:$0xff] %vm570, %v991
        %1076 = vst.msk [vmem:[%s902 + $0x91] sm:$0xff] %vm570, %v993
        %1077 = vst.msk [vmem:[%s902 + $0x99] sm:$0xff] %vm570, %v995
        %1078 = vst.msk [vmem:[%s902 + $0xa9] sm:$0xff] %vm570, %v997
        %1079 = vst.msk [vmem:[%s902 + $0xb1] sm:$0xff] %vm570, %v999
        %1080 = vst.msk [vmem:[%s902 + $0xc1] sm:$0xff] %vm570, %v1001
        %1081 = vst.msk [vmem:[%s902 + $0xc9] sm:$0xff] %vm570, %v1003
        %1082 = vst.msk [vmem:[%s902 + $0xd9] sm:$0xff] %vm570, %v1005
        %1083 = vst.msk [vmem:[%s902 + $0xe1] sm:$0xff] %vm570, %v1007
        %1084 = vst.msk [vmem:[%s902 + $0xf1] sm:$0xff] %vm570, %v1009
        %1085 = vst.msk [vmem:[%s902 + $0xf9] sm:$0xff] %vm570, %v1011
        %1086 = vst.msk [vmem:[%s902 + $0x109] sm:$0xff] %vm570, %v1013
        %1087 = vst.msk [vmem:[%s902 + $0x111] sm:$0xff] %vm570, %v1015
        %1088 = vst.msk [vmem:[%s902 + $0x121] sm:$0xff] %vm570, %v1017
        %1089 = vst.msk [vmem:[%s902 + $0x129] sm:$0xff] %vm570, %v1019
        %1090 = vst.msk [vmem:[%s902 + $0x139] sm:$0xff] %vm570, %v1021
        %1091 = vst.msk [vmem:[%s902 + $0x141] sm:$0xff] %vm570, %v1023
        %1092 = vst.msk [vmem:[%s902 + $0x151] sm:$0xff] %vm570, %v1025
        %1093 = vst.msk [vmem:[%s902 + $0x159] sm:$0xff] %vm570, %v1027
        %1094 = vst.msk [vmem:[%s902 + $0x169] sm:$0xff] %vm570, %v1029
        %1095 = vst.msk [vmem:[%s902 + $0x171] sm:$0xff] %vm570, %v1031
        %v1096 = vld [vmem:[#allocation2] sm:$0xff]
        %v1097 = vld [vmem:[#allocation2 + $0x8] sm:$0xff]
        %v1098 = vld [vmem:[#allocation2 + $0x18] sm:$0xff]
        %v1099 = vld [vmem:[#allocation2 + $0x20] sm:$0xff]
        %v1100 = vld [vmem:[#allocation2 + $0x30] sm:$0xff]
        %v1101 = vld [vmem:[#allocation2 + $0x38] sm:$0xff]
        %v1102 = vld [vmem:[#allocation2 + $0x48] sm:$0xff]
        %v1103 = vld [vmem:[#allocation2 + $0x50] sm:$0xff]
        %v1104 = vld [vmem:[#allocation2 + $0x60] sm:$0xff]
        %v1105 = vld [vmem:[#allocation2 + $0x68] sm:$0xff]
        %v1106 = vld [vmem:[#allocation2 + $0x78] sm:$0xff]
        %v1107 = vld [vmem:[#allocation2 + $0x80] sm:$0xff]
        %v1108 = vld [vmem:[#allocation2 + $0x90] sm:$0xff]
        %v1109 = vld [vmem:[#allocation2 + $0x98] sm:$0xff]
        %v1110 = vld [vmem:[#allocation2 + $0xa8] sm:$0xff]
        %v1111 = vld [vmem:[#allocation2 + $0xb0] sm:$0xff]
        %v1112 = vld [vmem:[#allocation2 + $0xc0] sm:$0xff]
        %v1113 = vld [vmem:[#allocation2 + $0xc8] sm:$0xff]
        %v1114 = vld [vmem:[#allocation2 + $0xd8] sm:$0xff]
        %v1115 = vld [vmem:[#allocation2 + $0xe0] sm:$0xff]
        %v1116 = vld [vmem:[#allocation2 + $0xf0] sm:$0xff]
        %v1117 = vld [vmem:[#allocation2 + $0xf8] sm:$0xff]
        %v1118 = vld [vmem:[#allocation2 + $0x108] sm:$0xff]
        %v1119 = vld [vmem:[#allocation2 + $0x110] sm:$0xff]
        %v1120 = vld [vmem:[#allocation2 + $0x120] sm:$0xff]
        %v1121 = vld [vmem:[#allocation2 + $0x128] sm:$0xff]
        %v1122 = vld [vmem:[#allocation2 + $0x138] sm:$0xff]
        %v1123 = vld [vmem:[#allocation2 + $0x140] sm:$0xff]
        %v1124 = vld [vmem:[#allocation2 + $0x150] sm:$0xff]
        %v1125 = vld [vmem:[#allocation2 + $0x158] sm:$0xff]
        %v1126 = vld [vmem:[#allocation2 + $0x168] sm:$0xff]
        %v1127 = vld [vmem:[#allocation2 + $0x170] sm:$0xff]
        %v1128 = vld [vmem:[#allocation2 + $0x180] sm:$0xff]
        %v1129 = vld [vmem:[#allocation2 + $0x188] sm:$0xff]
        %v1130 = vld [vmem:[#allocation2 + $0x198] sm:$0xff]
        %v1131 = vld [vmem:[#allocation2 + $0x1a0] sm:$0xff]
        %v1132 = vpack.c.bf16 %v1097, %v1096
        %v1133 = vpack.c.bf16 %v1099, %v1098
        %v1134 = vpack.c.bf16 %v1101, %v1100
        %v1135 = vpack.c.bf16 %v1103, %v1102
        %v1136 = vpack.c.bf16 %v1105, %v1104
        %v1137 = vpack.c.bf16 %v1107, %v1106
        %v1138 = vpack.c.bf16 %v1109, %v1108
        %v1139 = vpack.c.bf16 %v1111, %v1110
        %v1140 = vpack.c.bf16 %v1113, %v1112
        %v1141 = vpack.c.bf16 %v1115, %v1114
        %v1142 = vpack.c.bf16 %v1117, %v1116
        %v1143 = vpack.c.bf16 %v1119, %v1118
        %v1144 = vpack.c.bf16 %v1121, %v1120
        %v1145 = vpack.c.bf16 %v1123, %v1122
        %v1146 = vpack.c.bf16 %v1125, %v1124
        %v1147 = vpack.c.bf16 %v1127, %v1126
        %v1148 = vpack.c.bf16 %v1129, %v1128
        %v1149 = vpack.c.bf16 %v1131, %v1130
        %v1150 = vld [vmem:[#allocation2 + $0x1] sm:$0xff]
        %v1151 = vld [vmem:[#allocation2 + $0x9] sm:$0xff]
        %v1152 = vld [vmem:[#allocation2 + $0x19] sm:$0xff]
        %v1153 = vld [vmem:[#allocation2 + $0x21] sm:$0xff]
        %v1154 = vld [vmem:[#allocation2 + $0x31] sm:$0xff]
        %v1155 = vld [vmem:[#allocation2 + $0x39] sm:$0xff]
        %v1156 = vld [vmem:[#allocation2 + $0x49] sm:$0xff]
        %v1157 = vld [vmem:[#allocation2 + $0x51] sm:$0xff]
        %v1158 = vld [vmem:[#allocation2 + $0x61] sm:$0xff]
        %v1159 = vld [vmem:[#allocation2 + $0x69] sm:$0xff]
        %v1160 = vld [vmem:[#allocation2 + $0x79] sm:$0xff]
        %v1161 = vld [vmem:[#allocation2 + $0x81] sm:$0xff]
        %v1162 = vld [vmem:[#allocation2 + $0x91] sm:$0xff]
        %v1163 = vld [vmem:[#allocation2 + $0x99] sm:$0xff]
        %v1164 = vld [vmem:[#allocation2 + $0xa9] sm:$0xff]
        %v1165 = vld [vmem:[#allocation2 + $0xb1] sm:$0xff]
        %v1166 = vld [vmem:[#allocation2 + $0xc1] sm:$0xff]
        %v1167 = vld [vmem:[#allocation2 + $0xc9] sm:$0xff]
        %v1168 = vld [vmem:[#allocation2 + $0xd9] sm:$0xff]
        %v1169 = vld [vmem:[#allocation2 + $0xe1] sm:$0xff]
        %v1170 = vld [vmem:[#allocation2 + $0xf1] sm:$0xff]
        %v1171 = vld [vmem:[#allocation2 + $0xf9] sm:$0xff]
        %v1172 = vld [vmem:[#allocation2 + $0x109] sm:$0xff]
        %v1173 = vld [vmem:[#allocation2 + $0x111] sm:$0xff]
        %v1174 = vld [vmem:[#allocation2 + $0x121] sm:$0xff]
        %v1175 = vld [vmem:[#allocation2 + $0x129] sm:$0xff]
        %v1176 = vld [vmem:[#allocation2 + $0x139] sm:$0xff]
        %v1177 = vld [vmem:[#allocation2 + $0x141] sm:$0xff]
        %v1178 = vld [vmem:[#allocation2 + $0x151] sm:$0xff]
        %v1179 = vld [vmem:[#allocation2 + $0x159] sm:$0xff]
        %v1180 = vld [vmem:[#allocation2 + $0x169] sm:$0xff]
        %v1181 = vld [vmem:[#allocation2 + $0x171] sm:$0xff]
        %v1182 = vld [vmem:[#allocation2 + $0x181] sm:$0xff]
        %v1183 = vld [vmem:[#allocation2 + $0x189] sm:$0xff]
        %v1184 = vld [vmem:[#allocation2 + $0x199] sm:$0xff]
        %v1185 = vld [vmem:[#allocation2 + $0x1a1] sm:$0xff]
        %v1186 = vpack.c.bf16 %v1151, %v1150
        %v1187 = vpack.c.bf16 %v1153, %v1152
        %v1188 = vpack.c.bf16 %v1155, %v1154
        %v1189 = vpack.c.bf16 %v1157, %v1156
        %v1190 = vpack.c.bf16 %v1159, %v1158
        %v1191 = vpack.c.bf16 %v1161, %v1160
        %v1192 = vpack.c.bf16 %v1163, %v1162
        %v1193 = vpack.c.bf16 %v1165, %v1164
        %v1194 = vpack.c.bf16 %v1167, %v1166
        %v1195 = vpack.c.bf16 %v1169, %v1168
        %v1196 = vpack.c.bf16 %v1171, %v1170
        %v1197 = vpack.c.bf16 %v1173, %v1172
        %v1198 = vpack.c.bf16 %v1175, %v1174
        %v1199 = vpack.c.bf16 %v1177, %v1176
        %v1200 = vpack.c.bf16 %v1179, %v1178
        %v1201 = vpack.c.bf16 %v1181, %v1180
        %v1202 = vpack.c.bf16 %v1183, %v1182
        %v1203 = vpack.c.bf16 %v1185, %v1184
        %v1204 = vld [vmem:[#allocation2 + $0x2] sm:$0xff]
        %v1205 = vld [vmem:[#allocation2 + $0xa] sm:$0xff]
        %v1206 = vld [vmem:[#allocation2 + $0x1a] sm:$0xff]
        %v1207 = vld [vmem:[#allocation2 + $0x22] sm:$0xff]
        %v1208 = vld [vmem:[#allocation2 + $0x32] sm:$0xff]
        %v1209 = vld [vmem:[#allocation2 + $0x3a] sm:$0xff]
        %v1210 = vld [vmem:[#allocation2 + $0x4a] sm:$0xff]
        %v1211 = vld [vmem:[#allocation2 + $0x52] sm:$0xff]
        %v1212 = vld [vmem:[#allocation2 + $0x62] sm:$0xff]
        %v1213 = vld [vmem:[#allocation2 + $0x6a] sm:$0xff]
        %v1214 = vld [vmem:[#allocation2 + $0x7a] sm:$0xff]
        %v1215 = vld [vmem:[#allocation2 + $0x82] sm:$0xff]
        %v1216 = vld [vmem:[#allocation2 + $0x92] sm:$0xff]
        %v1217 = vld [vmem:[#allocation2 + $0x9a] sm:$0xff]
        %v1218 = vld [vmem:[#allocation2 + $0xaa] sm:$0xff]
        %v1219 = vld [vmem:[#allocation2 + $0xb2] sm:$0xff]
        %v1220 = vld [vmem:[#allocation2 + $0xc2] sm:$0xff]
        %v1221 = vld [vmem:[#allocation2 + $0xca] sm:$0xff]
        %v1222 = vld [vmem:[#allocation2 + $0xda] sm:$0xff]
        %v1223 = vld [vmem:[#allocation2 + $0xe2] sm:$0xff]
        %v1224 = vld [vmem:[#allocation2 + $0xf2] sm:$0xff]
        %v1225 = vld [vmem:[#allocation2 + $0xfa] sm:$0xff]
        %v1226 = vld [vmem:[#allocation2 + $0x10a] sm:$0xff]
        %v1227 = vld [vmem:[#allocation2 + $0x112] sm:$0xff]
        %v1228 = vld [vmem:[#allocation2 + $0x122] sm:$0xff]
        %v1229 = vld [vmem:[#allocation2 + $0x12a] sm:$0xff]
        %v1230 = vld [vmem:[#allocation2 + $0x13a] sm:$0xff]
        %v1231 = vld [vmem:[#allocation2 + $0x142] sm:$0xff]
        %v1232 = vld [vmem:[#allocation2 + $0x152] sm:$0xff]
        %v1233 = vld [vmem:[#allocation2 + $0x15a] sm:$0xff]
        %v1234 = vld [vmem:[#allocation2 + $0x16a] sm:$0xff]
        %v1235 = vld [vmem:[#allocation2 + $0x172] sm:$0xff]
        %v1236 = vld [vmem:[#allocation2 + $0x182] sm:$0xff]
        %v1237 = vld [vmem:[#allocation2 + $0x18a] sm:$0xff]
        %v1238 = vld [vmem:[#allocation2 + $0x19a] sm:$0xff]
        %v1239 = vld [vmem:[#allocation2 + $0x1a2] sm:$0xff]
        %v1240 = vpack.c.bf16 %v1205, %v1204
        %v1241 = vpack.c.bf16 %v1207, %v1206
        %v1242 = vpack.c.bf16 %v1209, %v1208
        %v1243 = vpack.c.bf16 %v1211, %v1210
        %v1244 = vpack.c.bf16 %v1213, %v1212
        %v1245 = vpack.c.bf16 %v1215, %v1214
        %v1246 = vpack.c.bf16 %v1217, %v1216
        %v1247 = vpack.c.bf16 %v1219, %v1218
        %v1248 = vpack.c.bf16 %v1221, %v1220
        %v1249 = vpack.c.bf16 %v1223, %v1222
        %v1250 = vpack.c.bf16 %v1225, %v1224
        %v1251 = vpack.c.bf16 %v1227, %v1226
        %v1252 = vpack.c.bf16 %v1229, %v1228
        %v1253 = vpack.c.bf16 %v1231, %v1230
        %v1254 = vpack.c.bf16 %v1233, %v1232
        %v1255 = vpack.c.bf16 %v1235, %v1234
        %v1256 = vpack.c.bf16 %v1237, %v1236
        %v1257 = vpack.c.bf16 %v1239, %v1238
        %1274 = vrot.lane.b32.xlu0 %v1186, 8
        %v1275 = vpop.permute.xlu0 %1274
        %1276 = vrot.lane.b32.xlu0 %v1187, 8
        %v1277 = vpop.permute.xlu0 %1276
        %1278 = vrot.lane.b32.xlu0 %v1188, 8
        %v1279 = vpop.permute.xlu0 %1278
        %1280 = vrot.lane.b32.xlu0 %v1189, 8
        %v1281 = vpop.permute.xlu0 %1280
        %1282 = vrot.lane.b32.xlu0 %v1190, 8
        %v1283 = vpop.permute.xlu0 %1282
        %1284 = vrot.lane.b32.xlu0 %v1191, 8
        %v1285 = vpop.permute.xlu0 %1284
        %1286 = vrot.lane.b32.xlu0 %v1192, 8
        %v1287 = vpop.permute.xlu0 %1286
        %1288 = vrot.lane.b32.xlu0 %v1193, 8
        %v1289 = vpop.permute.xlu0 %1288
        %1290 = vrot.lane.b32.xlu0 %v1194, 8
        %v1291 = vpop.permute.xlu0 %1290
        %1292 = vrot.lane.b32.xlu0 %v1195, 8
        %v1293 = vpop.permute.xlu0 %1292
        %1294 = vrot.lane.b32.xlu0 %v1196, 8
        %v1295 = vpop.permute.xlu0 %1294
        %1296 = vrot.lane.b32.xlu0 %v1197, 8
        %v1297 = vpop.permute.xlu0 %1296
        %1298 = vrot.lane.b32.xlu0 %v1198, 8
        %v1299 = vpop.permute.xlu0 %1298
        %1300 = vrot.lane.b32.xlu0 %v1199, 8
        %v1301 = vpop.permute.xlu0 %1300
        %1302 = vrot.lane.b32.xlu0 %v1200, 8
        %v1303 = vpop.permute.xlu0 %1302
        %1304 = vrot.lane.b32.xlu0 %v1201, 8
        %v1305 = vpop.permute.xlu0 %1304
        %1322 = vrot.lane.b32.xlu0 %v1240, 16
        %v1323 = vpop.permute.xlu0 %1322
        %1324 = vrot.lane.b32.xlu0 %v1241, 16
        %v1325 = vpop.permute.xlu0 %1324
        %1326 = vrot.lane.b32.xlu0 %v1242, 16
        %v1327 = vpop.permute.xlu0 %1326
        %1328 = vrot.lane.b32.xlu0 %v1243, 16
        %v1329 = vpop.permute.xlu0 %1328
        %1330 = vrot.lane.b32.xlu0 %v1244, 16
        %v1331 = vpop.permute.xlu0 %1330
        %1332 = vrot.lane.b32.xlu0 %v1245, 16
        %v1333 = vpop.permute.xlu0 %1332
        %1334 = vrot.lane.b32.xlu0 %v1246, 16
        %v1335 = vpop.permute.xlu0 %1334
        %1336 = vrot.lane.b32.xlu0 %v1247, 16
        %v1337 = vpop.permute.xlu0 %1336
        %1338 = vrot.lane.b32.xlu0 %v1248, 16
        %v1339 = vpop.permute.xlu0 %1338
        %1340 = vrot.lane.b32.xlu0 %v1249, 16
        %v1341 = vpop.permute.xlu0 %1340
        %1342 = vrot.lane.b32.xlu0 %v1250, 16
        %v1343 = vpop.permute.xlu0 %1342
        %1344 = vrot.lane.b32.xlu0 %v1251, 16
        %v1345 = vpop.permute.xlu0 %1344
        %1346 = vrot.lane.b32.xlu0 %v1252, 16
        %v1347 = vpop.permute.xlu0 %1346
        %1348 = vrot.lane.b32.xlu0 %v1253, 16
        %v1349 = vpop.permute.xlu0 %1348
        %1350 = vrot.lane.b32.xlu0 %v1254, 16
        %v1351 = vpop.permute.xlu0 %1350
        %1352 = vrot.lane.b32.xlu0 %v1255, 16
        %v1353 = vpop.permute.xlu0 %1352
        %1370 = vrot.lane.b32.xlu0 %v1133, 24
        %v1371 = vpop.permute.xlu0 %1370
        %1372 = vrot.lane.b32.xlu0 %v1134, 24
        %v1373 = vpop.permute.xlu0 %1372
        %1374 = vrot.lane.b32.xlu0 %v1135, 24
        %v1375 = vpop.permute.xlu0 %1374
        %1376 = vrot.lane.b32.xlu0 %v1136, 24
        %v1377 = vpop.permute.xlu0 %1376
        %1378 = vrot.lane.b32.xlu0 %v1137, 24
        %v1379 = vpop.permute.xlu0 %1378
        %1380 = vrot.lane.b32.xlu0 %v1138, 24
        %v1381 = vpop.permute.xlu0 %1380
        %1382 = vrot.lane.b32.xlu0 %v1139, 24
        %v1383 = vpop.permute.xlu0 %1382
        %1384 = vrot.lane.b32.xlu0 %v1140, 24
        %v1385 = vpop.permute.xlu0 %1384
        %1386 = vrot.lane.b32.xlu0 %v1141, 24
        %v1387 = vpop.permute.xlu0 %1386
        %1388 = vrot.lane.b32.xlu0 %v1142, 24
        %v1389 = vpop.permute.xlu0 %1388
        %1390 = vrot.lane.b32.xlu0 %v1143, 24
        %v1391 = vpop.permute.xlu0 %1390
        %1392 = vrot.lane.b32.xlu0 %v1144, 24
        %v1393 = vpop.permute.xlu0 %1392
        %1394 = vrot.lane.b32.xlu0 %v1145, 24
        %v1395 = vpop.permute.xlu0 %1394
        %1396 = vrot.lane.b32.xlu0 %v1146, 24
        %v1397 = vpop.permute.xlu0 %1396
        %1398 = vrot.lane.b32.xlu0 %v1147, 24
        %v1399 = vpop.permute.xlu0 %1398
        %1400 = vrot.lane.b32.xlu0 %v1148, 24
        %v1401 = vpop.permute.xlu0 %1400
        %1403 = vrot.lane.b32.xlu0 %v1187, 32
        %v1404 = vpop.permute.xlu0 %1403
        %1405 = vrot.lane.b32.xlu0 %v1188, 32
        %v1406 = vpop.permute.xlu0 %1405
        %1407 = vrot.lane.b32.xlu0 %v1189, 32
        %v1408 = vpop.permute.xlu0 %1407
        %1409 = vrot.lane.b32.xlu0 %v1190, 32
        %v1410 = vpop.permute.xlu0 %1409
        %1411 = vrot.lane.b32.xlu0 %v1191, 32
        %v1412 = vpop.permute.xlu0 %1411
        %1413 = vrot.lane.b32.xlu0 %v1192, 32
        %v1414 = vpop.permute.xlu0 %1413
        %1415 = vrot.lane.b32.xlu0 %v1193, 32
        %v1416 = vpop.permute.xlu0 %1415
        %1417 = vrot.lane.b32.xlu0 %v1194, 32
        %v1418 = vpop.permute.xlu0 %1417
        %1419 = vrot.lane.b32.xlu0 %v1195, 32
        %v1420 = vpop.permute.xlu0 %1419
        %1421 = vrot.lane.b32.xlu0 %v1196, 32
        %v1422 = vpop.permute.xlu0 %1421
        %1423 = vrot.lane.b32.xlu0 %v1197, 32
        %v1424 = vpop.permute.xlu0 %1423
        %1425 = vrot.lane.b32.xlu0 %v1198, 32
        %v1426 = vpop.permute.xlu0 %1425
        %1427 = vrot.lane.b32.xlu0 %v1199, 32
        %v1428 = vpop.permute.xlu0 %1427
        %1429 = vrot.lane.b32.xlu0 %v1200, 32
        %v1430 = vpop.permute.xlu0 %1429
        %1431 = vrot.lane.b32.xlu0 %v1201, 32
        %v1432 = vpop.permute.xlu0 %1431
        %1433 = vrot.lane.b32.xlu0 %v1202, 32
        %v1434 = vpop.permute.xlu0 %1433
        %1436 = vrot.lane.b32.xlu0 %v1241, 40
        %v1437 = vpop.permute.xlu0 %1436
        %1438 = vrot.lane.b32.xlu0 %v1242, 40
        %v1439 = vpop.permute.xlu0 %1438
        %1440 = vrot.lane.b32.xlu0 %v1243, 40
        %v1441 = vpop.permute.xlu0 %1440
        %1442 = vrot.lane.b32.xlu0 %v1244, 40
        %v1443 = vpop.permute.xlu0 %1442
        %1444 = vrot.lane.b32.xlu0 %v1245, 40
        %v1445 = vpop.permute.xlu0 %1444
        %1446 = vrot.lane.b32.xlu0 %v1246, 40
        %v1447 = vpop.permute.xlu0 %1446
        %1448 = vrot.lane.b32.xlu0 %v1247, 40
        %v1449 = vpop.permute.xlu0 %1448
        %1450 = vrot.lane.b32.xlu0 %v1248, 40
        %v1451 = vpop.permute.xlu0 %1450
        %1452 = vrot.lane.b32.xlu0 %v1249, 40
        %v1453 = vpop.permute.xlu0 %1452
        %1454 = vrot.lane.b32.xlu0 %v1250, 40
        %v1455 = vpop.permute.xlu0 %1454
        %1456 = vrot.lane.b32.xlu0 %v1251, 40
        %v1457 = vpop.permute.xlu0 %1456
        %1458 = vrot.lane.b32.xlu0 %v1252, 40
        %v1459 = vpop.permute.xlu0 %1458
        %1460 = vrot.lane.b32.xlu0 %v1253, 40
        %v1461 = vpop.permute.xlu0 %1460
        %1462 = vrot.lane.b32.xlu0 %v1254, 40
        %v1463 = vpop.permute.xlu0 %1462
        %1464 = vrot.lane.b32.xlu0 %v1255, 40
        %v1465 = vpop.permute.xlu0 %1464
        %1466 = vrot.lane.b32.xlu0 %v1256, 40
        %v1467 = vpop.permute.xlu0 %1466
        %1469 = vrot.lane.b32.xlu0 %v1134, 48
        %v1470 = vpop.permute.xlu0 %1469
        %1471 = vrot.lane.b32.xlu0 %v1135, 48
        %v1472 = vpop.permute.xlu0 %1471
        %1473 = vrot.lane.b32.xlu0 %v1136, 48
        %v1474 = vpop.permute.xlu0 %1473
        %1475 = vrot.lane.b32.xlu0 %v1137, 48
        %v1476 = vpop.permute.xlu0 %1475
        %1477 = vrot.lane.b32.xlu0 %v1138, 48
        %v1478 = vpop.permute.xlu0 %1477
        %1479 = vrot.lane.b32.xlu0 %v1139, 48
        %v1480 = vpop.permute.xlu0 %1479
        %1481 = vrot.lane.b32.xlu0 %v1140, 48
        %v1482 = vpop.permute.xlu0 %1481
        %1483 = vrot.lane.b32.xlu0 %v1141, 48
        %v1484 = vpop.permute.xlu0 %1483
        %1485 = vrot.lane.b32.xlu0 %v1142, 48
        %v1486 = vpop.permute.xlu0 %1485
        %1487 = vrot.lane.b32.xlu0 %v1143, 48
        %v1488 = vpop.permute.xlu0 %1487
        %1489 = vrot.lane.b32.xlu0 %v1144, 48
        %v1490 = vpop.permute.xlu0 %1489
        %1491 = vrot.lane.b32.xlu0 %v1145, 48
        %v1492 = vpop.permute.xlu0 %1491
        %1493 = vrot.lane.b32.xlu0 %v1146, 48
        %v1494 = vpop.permute.xlu0 %1493
        %1495 = vrot.lane.b32.xlu0 %v1147, 48
        %v1496 = vpop.permute.xlu0 %1495
        %1497 = vrot.lane.b32.xlu0 %v1148, 48
        %v1498 = vpop.permute.xlu0 %1497
        %1499 = vrot.lane.b32.xlu0 %v1149, 48
        %v1500 = vpop.permute.xlu0 %1499
        %1502 = vrot.lane.b32.xlu0 %v1188, 56
        %v1503 = vpop.permute.xlu0 %1502
        %1504 = vrot.lane.b32.xlu0 %v1189, 56
        %v1505 = vpop.permute.xlu0 %1504
        %1506 = vrot.lane.b32.xlu0 %v1190, 56
        %v1507 = vpop.permute.xlu0 %1506
        %1508 = vrot.lane.b32.xlu0 %v1191, 56
        %v1509 = vpop.permute.xlu0 %1508
        %1510 = vrot.lane.b32.xlu0 %v1192, 56
        %v1511 = vpop.permute.xlu0 %1510
        %1512 = vrot.lane.b32.xlu0 %v1193, 56
        %v1513 = vpop.permute.xlu0 %1512
        %1514 = vrot.lane.b32.xlu0 %v1194, 56
        %v1515 = vpop.permute.xlu0 %1514
        %1516 = vrot.lane.b32.xlu0 %v1195, 56
        %v1517 = vpop.permute.xlu0 %1516
        %1518 = vrot.lane.b32.xlu0 %v1196, 56
        %v1519 = vpop.permute.xlu0 %1518
        %1520 = vrot.lane.b32.xlu0 %v1197, 56
        %v1521 = vpop.permute.xlu0 %1520
        %1522 = vrot.lane.b32.xlu0 %v1198, 56
        %v1523 = vpop.permute.xlu0 %1522
        %1524 = vrot.lane.b32.xlu0 %v1199, 56
        %v1525 = vpop.permute.xlu0 %1524
        %1526 = vrot.lane.b32.xlu0 %v1200, 56
        %v1527 = vpop.permute.xlu0 %1526
        %1528 = vrot.lane.b32.xlu0 %v1201, 56
        %v1529 = vpop.permute.xlu0 %1528
        %1530 = vrot.lane.b32.xlu0 %v1202, 56
        %v1531 = vpop.permute.xlu0 %1530
        %1532 = vrot.lane.b32.xlu0 %v1203, 56
        %v1533 = vpop.permute.xlu0 %1532
        %1535 = vrot.lane.b32.xlu0 %v1242, 64
        %v1536 = vpop.permute.xlu0 %1535
        %1537 = vrot.lane.b32.xlu0 %v1243, 64
        %v1538 = vpop.permute.xlu0 %1537
        %1539 = vrot.lane.b32.xlu0 %v1244, 64
        %v1540 = vpop.permute.xlu0 %1539
        %1541 = vrot.lane.b32.xlu0 %v1245, 64
        %v1542 = vpop.permute.xlu0 %1541
        %1543 = vrot.lane.b32.xlu0 %v1246, 64
        %v1544 = vpop.permute.xlu0 %1543
        %1545 = vrot.lane.b32.xlu0 %v1247, 64
        %v1546 = vpop.permute.xlu0 %1545
        %1547 = vrot.lane.b32.xlu0 %v1248, 64
        %v1548 = vpop.permute.xlu0 %1547
        %1549 = vrot.lane.b32.xlu0 %v1249, 64
        %v1550 = vpop.permute.xlu0 %1549
        %1551 = vrot.lane.b32.xlu0 %v1250, 64
        %v1552 = vpop.permute.xlu0 %1551
        %1553 = vrot.lane.b32.xlu0 %v1251, 64
        %v1554 = vpop.permute.xlu0 %1553
        %1555 = vrot.lane.b32.xlu0 %v1252, 64
        %v1556 = vpop.permute.xlu0 %1555
        %1557 = vrot.lane.b32.xlu0 %v1253, 64
        %v1558 = vpop.permute.xlu0 %1557
        %1559 = vrot.lane.b32.xlu0 %v1254, 64
        %v1560 = vpop.permute.xlu0 %1559
        %1561 = vrot.lane.b32.xlu0 %v1255, 64
        %v1562 = vpop.permute.xlu0 %1561
        %1563 = vrot.lane.b32.xlu0 %v1256, 64
        %v1564 = vpop.permute.xlu0 %1563
        %1565 = vrot.lane.b32.xlu0 %v1257, 64
        %v1566 = vpop.permute.xlu0 %1565
        %v1569 = vsel %vm570, %v1132, %v1275
        %v1572 = vsel %vm570, %v1133, %v1277
        %v1575 = vsel %vm570, %v1134, %v1279
        %v1578 = vsel %vm570, %v1135, %v1281
        %v1581 = vsel %vm570, %v1136, %v1283
        %v1584 = vsel %vm570, %v1137, %v1285
        %v1587 = vsel %vm570, %v1138, %v1287
        %v1590 = vsel %vm570, %v1139, %v1289
        %v1593 = vsel %vm570, %v1140, %v1291
        %v1596 = vsel %vm570, %v1141, %v1293
        %v1599 = vsel %vm570, %v1142, %v1295
        %v1602 = vsel %vm570, %v1143, %v1297
        %v1605 = vsel %vm570, %v1144, %v1299
        %v1608 = vsel %vm570, %v1145, %v1301
        %v1611 = vsel %vm570, %v1146, %v1303
        %v1614 = vsel %vm570, %v1147, %v1305
        %vm1615 = vcmask 130048
        %v1617 = vsel %vm1615, %v1569, %v1323
        %v1619 = vsel %vm1615, %v1572, %v1325
        %v1621 = vsel %vm1615, %v1575, %v1327
        %v1623 = vsel %vm1615, %v1578, %v1329
        %v1625 = vsel %vm1615, %v1581, %v1331
        %v1627 = vsel %vm1615, %v1584, %v1333
        %v1629 = vsel %vm1615, %v1587, %v1335
        %v1631 = vsel %vm1615, %v1590, %v1337
        %v1633 = vsel %vm1615, %v1593, %v1339
        %v1635 = vsel %vm1615, %v1596, %v1341
        %v1637 = vsel %vm1615, %v1599, %v1343
        %v1639 = vsel %vm1615, %v1602, %v1345
        %v1641 = vsel %vm1615, %v1605, %v1347
        %v1643 = vsel %vm1615, %v1608, %v1349
        %v1645 = vsel %vm1615, %v1611, %v1351
        %v1647 = vsel %vm1615, %v1614, %v1353
        %vm1648 = vcmask 195584
        %v1650 = vsel %vm1648, %v1617, %v1371
        %v1652 = vsel %vm1648, %v1619, %v1373
        %v1654 = vsel %vm1648, %v1621, %v1375
        %v1656 = vsel %vm1648, %v1623, %v1377
        %v1658 = vsel %vm1648, %v1625, %v1379
        %v1660 = vsel %vm1648, %v1627, %v1381
        %v1662 = vsel %vm1648, %v1629, %v1383
        %v1664 = vsel %vm1648, %v1631, %v1385
        %v1666 = vsel %vm1648, %v1633, %v1387
        %v1668 = vsel %vm1648, %v1635, %v1389
        %v1670 = vsel %vm1648, %v1637, %v1391
        %v1672 = vsel %vm1648, %v1639, %v1393
        %v1674 = vsel %vm1648, %v1641, %v1395
        %v1676 = vsel %vm1648, %v1643, %v1397
        %v1678 = vsel %vm1648, %v1645, %v1399
        %v1680 = vsel %vm1648, %v1647, %v1401
        %vm1681 = vcmask 261120
        %v1683 = vsel %vm1681, %v1650, %v1404
        %v1685 = vsel %vm1681, %v1652, %v1406
        %v1687 = vsel %vm1681, %v1654, %v1408
        %v1689 = vsel %vm1681, %v1656, %v1410
        %v1691 = vsel %vm1681, %v1658, %v1412
        %v1693 = vsel %vm1681, %v1660, %v1414
        %v1695 = vsel %vm1681, %v1662, %v1416
        %v1697 = vsel %vm1681, %v1664, %v1418
        %v1699 = vsel %vm1681, %v1666, %v1420
        %v1701 = vsel %vm1681, %v1668, %v1422
        %v1703 = vsel %vm1681, %v1670, %v1424
        %v1705 = vsel %vm1681, %v1672, %v1426
        %v1707 = vsel %vm1681, %v1674, %v1428
        %v1709 = vsel %vm1681, %v1676, %v1430
        %v1711 = vsel %vm1681, %v1678, %v1432
        %v1713 = vsel %vm1681, %v1680, %v1434
        %vm1714 = vcmask 326656
        %v1716 = vsel %vm1714, %v1683, %v1437
        %v1718 = vsel %vm1714, %v1685, %v1439
        %v1720 = vsel %vm1714, %v1687, %v1441
        %v1722 = vsel %vm1714, %v1689, %v1443
        %v1724 = vsel %vm1714, %v1691, %v1445
        %v1726 = vsel %vm1714, %v1693, %v1447
        %v1728 = vsel %vm1714, %v1695, %v1449
        %v1730 = vsel %vm1714, %v1697, %v1451
        %v1732 = vsel %vm1714, %v1699, %v1453
        %v1734 = vsel %vm1714, %v1701, %v1455
        %v1736 = vsel %vm1714, %v1703, %v1457
        %v1738 = vsel %vm1714, %v1705, %v1459
        %v1740 = vsel %vm1714, %v1707, %v1461
        %v1742 = vsel %vm1714, %v1709, %v1463
        %v1744 = vsel %vm1714, %v1711, %v1465
        %v1746 = vsel %vm1714, %v1713, %v1467
        %vm1747 = vcmask 392192
        %v1749 = vsel %vm1747, %v1716, %v1470
        %v1751 = vsel %vm1747, %v1718, %v1472
        %v1753 = vsel %vm1747, %v1720, %v1474
        %v1755 = vsel %vm1747, %v1722, %v1476
        %v1757 = vsel %vm1747, %v1724, %v1478
        %v1759 = vsel %vm1747, %v1726, %v1480
        %v1761 = vsel %vm1747, %v1728, %v1482
        %v1763 = vsel %vm1747, %v1730, %v1484
        %v1765 = vsel %vm1747, %v1732, %v1486
        %v1767 = vsel %vm1747, %v1734, %v1488
        %v1769 = vsel %vm1747, %v1736, %v1490
        %v1771 = vsel %vm1747, %v1738, %v1492
        %v1773 = vsel %vm1747, %v1740, %v1494
        %v1775 = vsel %vm1747, %v1742, %v1496
        %v1777 = vsel %vm1747, %v1744, %v1498
        %v1779 = vsel %vm1747, %v1746, %v1500
        %vm1780 = vcmask 457728
        %v1782 = vsel %vm1780, %v1749, %v1503
        %v1784 = vsel %vm1780, %v1751, %v1505
        %v1786 = vsel %vm1780, %v1753, %v1507
        %v1788 = vsel %vm1780, %v1755, %v1509
        %v1790 = vsel %vm1780, %v1757, %v1511
        %v1792 = vsel %vm1780, %v1759, %v1513
        %v1794 = vsel %vm1780, %v1761, %v1515
        %v1796 = vsel %vm1780, %v1763, %v1517
        %v1798 = vsel %vm1780, %v1765, %v1519
        %v1800 = vsel %vm1780, %v1767, %v1521
        %v1802 = vsel %vm1780, %v1769, %v1523
        %v1804 = vsel %vm1780, %v1771, %v1525
        %v1806 = vsel %vm1780, %v1773, %v1527
        %v1808 = vsel %vm1780, %v1775, %v1529
        %v1810 = vsel %vm1780, %v1777, %v1531
        %v1812 = vsel %vm1780, %v1779, %v1533
        %vm1813 = vcmask 523264
        %v1815 = vsel %vm1813, %v1782, %v1536
        %v1817 = vsel %vm1813, %v1784, %v1538
        %v1819 = vsel %vm1813, %v1786, %v1540
        %v1821 = vsel %vm1813, %v1788, %v1542
        %v1823 = vsel %vm1813, %v1790, %v1544
        %v1825 = vsel %vm1813, %v1792, %v1546
        %v1827 = vsel %vm1813, %v1794, %v1548
        %v1829 = vsel %vm1813, %v1796, %v1550
        %v1831 = vsel %vm1813, %v1798, %v1552
        %v1833 = vsel %vm1813, %v1800, %v1554
        %v1835 = vsel %vm1813, %v1802, %v1556
        %v1837 = vsel %vm1813, %v1804, %v1558
        %v1839 = vsel %vm1813, %v1806, %v1560
        %v1841 = vsel %vm1813, %v1808, %v1562
        %v1843 = vsel %vm1813, %v1810, %v1564
        %v1845 = vsel %vm1813, %v1812, %v1566
        %v1846 = vld [vmem:[%s4] sm:$0xf]
        %v1847 = vld [vmem:[%s4 + $0x4] sm:$0xf]
        %v1848 = vld [vmem:[%s4 + $0x8] sm:$0xf]
        %v1849 = vld [vmem:[%s4 + $0xc] sm:$0xf]
        %v1850 = vld [vmem:[%s4 + $0x10] sm:$0xf]
        %v1851 = vld [vmem:[%s4 + $0x14] sm:$0xf]
        %v1852 = vld [vmem:[%s4 + $0x18] sm:$0xf]
        %v1853 = vld [vmem:[%s4 + $0x1c] sm:$0xf]
        %v1854 = vld [vmem:[%s4 + $0x20] sm:$0xf]
        %v1864 = vunpack.c.l.b16 %v1846
        %v1865 = vunpack.c.l.b16 %v1847
        %v1866 = vunpack.c.l.b16 %v1848
        %v1867 = vunpack.c.l.b16 %v1849
        %v1868 = vunpack.c.l.b16 %v1850
        %v1869 = vunpack.c.l.b16 %v1851
        %v1870 = vunpack.c.l.b16 %v1852
        %v1871 = vunpack.c.l.b16 %v1853
        %v1872 = vunpack.c.l.b16 %v1854
        %v1873 = vpack.c.b16 %v1865, %v1864
        %v1874 = vpack.c.b16 %v1867, %v1866
        %v1875 = vpack.c.b16 %v1869, %v1868
        %v1876 = vpack.c.b16 %v1871, %v1870
        %v1877 = vpack.c.b16 %v1872, %v1872
        %vm1882 = vcmask 588800
        %v1883 = vsel %vm1882, %v1815, 0
        %v1885 = vsel %vm1882, %v1817, 0
        %v1887 = vsel %vm1882, %v1819, 0
        %v1889 = vsel %vm1882, %v1821, 0
        %v1891 = vsel %vm1882, %v1823, 0
        %v1893 = vsel %vm1882, %v1825, 0
        %v1895 = vsel %vm1882, %v1827, 0
        %v1897 = vsel %vm1882, %v1829, 0
        %v1899 = vsel %vm1882, %v1831, 0
        %v1901 = vsel %vm1882, %v1833, 0
        %v1903 = vsel %vm1882, %v1835, 0
        %v1905 = vsel %vm1882, %v1837, 0
        %v1907 = vsel %vm1882, %v1839, 0
        %v1909 = vsel %vm1882, %v1841, 0
        %v1911 = vsel %vm1882, %v1843, 0
        %v1913 = vsel %vm1882, %v1845, 0
        %v1916 = vsel %vm619, %v1877, 0
        %1918 = vmatprep.subr.bf16.mxu0 0
        %1919 = vmatpush1.bf16.msra.mxu0 %v1873
        %1920 = vmatprep.subr.bf16.mxu0 0
        %1921 = vmatpush1.bf16.msra.mxu0 %v1874
        %1922 = vmatprep.subr.bf16.mxu0 0
        %1923 = vmatpush1.bf16.msra.mxu0 %v1875
        %1924 = vmatprep.subr.bf16.mxu0 0
        %1925 = vmatpush1.bf16.msra.mxu0 %v1876
        %1926 = vmatprep.subr.bf16.mxu0 0
        %1927 = vmatpush1.bf16.msra.mxu0 %v1916
        %1928 = vmatprep.subr.bf16.mxu0 0
        %1929 = vmatpush1.bf16.msra.mxu0 0
        %1930 = vmatprep.subr.bf16.mxu0 0
        %1931 = vmatpush1.bf16.msra.mxu0 0
        %1932 = vmatprep.subr.bf16.mxu0 0
        %1933 = vmatpush1.bf16.msra.mxu0 0
        %1934 = vmatprep.subr.bf16.mxu0 0
        %1935 = vmatpush1.bf16.msra.mxu0 0
        %1936 = vmatprep.subr.bf16.mxu0 0
        %1937 = vmatpush1.bf16.msra.mxu0 0
        %1938 = vmatprep.subr.bf16.mxu0 0
        %1939 = vmatpush1.bf16.msra.mxu0 0
        %1940 = vmatprep.subr.bf16.mxu0 0
        %1941 = vmatpush1.bf16.msra.mxu0 0
        %1942 = vmatprep.subr.bf16.mxu0 0
        %1943 = vmatpush1.bf16.msra.mxu0 0
        %1944 = vmatprep.subr.bf16.mxu0 0
        %1945 = vmatpush1.bf16.msra.mxu0 0
        %1946 = vmatprep.subr.bf16.mxu0 0
        %1947 = vmatpush1.bf16.msra.mxu0 0
        %1948 = vmatprep.subr.bf16.mxu0 0
        %1949 = vmatpush1.bf16.msra.mxu0 0
        %1950 = vmatprep.mubr.bf16.mxu0 0
        %1951 = vmatmul.mubr.bf16.gmra.mrb[0].mxu0 %v1883
        %v1952 = vpop.f32.mrb[0].mxu0
        %v1953 = vadd.f32 0.0, %v1952
        %v1954 = vpop.f32.mrb[0].mxu0
        %v1955 = vpop.f32.mrb[0].mxu0
        %v1956 = vadd.f32 0.0, %v1955
        %v1957 = vpop.f32.mrb[0].mxu0
        %1958 = vmatprep.mubr.bf16.mxu0 0
        %1959 = vmatmul.mubr.bf16.gmra.mrb[0].mxu0 %v1885
        %v1960 = vpop.f32.mrb[0].mxu0
        %v1961 = vadd.f32 0.0, %v1960
        %v1962 = vpop.f32.mrb[0].mxu0
        %v1963 = vpop.f32.mrb[0].mxu0
        %v1964 = vadd.f32 0.0, %v1963
        %v1965 = vpop.f32.mrb[0].mxu0
        %1966 = vmatprep.mubr.bf16.mxu0 0
        %1967 = vmatmul.mubr.bf16.gmra.mrb[0].mxu0 %v1887
        %v1968 = vpop.f32.mrb[0].mxu0
        %v1969 = vadd.f32 0.0, %v1968
        %v1970 = vpop.f32.mrb[0].mxu0
        %v1971 = vpop.f32.mrb[0].mxu0
        %v1972 = vadd.f32 0.0, %v1971
        %v1973 = vpop.f32.mrb[0].mxu0
        %1974 = vmatprep.mubr.bf16.mxu0 0
        %1975 = vmatmul.mubr.bf16.gmra.mrb[0].mxu0 %v1889
        %v1976 = vpop.f32.mrb[0].mxu0
        %v1977 = vadd.f32 0.0, %v1976
        %v1978 = vpop.f32.mrb[0].mxu0
        %v1979 = vpop.f32.mrb[0].mxu0
        %v1980 = vadd.f32 0.0, %v1979
        %v1981 = vpop.f32.mrb[0].mxu0
        %1982 = vmatprep.mubr.bf16.mxu0 0
        %1983 = vmatmul.mubr.bf16.gmra.mrb[0].mxu0 %v1891
        %v1984 = vpop.f32.mrb[0].mxu0
        %v1985 = vadd.f32 0.0, %v1984
        %v1986 = vpop.f32.mrb[0].mxu0
        %v1987 = vpop.f32.mrb[0].mxu0
        %v1988 = vadd.f32 0.0, %v1987
        %v1989 = vpop.f32.mrb[0].mxu0
        %1990 = vmatprep.mubr.bf16.mxu0 0
        %1991 = vmatmul.mubr.bf16.gmra.mrb[0].mxu0 %v1893
        %v1992 = vpop.f32.mrb[0].mxu0
        %v1993 = vadd.f32 0.0, %v1992
        %v1994 = vpop.f32.mrb[0].mxu0
        %v1995 = vpop.f32.mrb[0].mxu0
        %v1996 = vadd.f32 0.0, %v1995
        %v1997 = vpop.f32.mrb[0].mxu0
        %1998 = vmatprep.mubr.bf16.mxu0 0
        %1999 = vmatmul.mubr.bf16.gmra.mrb[0].mxu0 %v1895
        %v2000 = vpop.f32.mrb[0].mxu0
        %v2001 = vadd.f32 0.0, %v2000
        %v2002 = vpop.f32.mrb[0].mxu0
        %v2003 = vpop.f32.mrb[0].mxu0
        %v2004 = vadd.f32 0.0, %v2003
        %v2005 = vpop.f32.mrb[0].mxu0
        %2006 = vmatprep.mubr.bf16.mxu0 0
        %2007 = vmatmul.mubr.bf16.gmra.mrb[0].mxu0 %v1897
        %v2008 = vpop.f32.mrb[0].mxu0
        %v2009 = vadd.f32 0.0, %v2008
        %v2010 = vpop.f32.mrb[0].mxu0
        %v2011 = vpop.f32.mrb[0].mxu0
        %v2012 = vadd.f32 0.0, %v2011
        %v2013 = vpop.f32.mrb[0].mxu0
        %2014 = vmatprep.mubr.bf16.mxu0 0
        %2015 = vmatmul.mubr.bf16.gmra.mrb[0].mxu0 %v1899
        %v2016 = vpop.f32.mrb[0].mxu0
        %v2017 = vadd.f32 0.0, %v2016
        %v2018 = vpop.f32.mrb[0].mxu0
        %v2019 = vpop.f32.mrb[0].mxu0
        %v2020 = vadd.f32 0.0, %v2019
        %v2021 = vpop.f32.mrb[0].mxu0
        %2022 = vmatprep.mubr.bf16.mxu0 0
        %2023 = vmatmul.mubr.bf16.gmra.mrb[0].mxu0 %v1901
        %v2024 = vpop.f32.mrb[0].mxu0
        %v2025 = vadd.f32 0.0, %v2024
        %v2026 = vpop.f32.mrb[0].mxu0
        %v2027 = vpop.f32.mrb[0].mxu0
        %v2028 = vadd.f32 0.0, %v2027
        %v2029 = vpop.f32.mrb[0].mxu0
        %2030 = vmatprep.mubr.bf16.mxu0 0
        %2031 = vmatmul.mubr.bf16.gmra.mrb[0].mxu0 %v1903
        %v2032 = vpop.f32.mrb[0].mxu0
        %v2033 = vadd.f32 0.0, %v2032
        %v2034 = vpop.f32.mrb[0].mxu0
        %v2035 = vpop.f32.mrb[0].mxu0
        %v2036 = vadd.f32 0.0, %v2035
        %v2037 = vpop.f32.mrb[0].mxu0
        %2038 = vmatprep.mubr.bf16.mxu0 0
        %2039 = vmatmul.mubr.bf16.gmra.mrb[0].mxu0 %v1905
        %v2040 = vpop.f32.mrb[0].mxu0
        %v2041 = vadd.f32 0.0, %v2040
        %v2042 = vpop.f32.mrb[0].mxu0
        %v2043 = vpop.f32.mrb[0].mxu0
        %v2044 = vadd.f32 0.0, %v2043
        %v2045 = vpop.f32.mrb[0].mxu0
        %2046 = vmatprep.mubr.bf16.mxu0 0
        %2047 = vmatmul.mubr.bf16.gmra.mrb[0].mxu0 %v1907
        %v2048 = vpop.f32.mrb[0].mxu0
        %v2049 = vadd.f32 0.0, %v2048
        %v2050 = vpop.f32.mrb[0].mxu0
        %v2051 = vpop.f32.mrb[0].mxu0
        %v2052 = vadd.f32 0.0, %v2051
        %v2053 = vpop.f32.mrb[0].mxu0
        %2054 = vmatprep.mubr.bf16.mxu0 0
        %2055 = vmatmul.mubr.bf16.gmra.mrb[0].mxu0 %v1909
        %v2056 = vpop.f32.mrb[0].mxu0
        %v2057 = vadd.f32 0.0, %v2056
        %v2058 = vpop.f32.mrb[0].mxu0
        %v2059 = vpop.f32.mrb[0].mxu0
        %v2060 = vadd.f32 0.0, %v2059
        %v2061 = vpop.f32.mrb[0].mxu0
        %2062 = vmatprep.mubr.bf16.mxu0 0
        %2063 = vmatmul.mubr.bf16.gmra.mrb[0].mxu0 %v1911
        %v2064 = vpop.f32.mrb[0].mxu0
        %v2065 = vadd.f32 0.0, %v2064
        %v2066 = vpop.f32.mrb[0].mxu0
        %v2067 = vpop.f32.mrb[0].mxu0
        %v2068 = vadd.f32 0.0, %v2067
        %v2069 = vpop.f32.mrb[0].mxu0
        %2070 = vmatprep.mubr.bf16.mxu0 0
        %2071 = vmatmul.mubr.bf16.gmra.mrb[0].mxu0 %v1913
        %v2072 = vpop.f32.mrb[0].mxu0
        %v2073 = vadd.f32 0.0, %v2072
        %v2074 = vpop.f32.mrb[0].mxu0
        %v2075 = vpop.f32.mrb[0].mxu0
        %v2076 = vadd.f32 0.0, %v2075
        %v2077 = vpop.f32.mrb[0].mxu0
        %2078 = vdwg.mxu0
        %v2079 = vld [vmem:[%s5] sm:$0x1]
        %v2081 = vlaneseq
        %v2082 = vshrl.u32 %v2081, 7
        %v2083 = vsub.s32 0, %v2082
        %v2084 = vrot.slane %v2079, %v2083
        %v2086 = vmul.f32 %v1953, %v2084
        %v2087 = vmul.f32 %v1956, %v2084
        %v2088 = vmul.f32 %v1961, %v2084
        %v2089 = vmul.f32 %v1964, %v2084
        %v2090 = vmul.f32 %v1969, %v2084
        %v2091 = vmul.f32 %v1972, %v2084
        %v2092 = vmul.f32 %v1977, %v2084
        %v2093 = vmul.f32 %v1980, %v2084
        %v2094 = vmul.f32 %v1985, %v2084
        %v2095 = vmul.f32 %v1988, %v2084
        %v2096 = vmul.f32 %v1993, %v2084
        %v2097 = vmul.f32 %v1996, %v2084
        %v2098 = vmul.f32 %v2001, %v2084
        %v2099 = vmul.f32 %v2004, %v2084
        %v2100 = vmul.f32 %v2009, %v2084
        %v2101 = vmul.f32 %v2012, %v2084
        %v2102 = vmul.f32 %v2017, %v2084
        %v2103 = vmul.f32 %v2020, %v2084
        %v2104 = vmul.f32 %v2025, %v2084
        %v2105 = vmul.f32 %v2028, %v2084
        %v2106 = vmul.f32 %v2033, %v2084
        %v2107 = vmul.f32 %v2036, %v2084
        %v2108 = vmul.f32 %v2041, %v2084
        %v2109 = vmul.f32 %v2044, %v2084
        %v2110 = vmul.f32 %v2049, %v2084
        %v2111 = vmul.f32 %v2052, %v2084
        %v2112 = vmul.f32 %v2057, %v2084
        %v2113 = vmul.f32 %v2060, %v2084
        %v2114 = vmul.f32 %v2065, %v2084
        %v2115 = vmul.f32 %v2068, %v2084
        %v2116 = vmul.f32 %v2073, %v2084
        %v2117 = vmul.f32 %v2076, %v2084
        %v2118 = vld [vmem:[%s6] sm:$0x1]
        %v2120 = vlaneseq
        %v2121 = vshrl.u32 %v2120, 7
        %v2122 = vsub.s32 0, %v2121
        %v2123 = vrot.slane %v2118, %v2122
        %v2125 = vadd.f32 %v2086, %v2123
        %v2126 = vadd.f32 %v2087, %v2123
        %v2127 = vadd.f32 %v2088, %v2123
        %v2128 = vadd.f32 %v2089, %v2123
        %v2129 = vadd.f32 %v2090, %v2123
        %v2130 = vadd.f32 %v2091, %v2123
        %v2131 = vadd.f32 %v2092, %v2123
        %v2132 = vadd.f32 %v2093, %v2123
        %v2133 = vadd.f32 %v2094, %v2123
        %v2134 = vadd.f32 %v2095, %v2123
        %v2135 = vadd.f32 %v2096, %v2123
        %v2136 = vadd.f32 %v2097, %v2123
        %v2137 = vadd.f32 %v2098, %v2123
        %v2138 = vadd.f32 %v2099, %v2123
        %v2139 = vadd.f32 %v2100, %v2123
        %v2140 = vadd.f32 %v2101, %v2123
        %v2141 = vadd.f32 %v2102, %v2123
        %v2142 = vadd.f32 %v2103, %v2123
        %v2143 = vadd.f32 %v2104, %v2123
        %v2144 = vadd.f32 %v2105, %v2123
        %v2145 = vadd.f32 %v2106, %v2123
        %v2146 = vadd.f32 %v2107, %v2123
        %v2147 = vadd.f32 %v2108, %v2123
        %v2148 = vadd.f32 %v2109, %v2123
        %v2149 = vadd.f32 %v2110, %v2123
        %v2150 = vadd.f32 %v2111, %v2123
        %v2151 = vadd.f32 %v2112, %v2123
        %v2152 = vadd.f32 %v2113, %v2123
        %v2153 = vadd.f32 %v2114, %v2123
        %v2154 = vadd.f32 %v2115, %v2123
        %v2155 = vadd.f32 %v2116, %v2123
        %v2156 = vadd.f32 %v2117, %v2123
        %v2157 = vmax.f32 %v2125, 0.0
        %v2158 = vmax.f32 %v2126, 0.0
        %v2159 = vmax.f32 %v2127, 0.0
        %v2160 = vmax.f32 %v2128, 0.0
        %v2161 = vmax.f32 %v2129, 0.0
        %v2162 = vmax.f32 %v2130, 0.0
        %v2163 = vmax.f32 %v2131, 0.0
        %v2164 = vmax.f32 %v2132, 0.0
        %v2165 = vmax.f32 %v2133, 0.0
        %v2166 = vmax.f32 %v2134, 0.0
        %v2167 = vmax.f32 %v2135, 0.0
        %v2168 = vmax.f32 %v2136, 0.0
        %v2169 = vmax.f32 %v2137, 0.0
        %v2170 = vmax.f32 %v2138, 0.0
        %v2171 = vmax.f32 %v2139, 0.0
        %v2172 = vmax.f32 %v2140, 0.0
        %v2173 = vmax.f32 %v2141, 0.0
        %v2174 = vmax.f32 %v2142, 0.0
        %v2175 = vmax.f32 %v2143, 0.0
        %v2176 = vmax.f32 %v2144, 0.0
        %v2177 = vmax.f32 %v2145, 0.0
        %v2178 = vmax.f32 %v2146, 0.0
        %v2179 = vmax.f32 %v2147, 0.0
        %v2180 = vmax.f32 %v2148, 0.0
        %v2181 = vmax.f32 %v2149, 0.0
        %v2182 = vmax.f32 %v2150, 0.0
        %v2183 = vmax.f32 %v2151, 0.0
        %v2184 = vmax.f32 %v2152, 0.0
        %v2185 = vmax.f32 %v2153, 0.0
        %v2186 = vmax.f32 %v2154, 0.0
        %v2187 = vmax.f32 %v2155, 0.0
        %v2188 = vmax.f32 %v2156, 0.0
        %2189 = vst.msk [vmem:[#allocation3] sm:$0xff] %vm570, 0.0
        %2190 = vst.msk [vmem:[#allocation3 + $0x8] sm:$0xff] %vm570, 0.0
        %2191 = vst.msk [vmem:[#allocation3 + $0x10] sm:$0x3] %vm896, 0.0
        %s2192 = scalar_lea.vmem [#allocation3], 408
        %2193 = vst.msk [vmem:[%s2192] sm:$0xff] %vm570, 0.0
        %2194 = vst.msk [vmem:[%s2192 + $0x8] sm:$0xff] %vm570, 0.0
        %2195 = vst.msk [vmem:[%s2192 + $0x10] sm:$0x3] %vm896, 0.0
        %s2196 = scalar_lea.vmem [#allocation3], 24
        %2197 = vst.msk [vmem:[%s2196] sm:$0x1] %vm903, 0.0
        %2198 = vst.msk [vmem:[%s2196 + $0x18] sm:$0x1] %vm903, 0.0
        %2199 = vst.msk [vmem:[%s2196 + $0x30] sm:$0x1] %vm903, 0.0
        %2200 = vst.msk [vmem:[%s2196 + $0x48] sm:$0x1] %vm903, 0.0
        %2201 = vst.msk [vmem:[%s2196 + $0x60] sm:$0x1] %vm903, 0.0
        %2202 = vst.msk [vmem:[%s2196 + $0x78] sm:$0x1] %vm903, 0.0
        %2203 = vst.msk [vmem:[%s2196 + $0x90] sm:$0x1] %vm903, 0.0
        %2204 = vst.msk [vmem:[%s2196 + $0xa8] sm:$0x1] %vm903, 0.0
        %2205 = vst.msk [vmem:[%s2196 + $0xc0] sm:$0x1] %vm903, 0.0
        %2206 = vst.msk [vmem:[%s2196 + $0xd8] sm:$0x1] %vm903, 0.0
        %2207 = vst.msk [vmem:[%s2196 + $0xf0] sm:$0x1] %vm903, 0.0
        %2208 = vst.msk [vmem:[%s2196 + $0x108] sm:$0x1] %vm903, 0.0
        %2209 = vst.msk [vmem:[%s2196 + $0x120] sm:$0x1] %vm903, 0.0
        %2210 = vst.msk [vmem:[%s2196 + $0x138] sm:$0x1] %vm903, 0.0
        %2211 = vst.msk [vmem:[%s2196 + $0x150] sm:$0x1] %vm903, 0.0
        %2212 = vst.msk [vmem:[%s2196 + $0x168] sm:$0x1] %vm903, 0.0
        %2213 = vst.msk [vmem:[%s2196 + $0x11] sm:$0x1] %vm903, 0.0
        %2214 = vst.msk [vmem:[%s2196 + $0x29] sm:$0x1] %vm903, 0.0
        %2215 = vst.msk [vmem:[%s2196 + $0x41] sm:$0x1] %vm903, 0.0
        %2216 = vst.msk [vmem:[%s2196 + $0x59] sm:$0x1] %vm903, 0.0
        %2217 = vst.msk [vmem:[%s2196 + $0x71] sm:$0x1] %vm903, 0.0
        %2218 = vst.msk [vmem:[%s2196 + $0x89] sm:$0x1] %vm903, 0.0
        %2219 = vst.msk [vmem:[%s2196 + $0xa1] sm:$0x1] %vm903, 0.0
        %2220 = vst.msk [vmem:[%s2196 + $0xb9] sm:$0x1] %vm903, 0.0
        %2221 = vst.msk [vmem:[%s2196 + $0xd1] sm:$0x1] %vm903, 0.0
        %2222 = vst.msk [vmem:[%s2196 + $0xe9] sm:$0x1] %vm903, 0.0
        %2223 = vst.msk [vmem:[%s2196 + $0x101] sm:$0x1] %vm903, 0.0
        %2224 = vst.msk [vmem:[%s2196 + $0x119] sm:$0x1] %vm903, 0.0
        %2225 = vst.msk [vmem:[%s2196 + $0x131] sm:$0x1] %vm903, 0.0
        %2226 = vst.msk [vmem:[%s2196 + $0x149] sm:$0x1] %vm903, 0.0
        %2227 = vst.msk [vmem:[%s2196 + $0x161] sm:$0x1] %vm903, 0.0
        %2228 = vst.msk [vmem:[%s2196 + $0x179] sm:$0x1] %vm903, 0.0
        %2229 = vrot.lane.b32.xlu0 %v862, 104
        %v2230 = vpop.permute.xlu0 %2229
        %2231 = vrot.lane.b32.xlu0 %v863, 104
        %v2232 = vpop.permute.xlu0 %2231
        %2233 = vrot.lane.b32.xlu0 %v864, 104
        %v2234 = vpop.permute.xlu0 %2233
        %2235 = vrot.lane.b32.xlu0 %v865, 104
        %v2236 = vpop.permute.xlu0 %2235
        %2237 = vrot.lane.b32.xlu0 %v866, 104
        %v2238 = vpop.permute.xlu0 %2237
        %2239 = vrot.lane.b32.xlu0 %v867, 104
        %v2240 = vpop.permute.xlu0 %2239
        %2241 = vrot.lane.b32.xlu0 %v868, 104
        %v2242 = vpop.permute.xlu0 %2241
        %2243 = vrot.lane.b32.xlu0 %v869, 104
        %v2244 = vpop.permute.xlu0 %2243
        %2245 = vrot.lane.b32.xlu0 %v870, 104
        %v2246 = vpop.permute.xlu0 %2245
        %2247 = vrot.lane.b32.xlu0 %v871, 104
        %v2248 = vpop.permute.xlu0 %2247
        %2249 = vrot.lane.b32.xlu0 %v872, 104
        %v2250 = vpop.permute.xlu0 %2249
        %2251 = vrot.lane.b32.xlu0 %v873, 104
        %v2252 = vpop.permute.xlu0 %2251
        %2253 = vrot.lane.b32.xlu0 %v874, 104
        %v2254 = vpop.permute.xlu0 %2253
        %2255 = vrot.lane.b32.xlu0 %v875, 104
        %v2256 = vpop.permute.xlu0 %2255
        %2257 = vrot.lane.b32.xlu0 %v876, 104
        %v2258 = vpop.permute.xlu0 %2257
        %2259 = vrot.lane.b32.xlu0 %v877, 104
        %v2260 = vpop.permute.xlu0 %2259
        %2261 = vrot.lane.b32.xlu0 %v878, 104
        %v2262 = vpop.permute.xlu0 %2261
        %2263 = vrot.lane.b32.xlu0 %v879, 104
        %v2264 = vpop.permute.xlu0 %2263
        %2265 = vrot.lane.b32.xlu0 %v880, 104
        %v2266 = vpop.permute.xlu0 %2265
        %2267 = vrot.lane.b32.xlu0 %v881, 104
        %v2268 = vpop.permute.xlu0 %2267
        %2269 = vrot.lane.b32.xlu0 %v882, 104
        %v2270 = vpop.permute.xlu0 %2269
        %2271 = vrot.lane.b32.xlu0 %v883, 104
        %v2272 = vpop.permute.xlu0 %2271
        %2273 = vrot.lane.b32.xlu0 %v884, 104
        %v2274 = vpop.permute.xlu0 %2273
        %2275 = vrot.lane.b32.xlu0 %v885, 104
        %v2276 = vpop.permute.xlu0 %2275
        %2277 = vrot.lane.b32.xlu0 %v886, 104
        %v2278 = vpop.permute.xlu0 %2277
        %2279 = vrot.lane.b32.xlu0 %v887, 104
        %v2280 = vpop.permute.xlu0 %2279
        %2281 = vrot.lane.b32.xlu0 %v888, 104
        %v2282 = vpop.permute.xlu0 %2281
        %2283 = vrot.lane.b32.xlu0 %v889, 104
        %v2284 = vpop.permute.xlu0 %2283
        %2285 = vrot.lane.b32.xlu0 %v890, 104
        %v2286 = vpop.permute.xlu0 %2285
        %2287 = vrot.lane.b32.xlu0 %v891, 104
        %v2288 = vpop.permute.xlu0 %2287
        %2289 = vrot.lane.b32.xlu0 %v892, 104
        %v2290 = vpop.permute.xlu0 %2289
        %2291 = vrot.lane.b32.xlu0 %v893, 104
        %v2292 = vpop.permute.xlu0 %2291
        %2325 = vst.msk [vmem:[%s2196 + $0x1] sm:$0xff] %vm570, %v2230
        %2326 = vst.msk [vmem:[%s2196 + $0x9] sm:$0xff] %vm570, %v2232
        %2327 = vst.msk [vmem:[%s2196 + $0x19] sm:$0xff] %vm570, %v2234
        %2328 = vst.msk [vmem:[%s2196 + $0x21] sm:$0xff] %vm570, %v2236
        %2329 = vst.msk [vmem:[%s2196 + $0x31] sm:$0xff] %vm570, %v2238
        %2330 = vst.msk [vmem:[%s2196 + $0x39] sm:$0xff] %vm570, %v2240
        %2331 = vst.msk [vmem:[%s2196 + $0x49] sm:$0xff] %vm570, %v2242
        %2332 = vst.msk [vmem:[%s2196 + $0x51] sm:$0xff] %vm570, %v2244
        %2333 = vst.msk [vmem:[%s2196 + $0x61] sm:$0xff] %vm570, %v2246
        %2334 = vst.msk [vmem:[%s2196 + $0x69] sm:$0xff] %vm570, %v2248
        %2335 = vst.msk [vmem:[%s2196 + $0x79] sm:$0xff] %vm570, %v2250
        %2336 = vst.msk [vmem:[%s2196 + $0x81] sm:$0xff] %vm570, %v2252
        %2337 = vst.msk [vmem:[%s2196 + $0x91] sm:$0xff] %vm570, %v2254
        %2338 = vst.msk [vmem:[%s2196 + $0x99] sm:$0xff] %vm570, %v2256
        %2339 = vst.msk [vmem:[%s2196 + $0xa9] sm:$0xff] %vm570, %v2258
        %2340 = vst.msk [vmem:[%s2196 + $0xb1] sm:$0xff] %vm570, %v2260
        %2341 = vst.msk [vmem:[%s2196 + $0xc1] sm:$0xff] %vm570, %v2262
        %2342 = vst.msk [vmem:[%s2196 + $0xc9] sm:$0xff] %vm570, %v2264
        %2343 = vst.msk [vmem:[%s2196 + $0xd9] sm:$0xff] %vm570, %v2266
        %2344 = vst.msk [vmem:[%s2196 + $0xe1] sm:$0xff] %vm570, %v2268
        %2345 = vst.msk [vmem:[%s2196 + $0xf1] sm:$0xff] %vm570, %v2270
        %2346 = vst.msk [vmem:[%s2196 + $0xf9] sm:$0xff] %vm570, %v2272
        %2347 = vst.msk [vmem:[%s2196 + $0x109] sm:$0xff] %vm570, %v2274
        %2348 = vst.msk [vmem:[%s2196 + $0x111] sm:$0xff] %vm570, %v2276
        %2349 = vst.msk [vmem:[%s2196 + $0x121] sm:$0xff] %vm570, %v2278
        %2350 = vst.msk [vmem:[%s2196 + $0x129] sm:$0xff] %vm570, %v2280
        %2351 = vst.msk [vmem:[%s2196 + $0x139] sm:$0xff] %vm570, %v2282
        %2352 = vst.msk [vmem:[%s2196 + $0x141] sm:$0xff] %vm570, %v2284
        %2353 = vst.msk [vmem:[%s2196 + $0x151] sm:$0xff] %vm570, %v2286
        %2354 = vst.msk [vmem:[%s2196 + $0x159] sm:$0xff] %vm570, %v2288
        %2355 = vst.msk [vmem:[%s2196 + $0x169] sm:$0xff] %vm570, %v2290
        %2356 = vst.msk [vmem:[%s2196 + $0x171] sm:$0xff] %vm570, %v2292
        %v2357 = vld [vmem:[#allocation3] sm:$0xff]
        %v2358 = vld [vmem:[#allocation3 + $0x8] sm:$0xff]
        %v2359 = vld [vmem:[#allocation3 + $0x18] sm:$0xff]
        %v2360 = vld [vmem:[#allocation3 + $0x20] sm:$0xff]
        %v2361 = vld [vmem:[#allocation3 + $0x30] sm:$0xff]
        %v2362 = vld [vmem:[#allocation3 + $0x38] sm:$0xff]
        %v2363 = vld [vmem:[#allocation3 + $0x48] sm:$0xff]
        %v2364 = vld [vmem:[#allocation3 + $0x50] sm:$0xff]
        %v2365 = vld [vmem:[#allocation3 + $0x60] sm:$0xff]
        %v2366 = vld [vmem:[#allocation3 + $0x68] sm:$0xff]
        %v2367 = vld [vmem:[#allocation3 + $0x78] sm:$0xff]
        %v2368 = vld [vmem:[#allocation3 + $0x80] sm:$0xff]
        %v2369 = vld [vmem:[#allocation3 + $0x90] sm:$0xff]
        %v2370 = vld [vmem:[#allocation3 + $0x98] sm:$0xff]
        %v2371 = vld [vmem:[#allocation3 + $0xa8] sm:$0xff]
        %v2372 = vld [vmem:[#allocation3 + $0xb0] sm:$0xff]
        %v2373 = vld [vmem:[#allocation3 + $0xc0] sm:$0xff]
        %v2374 = vld [vmem:[#allocation3 + $0xc8] sm:$0xff]
        %v2375 = vld [vmem:[#allocation3 + $0xd8] sm:$0xff]
        %v2376 = vld [vmem:[#allocation3 + $0xe0] sm:$0xff]
        %v2377 = vld [vmem:[#allocation3 + $0xf0] sm:$0xff]
        %v2378 = vld [vmem:[#allocation3 + $0xf8] sm:$0xff]
        %v2379 = vld [vmem:[#allocation3 + $0x108] sm:$0xff]
        %v2380 = vld [vmem:[#allocation3 + $0x110] sm:$0xff]
        %v2381 = vld [vmem:[#allocation3 + $0x120] sm:$0xff]
        %v2382 = vld [vmem:[#allocation3 + $0x128] sm:$0xff]
        %v2383 = vld [vmem:[#allocation3 + $0x138] sm:$0xff]
        %v2384 = vld [vmem:[#allocation3 + $0x140] sm:$0xff]
        %v2385 = vld [vmem:[#allocation3 + $0x150] sm:$0xff]
        %v2386 = vld [vmem:[#allocation3 + $0x158] sm:$0xff]
        %v2387 = vld [vmem:[#allocation3 + $0x168] sm:$0xff]
        %v2388 = vld [vmem:[#allocation3 + $0x170] sm:$0xff]
        %v2389 = vld [vmem:[#allocation3 + $0x180] sm:$0xff]
        %v2390 = vld [vmem:[#allocation3 + $0x188] sm:$0xff]
        %v2391 = vld [vmem:[#allocation3 + $0x198] sm:$0xff]
        %v2392 = vld [vmem:[#allocation3 + $0x1a0] sm:$0xff]
        %v2393 = vpack.c.bf16 %v2358, %v2357
        %v2394 = vpack.c.bf16 %v2360, %v2359
        %v2395 = vpack.c.bf16 %v2362, %v2361
        %v2396 = vpack.c.bf16 %v2364, %v2363
        %v2397 = vpack.c.bf16 %v2366, %v2365
        %v2398 = vpack.c.bf16 %v2368, %v2367
        %v2399 = vpack.c.bf16 %v2370, %v2369
        %v2400 = vpack.c.bf16 %v2372, %v2371
        %v2401 = vpack.c.bf16 %v2374, %v2373
        %v2402 = vpack.c.bf16 %v2376, %v2375
        %v2403 = vpack.c.bf16 %v2378, %v2377
        %v2404 = vpack.c.bf16 %v2380, %v2379
        %v2405 = vpack.c.bf16 %v2382, %v2381
        %v2406 = vpack.c.bf16 %v2384, %v2383
        %v2407 = vpack.c.bf16 %v2386, %v2385
        %v2408 = vpack.c.bf16 %v2388, %v2387
        %v2409 = vpack.c.bf16 %v2390, %v2389
        %v2410 = vpack.c.bf16 %v2392, %v2391
        %v2411 = vld [vmem:[#allocation3 + $0x1] sm:$0xff]
        %v2412 = vld [vmem:[#allocation3 + $0x9] sm:$0xff]
        %v2413 = vld [vmem:[#allocation3 + $0x19] sm:$0xff]
        %v2414 = vld [vmem:[#allocation3 + $0x21] sm:$0xff]
        %v2415 = vld [vmem:[#allocation3 + $0x31] sm:$0xff]
        %v2416 = vld [vmem:[#allocation3 + $0x39] sm:$0xff]
        %v2417 = vld [vmem:[#allocation3 + $0x49] sm:$0xff]
        %v2418 = vld [vmem:[#allocation3 + $0x51] sm:$0xff]
        %v2419 = vld [vmem:[#allocation3 + $0x61] sm:$0xff]
        %v2420 = vld [vmem:[#allocation3 + $0x69] sm:$0xff]
        %v2421 = vld [vmem:[#allocation3 + $0x79] sm:$0xff]
        %v2422 = vld [vmem:[#allocation3 + $0x81] sm:$0xff]
        %v2423 = vld [vmem:[#allocation3 + $0x91] sm:$0xff]
        %v2424 = vld [vmem:[#allocation3 + $0x99] sm:$0xff]
        %v2425 = vld [vmem:[#allocation3 + $0xa9] sm:$0xff]
        %v2426 = vld [vmem:[#allocation3 + $0xb1] sm:$0xff]
        %v2427 = vld [vmem:[#allocation3 + $0xc1] sm:$0xff]
        %v2428 = vld [vmem:[#allocation3 + $0xc9] sm:$0xff]
        %v2429 = vld [vmem:[#allocation3 + $0xd9] sm:$0xff]
        %v2430 = vld [vmem:[#allocation3 + $0xe1] sm:$0xff]
        %v2431 = vld [vmem:[#allocation3 + $0xf1] sm:$0xff]
        %v2432 = vld [vmem:[#allocation3 + $0xf9] sm:$0xff]
        %v2433 = vld [vmem:[#allocation3 + $0x109] sm:$0xff]
        %v2434 = vld [vmem:[#allocation3 + $0x111] sm:$0xff]
        %v2435 = vld [vmem:[#allocation3 + $0x121] sm:$0xff]
        %v2436 = vld [vmem:[#allocation3 + $0x129] sm:$0xff]
        %v2437 = vld [vmem:[#allocation3 + $0x139] sm:$0xff]
        %v2438 = vld [vmem:[#allocation3 + $0x141] sm:$0xff]
        %v2439 = vld [vmem:[#allocation3 + $0x151] sm:$0xff]
        %v2440 = vld [vmem:[#allocation3 + $0x159] sm:$0xff]
        %v2441 = vld [vmem:[#allocation3 + $0x169] sm:$0xff]
        %v2442 = vld [vmem:[#allocation3 + $0x171] sm:$0xff]
        %v2443 = vld [vmem:[#allocation3 + $0x181] sm:$0xff]
        %v2444 = vld [vmem:[#allocation3 + $0x189] sm:$0xff]
        %v2445 = vld [vmem:[#allocation3 + $0x199] sm:$0xff]
        %v2446 = vld [vmem:[#allocation3 + $0x1a1] sm:$0xff]
        %v2447 = vpack.c.bf16 %v2412, %v2411
        %v2448 = vpack.c.bf16 %v2414, %v2413
        %v2449 = vpack.c.bf16 %v2416, %v2415
        %v2450 = vpack.c.bf16 %v2418, %v2417
        %v2451 = vpack.c.bf16 %v2420, %v2419
        %v2452 = vpack.c.bf16 %v2422, %v2421
        %v2453 = vpack.c.bf16 %v2424, %v2423
        %v2454 = vpack.c.bf16 %v2426, %v2425
        %v2455 = vpack.c.bf16 %v2428, %v2427
        %v2456 = vpack.c.bf16 %v2430, %v2429
        %v2457 = vpack.c.bf16 %v2432, %v2431
        %v2458 = vpack.c.bf16 %v2434, %v2433
        %v2459 = vpack.c.bf16 %v2436, %v2435
        %v2460 = vpack.c.bf16 %v2438, %v2437
        %v2461 = vpack.c.bf16 %v2440, %v2439
        %v2462 = vpack.c.bf16 %v2442, %v2441
        %v2463 = vpack.c.bf16 %v2444, %v2443
        %v2464 = vpack.c.bf16 %v2446, %v2445
        %v2465 = vld [vmem:[#allocation3 + $0x2] sm:$0xff]
        %v2466 = vld [vmem:[#allocation3 + $0xa] sm:$0xff]
        %v2467 = vld [vmem:[#allocation3 + $0x1a] sm:$0xff]
        %v2468 = vld [vmem:[#allocation3 + $0x22] sm:$0xff]
        %v2469 = vld [vmem:[#allocation3 + $0x32] sm:$0xff]
        %v2470 = vld [vmem:[#allocation3 + $0x3a] sm:$0xff]
        %v2471 = vld [vmem:[#allocation3 + $0x4a] sm:$0xff]
        %v2472 = vld [vmem:[#allocation3 + $0x52] sm:$0xff]
        %v2473 = vld [vmem:[#allocation3 + $0x62] sm:$0xff]
        %v2474 = vld [vmem:[#allocation3 + $0x6a] sm:$0xff]
        %v2475 = vld [vmem:[#allocation3 + $0x7a] sm:$0xff]
        %v2476 = vld [vmem:[#allocation3 + $0x82] sm:$0xff]
        %v2477 = vld [vmem:[#allocation3 + $0x92] sm:$0xff]
        %v2478 = vld [vmem:[#allocation3 + $0x9a] sm:$0xff]
        %v2479 = vld [vmem:[#allocation3 + $0xaa] sm:$0xff]
        %v2480 = vld [vmem:[#allocation3 + $0xb2] sm:$0xff]
        %v2481 = vld [vmem:[#allocation3 + $0xc2] sm:$0xff]
        %v2482 = vld [vmem:[#allocation3 + $0xca] sm:$0xff]
        %v2483 = vld [vmem:[#allocation3 + $0xda] sm:$0xff]
        %v2484 = vld [vmem:[#allocation3 + $0xe2] sm:$0xff]
        %v2485 = vld [vmem:[#allocation3 + $0xf2] sm:$0xff]
        %v2486 = vld [vmem:[#allocation3 + $0xfa] sm:$0xff]
        %v2487 = vld [vmem:[#allocation3 + $0x10a] sm:$0xff]
        %v2488 = vld [vmem:[#allocation3 + $0x112] sm:$0xff]
        %v2489 = vld [vmem:[#allocation3 + $0x122] sm:$0xff]
        %v2490 = vld [vmem:[#allocation3 + $0x12a] sm:$0xff]
        %v2491 = vld [vmem:[#allocation3 + $0x13a] sm:$0xff]
        %v2492 = vld [vmem:[#allocation3 + $0x142] sm:$0xff]
        %v2493 = vld [vmem:[#allocation3 + $0x152] sm:$0xff]
        %v2494 = vld [vmem:[#allocation3 + $0x15a] sm:$0xff]
        %v2495 = vld [vmem:[#allocation3 + $0x16a] sm:$0xff]
        %v2496 = vld [vmem:[#allocation3 + $0x172] sm:$0xff]
        %v2497 = vld [vmem:[#allocation3 + $0x182] sm:$0xff]
        %v2498 = vld [vmem:[#allocation3 + $0x18a] sm:$0xff]
        %v2499 = vld [vmem:[#allocation3 + $0x19a] sm:$0xff]
        %v2500 = vld [vmem:[#allocation3 + $0x1a2] sm:$0xff]
        %v2501 = vpack.c.bf16 %v2466, %v2465
        %v2502 = vpack.c.bf16 %v2468, %v2467
        %v2503 = vpack.c.bf16 %v2470, %v2469
        %v2504 = vpack.c.bf16 %v2472, %v2471
        %v2505 = vpack.c.bf16 %v2474, %v2473
        %v2506 = vpack.c.bf16 %v2476, %v2475
        %v2507 = vpack.c.bf16 %v2478, %v2477
        %v2508 = vpack.c.bf16 %v2480, %v2479
        %v2509 = vpack.c.bf16 %v2482, %v2481
        %v2510 = vpack.c.bf16 %v2484, %v2483
        %v2511 = vpack.c.bf16 %v2486, %v2485
        %v2512 = vpack.c.bf16 %v2488, %v2487
        %v2513 = vpack.c.bf16 %v2490, %v2489
        %v2514 = vpack.c.bf16 %v2492, %v2491
        %v2515 = vpack.c.bf16 %v2494, %v2493
        %v2516 = vpack.c.bf16 %v2496, %v2495
        %v2517 = vpack.c.bf16 %v2498, %v2497
        %v2518 = vpack.c.bf16 %v2500, %v2499
        %2535 = vrot.lane.b32.xlu0 %v2447, 8
        %v2536 = vpop.permute.xlu0 %2535
        %2537 = vrot.lane.b32.xlu0 %v2448, 8
        %v2538 = vpop.permute.xlu0 %2537
        %2539 = vrot.lane.b32.xlu0 %v2449, 8
        %v2540 = vpop.permute.xlu0 %2539
        %2541 = vrot.lane.b32.xlu0 %v2450, 8
        %v2542 = vpop.permute.xlu0 %2541
        %2543 = vrot.lane.b32.xlu0 %v2451, 8
        %v2544 = vpop.permute.xlu0 %2543
        %2545 = vrot.lane.b32.xlu0 %v2452, 8
        %v2546 = vpop.permute.xlu0 %2545
        %2547 = vrot.lane.b32.xlu0 %v2453, 8
        %v2548 = vpop.permute.xlu0 %2547
        %2549 = vrot.lane.b32.xlu0 %v2454, 8
        %v2550 = vpop.permute.xlu0 %2549
        %2551 = vrot.lane.b32.xlu0 %v2455, 8
        %v2552 = vpop.permute.xlu0 %2551
        %2553 = vrot.lane.b32.xlu0 %v2456, 8
        %v2554 = vpop.permute.xlu0 %2553
        %2555 = vrot.lane.b32.xlu0 %v2457, 8
        %v2556 = vpop.permute.xlu0 %2555
        %2557 = vrot.lane.b32.xlu0 %v2458, 8
        %v2558 = vpop.permute.xlu0 %2557
        %2559 = vrot.lane.b32.xlu0 %v2459, 8
        %v2560 = vpop.permute.xlu0 %2559
        %2561 = vrot.lane.b32.xlu0 %v2460, 8
        %v2562 = vpop.permute.xlu0 %2561
        %2563 = vrot.lane.b32.xlu0 %v2461, 8
        %v2564 = vpop.permute.xlu0 %2563
        %2565 = vrot.lane.b32.xlu0 %v2462, 8
        %v2566 = vpop.permute.xlu0 %2565
        %2583 = vrot.lane.b32.xlu0 %v2501, 16
        %v2584 = vpop.permute.xlu0 %2583
        %2585 = vrot.lane.b32.xlu0 %v2502, 16
        %v2586 = vpop.permute.xlu0 %2585
        %2587 = vrot.lane.b32.xlu0 %v2503, 16
        %v2588 = vpop.permute.xlu0 %2587
        %2589 = vrot.lane.b32.xlu0 %v2504, 16
        %v2590 = vpop.permute.xlu0 %2589
        %2591 = vrot.lane.b32.xlu0 %v2505, 16
        %v2592 = vpop.permute.xlu0 %2591
        %2593 = vrot.lane.b32.xlu0 %v2506, 16
        %v2594 = vpop.permute.xlu0 %2593
        %2595 = vrot.lane.b32.xlu0 %v2507, 16
        %v2596 = vpop.permute.xlu0 %2595
        %2597 = vrot.lane.b32.xlu0 %v2508, 16
        %v2598 = vpop.permute.xlu0 %2597
        %2599 = vrot.lane.b32.xlu0 %v2509, 16
        %v2600 = vpop.permute.xlu0 %2599
        %2601 = vrot.lane.b32.xlu0 %v2510, 16
        %v2602 = vpop.permute.xlu0 %2601
        %2603 = vrot.lane.b32.xlu0 %v2511, 16
        %v2604 = vpop.permute.xlu0 %2603
        %2605 = vrot.lane.b32.xlu0 %v2512, 16
        %v2606 = vpop.permute.xlu0 %2605
        %2607 = vrot.lane.b32.xlu0 %v2513, 16
        %v2608 = vpop.permute.xlu0 %2607
        %2609 = vrot.lane.b32.xlu0 %v2514, 16
        %v2610 = vpop.permute.xlu0 %2609
        %2611 = vrot.lane.b32.xlu0 %v2515, 16
        %v2612 = vpop.permute.xlu0 %2611
        %2613 = vrot.lane.b32.xlu0 %v2516, 16
        %v2614 = vpop.permute.xlu0 %2613
        %2631 = vrot.lane.b32.xlu0 %v2394, 24
        %v2632 = vpop.permute.xlu0 %2631
        %2633 = vrot.lane.b32.xlu0 %v2395, 24
        %v2634 = vpop.permute.xlu0 %2633
        %2635 = vrot.lane.b32.xlu0 %v2396, 24
        %v2636 = vpop.permute.xlu0 %2635
        %2637 = vrot.lane.b32.xlu0 %v2397, 24
        %v2638 = vpop.permute.xlu0 %2637
        %2639 = vrot.lane.b32.xlu0 %v2398, 24
        %v2640 = vpop.permute.xlu0 %2639
        %2641 = vrot.lane.b32.xlu0 %v2399, 24
        %v2642 = vpop.permute.xlu0 %2641
        %2643 = vrot.lane.b32.xlu0 %v2400, 24
        %v2644 = vpop.permute.xlu0 %2643
        %2645 = vrot.lane.b32.xlu0 %v2401, 24
        %v2646 = vpop.permute.xlu0 %2645
        %2647 = vrot.lane.b32.xlu0 %v2402, 24
        %v2648 = vpop.permute.xlu0 %2647
        %2649 = vrot.lane.b32.xlu0 %v2403, 24
        %v2650 = vpop.permute.xlu0 %2649
        %2651 = vrot.lane.b32.xlu0 %v2404, 24
        %v2652 = vpop.permute.xlu0 %2651
        %2653 = vrot.lane.b32.xlu0 %v2405, 24
        %v2654 = vpop.permute.xlu0 %2653
        %2655 = vrot.lane.b32.xlu0 %v2406, 24
        %v2656 = vpop.permute.xlu0 %2655
        %2657 = vrot.lane.b32.xlu0 %v2407, 24
        %v2658 = vpop.permute.xlu0 %2657
        %2659 = vrot.lane.b32.xlu0 %v2408, 24
        %v2660 = vpop.permute.xlu0 %2659
        %2661 = vrot.lane.b32.xlu0 %v2409, 24
        %v2662 = vpop.permute.xlu0 %2661
        %2664 = vrot.lane.b32.xlu0 %v2448, 32
        %v2665 = vpop.permute.xlu0 %2664
        %2666 = vrot.lane.b32.xlu0 %v2449, 32
        %v2667 = vpop.permute.xlu0 %2666
        %2668 = vrot.lane.b32.xlu0 %v2450, 32
        %v2669 = vpop.permute.xlu0 %2668
        %2670 = vrot.lane.b32.xlu0 %v2451, 32
        %v2671 = vpop.permute.xlu0 %2670
        %2672 = vrot.lane.b32.xlu0 %v2452, 32
        %v2673 = vpop.permute.xlu0 %2672
        %2674 = vrot.lane.b32.xlu0 %v2453, 32
        %v2675 = vpop.permute.xlu0 %2674
        %2676 = vrot.lane.b32.xlu0 %v2454, 32
        %v2677 = vpop.permute.xlu0 %2676
        %2678 = vrot.lane.b32.xlu0 %v2455, 32
        %v2679 = vpop.permute.xlu0 %2678
        %2680 = vrot.lane.b32.xlu0 %v2456, 32
        %v2681 = vpop.permute.xlu0 %2680
        %2682 = vrot.lane.b32.xlu0 %v2457, 32
        %v2683 = vpop.permute.xlu0 %2682
        %2684 = vrot.lane.b32.xlu0 %v2458, 32
        %v2685 = vpop.permute.xlu0 %2684
        %2686 = vrot.lane.b32.xlu0 %v2459, 32
        %v2687 = vpop.permute.xlu0 %2686
        %2688 = vrot.lane.b32.xlu0 %v2460, 32
        %v2689 = vpop.permute.xlu0 %2688
        %2690 = vrot.lane.b32.xlu0 %v2461, 32
        %v2691 = vpop.permute.xlu0 %2690
        %2692 = vrot.lane.b32.xlu0 %v2462, 32
        %v2693 = vpop.permute.xlu0 %2692
        %2694 = vrot.lane.b32.xlu0 %v2463, 32
        %v2695 = vpop.permute.xlu0 %2694
        %2697 = vrot.lane.b32.xlu0 %v2502, 40
        %v2698 = vpop.permute.xlu0 %2697
        %2699 = vrot.lane.b32.xlu0 %v2503, 40
        %v2700 = vpop.permute.xlu0 %2699
        %2701 = vrot.lane.b32.xlu0 %v2504, 40
        %v2702 = vpop.permute.xlu0 %2701
        %2703 = vrot.lane.b32.xlu0 %v2505, 40
        %v2704 = vpop.permute.xlu0 %2703
        %2705 = vrot.lane.b32.xlu0 %v2506, 40
        %v2706 = vpop.permute.xlu0 %2705
        %2707 = vrot.lane.b32.xlu0 %v2507, 40
        %v2708 = vpop.permute.xlu0 %2707
        %2709 = vrot.lane.b32.xlu0 %v2508, 40
        %v2710 = vpop.permute.xlu0 %2709
        %2711 = vrot.lane.b32.xlu0 %v2509, 40
        %v2712 = vpop.permute.xlu0 %2711
        %2713 = vrot.lane.b32.xlu0 %v2510, 40
        %v2714 = vpop.permute.xlu0 %2713
        %2715 = vrot.lane.b32.xlu0 %v2511, 40
        %v2716 = vpop.permute.xlu0 %2715
        %2717 = vrot.lane.b32.xlu0 %v2512, 40
        %v2718 = vpop.permute.xlu0 %2717
        %2719 = vrot.lane.b32.xlu0 %v2513, 40
        %v2720 = vpop.permute.xlu0 %2719
        %2721 = vrot.lane.b32.xlu0 %v2514, 40
        %v2722 = vpop.permute.xlu0 %2721
        %2723 = vrot.lane.b32.xlu0 %v2515, 40
        %v2724 = vpop.permute.xlu0 %2723
        %2725 = vrot.lane.b32.xlu0 %v2516, 40
        %v2726 = vpop.permute.xlu0 %2725
        %2727 = vrot.lane.b32.xlu0 %v2517, 40
        %v2728 = vpop.permute.xlu0 %2727
        %2730 = vrot.lane.b32.xlu0 %v2395, 48
        %v2731 = vpop.permute.xlu0 %2730
        %2732 = vrot.lane.b32.xlu0 %v2396, 48
        %v2733 = vpop.permute.xlu0 %2732
        %2734 = vrot.lane.b32.xlu0 %v2397, 48
        %v2735 = vpop.permute.xlu0 %2734
        %2736 = vrot.lane.b32.xlu0 %v2398, 48
        %v2737 = vpop.permute.xlu0 %2736
        %2738 = vrot.lane.b32.xlu0 %v2399, 48
        %v2739 = vpop.permute.xlu0 %2738
        %2740 = vrot.lane.b32.xlu0 %v2400, 48
        %v2741 = vpop.permute.xlu0 %2740
        %2742 = vrot.lane.b32.xlu0 %v2401, 48
        %v2743 = vpop.permute.xlu0 %2742
        %2744 = vrot.lane.b32.xlu0 %v2402, 48
        %v2745 = vpop.permute.xlu0 %2744
        %2746 = vrot.lane.b32.xlu0 %v2403, 48
        %v2747 = vpop.permute.xlu0 %2746
        %2748 = vrot.lane.b32.xlu0 %v2404, 48
        %v2749 = vpop.permute.xlu0 %2748
        %2750 = vrot.lane.b32.xlu0 %v2405, 48
        %v2751 = vpop.permute.xlu0 %2750
        %2752 = vrot.lane.b32.xlu0 %v2406, 48
        %v2753 = vpop.permute.xlu0 %2752
        %2754 = vrot.lane.b32.xlu0 %v2407, 48
        %v2755 = vpop.permute.xlu0 %2754
        %2756 = vrot.lane.b32.xlu0 %v2408, 48
        %v2757 = vpop.permute.xlu0 %2756
        %2758 = vrot.lane.b32.xlu0 %v2409, 48
        %v2759 = vpop.permute.xlu0 %2758
        %2760 = vrot.lane.b32.xlu0 %v2410, 48
        %v2761 = vpop.permute.xlu0 %2760
        %2763 = vrot.lane.b32.xlu0 %v2449, 56
        %v2764 = vpop.permute.xlu0 %2763
        %2765 = vrot.lane.b32.xlu0 %v2450, 56
        %v2766 = vpop.permute.xlu0 %2765
        %2767 = vrot.lane.b32.xlu0 %v2451, 56
        %v2768 = vpop.permute.xlu0 %2767
        %2769 = vrot.lane.b32.xlu0 %v2452, 56
        %v2770 = vpop.permute.xlu0 %2769
        %2771 = vrot.lane.b32.xlu0 %v2453, 56
        %v2772 = vpop.permute.xlu0 %2771
        %2773 = vrot.lane.b32.xlu0 %v2454, 56
        %v2774 = vpop.permute.xlu0 %2773
        %2775 = vrot.lane.b32.xlu0 %v2455, 56
        %v2776 = vpop.permute.xlu0 %2775
        %2777 = vrot.lane.b32.xlu0 %v2456, 56
        %v2778 = vpop.permute.xlu0 %2777
        %2779 = vrot.lane.b32.xlu0 %v2457, 56
        %v2780 = vpop.permute.xlu0 %2779
        %2781 = vrot.lane.b32.xlu0 %v2458, 56
        %v2782 = vpop.permute.xlu0 %2781
        %2783 = vrot.lane.b32.xlu0 %v2459, 56
        %v2784 = vpop.permute.xlu0 %2783
        %2785 = vrot.lane.b32.xlu0 %v2460, 56
        %v2786 = vpop.permute.xlu0 %2785
        %2787 = vrot.lane.b32.xlu0 %v2461, 56
        %v2788 = vpop.permute.xlu0 %2787
        %2789 = vrot.lane.b32.xlu0 %v2462, 56
        %v2790 = vpop.permute.xlu0 %2789
        %2791 = vrot.lane.b32.xlu0 %v2463, 56
        %v2792 = vpop.permute.xlu0 %2791
        %2793 = vrot.lane.b32.xlu0 %v2464, 56
        %v2794 = vpop.permute.xlu0 %2793
        %2796 = vrot.lane.b32.xlu0 %v2503, 64
        %v2797 = vpop.permute.xlu0 %2796
        %2798 = vrot.lane.b32.xlu0 %v2504, 64
        %v2799 = vpop.permute.xlu0 %2798
        %2800 = vrot.lane.b32.xlu0 %v2505, 64
        %v2801 = vpop.permute.xlu0 %2800
        %2802 = vrot.lane.b32.xlu0 %v2506, 64
        %v2803 = vpop.permute.xlu0 %2802
        %2804 = vrot.lane.b32.xlu0 %v2507, 64
        %v2805 = vpop.permute.xlu0 %2804
        %2806 = vrot.lane.b32.xlu0 %v2508, 64
        %v2807 = vpop.permute.xlu0 %2806
        %2808 = vrot.lane.b32.xlu0 %v2509, 64
        %v2809 = vpop.permute.xlu0 %2808
        %2810 = vrot.lane.b32.xlu0 %v2510, 64
        %v2811 = vpop.permute.xlu0 %2810
        %2812 = vrot.lane.b32.xlu0 %v2511, 64
        %v2813 = vpop.permute.xlu0 %2812
        %2814 = vrot.lane.b32.xlu0 %v2512, 64
        %v2815 = vpop.permute.xlu0 %2814
        %2816 = vrot.lane.b32.xlu0 %v2513, 64
        %v2817 = vpop.permute.xlu0 %2816
        %2818 = vrot.lane.b32.xlu0 %v2514, 64
        %v2819 = vpop.permute.xlu0 %2818
        %2820 = vrot.lane.b32.xlu0 %v2515, 64
        %v2821 = vpop.permute.xlu0 %2820
        %2822 = vrot.lane.b32.xlu0 %v2516, 64
        %v2823 = vpop.permute.xlu0 %2822
        %2824 = vrot.lane.b32.xlu0 %v2517, 64
        %v2825 = vpop.permute.xlu0 %2824
        %2826 = vrot.lane.b32.xlu0 %v2518, 64
        %v2827 = vpop.permute.xlu0 %2826
        %v2830 = vsel %vm570, %v2393, %v2536
        %v2833 = vsel %vm570, %v2394, %v2538
        %v2836 = vsel %vm570, %v2395, %v2540
        %v2839 = vsel %vm570, %v2396, %v2542
        %v2842 = vsel %vm570, %v2397, %v2544
        %v2845 = vsel %vm570, %v2398, %v2546
        %v2848 = vsel %vm570, %v2399, %v2548
        %v2851 = vsel %vm570, %v2400, %v2550
        %v2854 = vsel %vm570, %v2401, %v2552
        %v2857 = vsel %vm570, %v2402, %v2554
        %v2860 = vsel %vm570, %v2403, %v2556
        %v2863 = vsel %vm570, %v2404, %v2558
        %v2866 = vsel %vm570, %v2405, %v2560
        %v2869 = vsel %vm570, %v2406, %v2562
        %v2872 = vsel %vm570, %v2407, %v2564
        %v2875 = vsel %vm570, %v2408, %v2566
        %v2877 = vsel %vm1615, %v2830, %v2584
        %v2879 = vsel %vm1615, %v2833, %v2586
        %v2881 = vsel %vm1615, %v2836, %v2588
        %v2883 = vsel %vm1615, %v2839, %v2590
        %v2885 = vsel %vm1615, %v2842, %v2592
        %v2887 = vsel %vm1615, %v2845, %v2594
        %v2889 = vsel %vm1615, %v2848, %v2596
        %v2891 = vsel %vm1615, %v2851, %v2598
        %v2893 = vsel %vm1615, %v2854, %v2600
        %v2895 = vsel %vm1615, %v2857, %v2602
        %v2897 = vsel %vm1615, %v2860, %v2604
        %v2899 = vsel %vm1615, %v2863, %v2606
        %v2901 = vsel %vm1615, %v2866, %v2608
        %v2903 = vsel %vm1615, %v2869, %v2610
        %v2905 = vsel %vm1615, %v2872, %v2612
        %v2907 = vsel %vm1615, %v2875, %v2614
        %v2909 = vsel %vm1648, %v2877, %v2632
        %v2911 = vsel %vm1648, %v2879, %v2634
        %v2913 = vsel %vm1648, %v2881, %v2636
        %v2915 = vsel %vm1648, %v2883, %v2638
        %v2917 = vsel %vm1648, %v2885, %v2640
        %v2919 = vsel %vm1648, %v2887, %v2642
        %v2921 = vsel %vm1648, %v2889, %v2644
        %v2923 = vsel %vm1648, %v2891, %v2646
        %v2925 = vsel %vm1648, %v2893, %v2648
        %v2927 = vsel %vm1648, %v2895, %v2650
        %v2929 = vsel %vm1648, %v2897, %v2652
        %v2931 = vsel %vm1648, %v2899, %v2654
        %v2933 = vsel %vm1648, %v2901, %v2656
        %v2935 = vsel %vm1648, %v2903, %v2658
        %v2937 = vsel %vm1648, %v2905, %v2660
        %v2939 = vsel %vm1648, %v2907, %v2662
        %v2941 = vsel %vm1681, %v2909, %v2665
        %v2943 = vsel %vm1681, %v2911, %v2667
        %v2945 = vsel %vm1681, %v2913, %v2669
        %v2947 = vsel %vm1681, %v2915, %v2671
        %v2949 = vsel %vm1681, %v2917, %v2673
        %v2951 = vsel %vm1681, %v2919, %v2675
        %v2953 = vsel %vm1681, %v2921, %v2677
        %v2955 = vsel %vm1681, %v2923, %v2679
        %v2957 = vsel %vm1681, %v2925, %v2681
        %v2959 = vsel %vm1681, %v2927, %v2683
        %v2961 = vsel %vm1681, %v2929, %v2685
        %v2963 = vsel %vm1681, %v2931, %v2687
        %v2965 = vsel %vm1681, %v2933, %v2689
        %v2967 = vsel %vm1681, %v2935, %v2691
        %v2969 = vsel %vm1681, %v2937, %v2693
        %v2971 = vsel %vm1681, %v2939, %v2695
        %v2973 = vsel %vm1714, %v2941, %v2698
        %v2975 = vsel %vm1714, %v2943, %v2700
        %v2977 = vsel %vm1714, %v2945, %v2702
        %v2979 = vsel %vm1714, %v2947, %v2704
        %v2981 = vsel %vm1714, %v2949, %v2706
        %v2983 = vsel %vm1714, %v2951, %v2708
        %v2985 = vsel %vm1714, %v2953, %v2710
        %v2987 = vsel %vm1714, %v2955, %v2712
        %v2989 = vsel %vm1714, %v2957, %v2714
        %v2991 = vsel %vm1714, %v2959, %v2716
        %v2993 = vsel %vm1714, %v2961, %v2718
        %v2995 = vsel %vm1714, %v2963, %v2720
        %v2997 = vsel %vm1714, %v2965, %v2722
        %v2999 = vsel %vm1714, %v2967, %v2724
        %v3001 = vsel %vm1714, %v2969, %v2726
        %v3003 = vsel %vm1714, %v2971, %v2728
        %v3005 = vsel %vm1747, %v2973, %v2731
        %v3007 = vsel %vm1747, %v2975, %v2733
        %v3009 = vsel %vm1747, %v2977, %v2735
        %v3011 = vsel %vm1747, %v2979, %v2737
        %v3013 = vsel %vm1747, %v2981, %v2739
        %v3015 = vsel %vm1747, %v2983, %v2741
        %v3017 = vsel %vm1747, %v2985, %v2743
        %v3019 = vsel %vm1747, %v2987, %v2745
        %v3021 = vsel %vm1747, %v2989, %v2747
        %v3023 = vsel %vm1747, %v2991, %v2749
        %v3025 = vsel %vm1747, %v2993, %v2751
        %v3027 = vsel %vm1747, %v2995, %v2753
        %v3029 = vsel %vm1747, %v2997, %v2755
        %v3031 = vsel %vm1747, %v2999, %v2757
        %v3033 = vsel %vm1747, %v3001, %v2759
        %v3035 = vsel %vm1747, %v3003, %v2761
        %v3037 = vsel %vm1780, %v3005, %v2764
        %v3039 = vsel %vm1780, %v3007, %v2766
        %v3041 = vsel %vm1780, %v3009, %v2768
        %v3043 = vsel %vm1780, %v3011, %v2770
        %v3045 = vsel %vm1780, %v3013, %v2772
        %v3047 = vsel %vm1780, %v3015, %v2774
        %v3049 = vsel %vm1780, %v3017, %v2776
        %v3051 = vsel %vm1780, %v3019, %v2778
        %v3053 = vsel %vm1780, %v3021, %v2780
        %v3055 = vsel %vm1780, %v3023, %v2782
        %v3057 = vsel %vm1780, %v3025, %v2784
        %v3059 = vsel %vm1780, %v3027, %v2786
        %v3061 = vsel %vm1780, %v3029, %v2788
        %v3063 = vsel %vm1780, %v3031, %v2790
        %v3065 = vsel %vm1780, %v3033, %v2792
        %v3067 = vsel %vm1780, %v3035, %v2794
        %v3069 = vsel %vm1813, %v3037, %v2797
        %v3071 = vsel %vm1813, %v3039, %v2799
        %v3073 = vsel %vm1813, %v3041, %v2801
        %v3075 = vsel %vm1813, %v3043, %v2803
        %v3077 = vsel %vm1813, %v3045, %v2805
        %v3079 = vsel %vm1813, %v3047, %v2807
        %v3081 = vsel %vm1813, %v3049, %v2809
        %v3083 = vsel %vm1813, %v3051, %v2811
        %v3085 = vsel %vm1813, %v3053, %v2813
        %v3087 = vsel %vm1813, %v3055, %v2815
        %v3089 = vsel %vm1813, %v3057, %v2817
        %v3091 = vsel %vm1813, %v3059, %v2819
        %v3093 = vsel %vm1813, %v3061, %v2821
        %v3095 = vsel %vm1813, %v3063, %v2823
        %v3097 = vsel %vm1813, %v3065, %v2825
        %v3099 = vsel %vm1813, %v3067, %v2827
        %v3100 = vld [vmem:[%s7] sm:$0xf]
        %v3101 = vld [vmem:[%s7 + $0x4] sm:$0xf]
        %v3102 = vld [vmem:[%s7 + $0x8] sm:$0xf]
        %v3103 = vld [vmem:[%s7 + $0xc] sm:$0xf]
        %v3104 = vld [vmem:[%s7 + $0x10] sm:$0xf]
        %v3105 = vld [vmem:[%s7 + $0x14] sm:$0xf]
        %v3106 = vld [vmem:[%s7 + $0x18] sm:$0xf]
        %v3107 = vld [vmem:[%s7 + $0x1c] sm:$0xf]
        %v3108 = vld [vmem:[%s7 + $0x20] sm:$0xf]
        %v3118 = vunpack.c.l.b16 %v3100
        %v3119 = vunpack.c.l.b16 %v3101
        %v3120 = vunpack.c.l.b16 %v3102
        %v3121 = vunpack.c.l.b16 %v3103
        %v3122 = vunpack.c.l.b16 %v3104
        %v3123 = vunpack.c.l.b16 %v3105
        %v3124 = vunpack.c.l.b16 %v3106
        %v3125 = vunpack.c.l.b16 %v3107
        %v3126 = vunpack.c.l.b16 %v3108
        %v3127 = vpack.c.b16 %v3119, %v3118
        %v3128 = vpack.c.b16 %v3121, %v3120
        %v3129 = vpack.c.b16 %v3123, %v3122
        %v3130 = vpack.c.b16 %v3125, %v3124
        %v3131 = vpack.c.b16 %v3126, %v3126
        %v3136 = vsel %vm1882, %v3069, 0
        %v3138 = vsel %vm1882, %v3071, 0
        %v3140 = vsel %vm1882, %v3073, 0
        %v3142 = vsel %vm1882, %v3075, 0
        %v3144 = vsel %vm1882, %v3077, 0
        %v3146 = vsel %vm1882, %v3079, 0
        %v3148 = vsel %vm1882, %v3081, 0
        %v3150 = vsel %vm1882, %v3083, 0
        %v3152 = vsel %vm1882, %v3085, 0
        %v3154 = vsel %vm1882, %v3087, 0
        %v3156 = vsel %vm1882, %v3089, 0
        %v3158 = vsel %vm1882, %v3091, 0
        %v3160 = vsel %vm1882, %v3093, 0
        %v3162 = vsel %vm1882, %v3095, 0
        %v3164 = vsel %vm1882, %v3097, 0
        %v3166 = vsel %vm1882, %v3099, 0
        %v3169 = vsel %vm619, %v3131, 0
        %3171 = vmatprep.subr.bf16.mxu0 0
        %3172 = vmatpush1.bf16.msra.mxu0 %v3127
        %3173 = vmatprep.subr.bf16.mxu0 0
        %3174 = vmatpush1.bf16.msra.mxu0 %v3128
        %3175 = vmatprep.subr.bf16.mxu0 0
        %3176 = vmatpush1.bf16.msra.mxu0 %v3129
        %3177 = vmatprep.subr.bf16.mxu0 0
        %3178 = vmatpush1.bf16.msra.mxu0 %v3130
        %3179 = vmatprep.subr.bf16.mxu0 0
        %3180 = vmatpush1.bf16.msra.mxu0 %v3169
        %3181 = vmatprep.subr.bf16.mxu0 0
        %3182 = vmatpush1.bf16.msra.mxu0 0
        %3183 = vmatprep.subr.bf16.mxu0 0
        %3184 = vmatpush1.bf16.msra.mxu0 0
        %3185 = vmatprep.subr.bf16.mxu0 0
        %3186 = vmatpush1.bf16.msra.mxu0 0
        %3187 = vmatprep.subr.bf16.mxu0 0
        %3188 = vmatpush1.bf16.msra.mxu0 0
        %3189 = vmatprep.subr.bf16.mxu0 0
        %3190 = vmatpush1.bf16.msra.mxu0 0
        %3191 = vmatprep.subr.bf16.mxu0 0
        %3192 = vmatpush1.bf16.msra.mxu0 0
        %3193 = vmatprep.subr.bf16.mxu0 0
        %3194 = vmatpush1.bf16.msra.mxu0 0
        %3195 = vmatprep.subr.bf16.mxu0 0
        %3196 = vmatpush1.bf16.msra.mxu0 0
        %3197 = vmatprep.subr.bf16.mxu0 0
        %3198 = vmatpush1.bf16.msra.mxu0 0
        %3199 = vmatprep.subr.bf16.mxu0 0
        %3200 = vmatpush1.bf16.msra.mxu0 0
        %3201 = vmatprep.subr.bf16.mxu0 0
        %3202 = vmatpush1.bf16.msra.mxu0 0
        %3203 = vmatprep.mubr.bf16.mxu0 0
        %3204 = vmatmul.mubr.bf16.gmra.mrb[0].mxu0 %v3136
        %v3205 = vpop.f32.mrb[0].mxu0
        %v3206 = vadd.f32 0.0, %v3205
        %v3207 = vpop.f32.mrb[0].mxu0
        %v3208 = vpop.f32.mrb[0].mxu0
        %v3209 = vadd.f32 0.0, %v3208
        %v3210 = vpop.f32.mrb[0].mxu0
        %3211 = vmatprep.mubr.bf16.mxu0 0
        %3212 = vmatmul.mubr.bf16.gmra.mrb[0].mxu0 %v3138
        %v3213 = vpop.f32.mrb[0].mxu0
        %v3214 = vadd.f32 0.0, %v3213
        %v3215 = vpop.f32.mrb[0].mxu0
        %v3216 = vpop.f32.mrb[0].mxu0
        %v3217 = vadd.f32 0.0, %v3216
        %v3218 = vpop.f32.mrb[0].mxu0
        %3219 = vmatprep.mubr.bf16.mxu0 0
        %3220 = vmatmul.mubr.bf16.gmra.mrb[0].mxu0 %v3140
        %v3221 = vpop.f32.mrb[0].mxu0
        %v3222 = vadd.f32 0.0, %v3221
        %v3223 = vpop.f32.mrb[0].mxu0
        %v3224 = vpop.f32.mrb[0].mxu0
        %v3225 = vadd.f32 0.0, %v3224
        %v3226 = vpop.f32.mrb[0].mxu0
        %3227 = vmatprep.mubr.bf16.mxu0 0
        %3228 = vmatmul.mubr.bf16.gmra.mrb[0].mxu0 %v3142
        %v3229 = vpop.f32.mrb[0].mxu0
        %v3230 = vadd.f32 0.0, %v3229
        %v3231 = vpop.f32.mrb[0].mxu0
        %v3232 = vpop.f32.mrb[0].mxu0
        %v3233 = vadd.f32 0.0, %v3232
        %v3234 = vpop.f32.mrb[0].mxu0
        %3235 = vmatprep.mubr.bf16.mxu0 0
        %3236 = vmatmul.mubr.bf16.gmra.mrb[0].mxu0 %v3144
        %v3237 = vpop.f32.mrb[0].mxu0
        %v3238 = vadd.f32 0.0, %v3237
        %v3239 = vpop.f32.mrb[0].mxu0
        %v3240 = vpop.f32.mrb[0].mxu0
        %v3241 = vadd.f32 0.0, %v3240
        %v3242 = vpop.f32.mrb[0].mxu0
        %3243 = vmatprep.mubr.bf16.mxu0 0
        %3244 = vmatmul.mubr.bf16.gmra.mrb[0].mxu0 %v3146
        %v3245 = vpop.f32.mrb[0].mxu0
        %v3246 = vadd.f32 0.0, %v3245
        %v3247 = vpop.f32.mrb[0].mxu0
        %v3248 = vpop.f32.mrb[0].mxu0
        %v3249 = vadd.f32 0.0, %v3248
        %v3250 = vpop.f32.mrb[0].mxu0
        %3251 = vmatprep.mubr.bf16.mxu0 0
        %3252 = vmatmul.mubr.bf16.gmra.mrb[0].mxu0 %v3148
        %v3253 = vpop.f32.mrb[0].mxu0
        %v3254 = vadd.f32 0.0, %v3253
        %v3255 = vpop.f32.mrb[0].mxu0
        %v3256 = vpop.f32.mrb[0].mxu0
        %v3257 = vadd.f32 0.0, %v3256
        %v3258 = vpop.f32.mrb[0].mxu0
        %3259 = vmatprep.mubr.bf16.mxu0 0
        %3260 = vmatmul.mubr.bf16.gmra.mrb[0].mxu0 %v3150
        %v3261 = vpop.f32.mrb[0].mxu0
        %v3262 = vadd.f32 0.0, %v3261
        %v3263 = vpop.f32.mrb[0].mxu0
        %v3264 = vpop.f32.mrb[0].mxu0
        %v3265 = vadd.f32 0.0, %v3264
        %v3266 = vpop.f32.mrb[0].mxu0
        %3267 = vmatprep.mubr.bf16.mxu0 0
        %3268 = vmatmul.mubr.bf16.gmra.mrb[0].mxu0 %v3152
        %v3269 = vpop.f32.mrb[0].mxu0
        %v3270 = vadd.f32 0.0, %v3269
        %v3271 = vpop.f32.mrb[0].mxu0
        %v3272 = vpop.f32.mrb[0].mxu0
        %v3273 = vadd.f32 0.0, %v3272
        %v3274 = vpop.f32.mrb[0].mxu0
        %3275 = vmatprep.mubr.bf16.mxu0 0
        %3276 = vmatmul.mubr.bf16.gmra.mrb[0].mxu0 %v3154
        %v3277 = vpop.f32.mrb[0].mxu0
        %v3278 = vadd.f32 0.0, %v3277
        %v3279 = vpop.f32.mrb[0].mxu0
        %v3280 = vpop.f32.mrb[0].mxu0
        %v3281 = vadd.f32 0.0, %v3280
        %v3282 = vpop.f32.mrb[0].mxu0
        %3283 = vmatprep.mubr.bf16.mxu0 0
        %3284 = vmatmul.mubr.bf16.gmra.mrb[0].mxu0 %v3156
        %v3285 = vpop.f32.mrb[0].mxu0
        %v3286 = vadd.f32 0.0, %v3285
        %v3287 = vpop.f32.mrb[0].mxu0
        %v3288 = vpop.f32.mrb[0].mxu0
        %v3289 = vadd.f32 0.0, %v3288
        %v3290 = vpop.f32.mrb[0].mxu0
        %3291 = vmatprep.mubr.bf16.mxu0 0
        %3292 = vmatmul.mubr.bf16.gmra.mrb[0].mxu0 %v3158
        %v3293 = vpop.f32.mrb[0].mxu0
        %v3294 = vadd.f32 0.0, %v3293
        %v3295 = vpop.f32.mrb[0].mxu0
        %v3296 = vpop.f32.mrb[0].mxu0
        %v3297 = vadd.f32 0.0, %v3296
        %v3298 = vpop.f32.mrb[0].mxu0
        %3299 = vmatprep.mubr.bf16.mxu0 0
        %3300 = vmatmul.mubr.bf16.gmra.mrb[0].mxu0 %v3160
        %v3301 = vpop.f32.mrb[0].mxu0
        %v3302 = vadd.f32 0.0, %v3301
        %v3303 = vpop.f32.mrb[0].mxu0
        %v3304 = vpop.f32.mrb[0].mxu0
        %v3305 = vadd.f32 0.0, %v3304
        %v3306 = vpop.f32.mrb[0].mxu0
        %3307 = vmatprep.mubr.bf16.mxu0 0
        %3308 = vmatmul.mubr.bf16.gmra.mrb[0].mxu0 %v3162
        %v3309 = vpop.f32.mrb[0].mxu0
        %v3310 = vadd.f32 0.0, %v3309
        %v3311 = vpop.f32.mrb[0].mxu0
        %v3312 = vpop.f32.mrb[0].mxu0
        %v3313 = vadd.f32 0.0, %v3312
        %v3314 = vpop.f32.mrb[0].mxu0
        %3315 = vmatprep.mubr.bf16.mxu0 0
        %3316 = vmatmul.mubr.bf16.gmra.mrb[0].mxu0 %v3164
        %v3317 = vpop.f32.mrb[0].mxu0
        %v3318 = vadd.f32 0.0, %v3317
        %v3319 = vpop.f32.mrb[0].mxu0
        %v3320 = vpop.f32.mrb[0].mxu0
        %v3321 = vadd.f32 0.0, %v3320
        %v3322 = vpop.f32.mrb[0].mxu0
        %3323 = vmatprep.mubr.bf16.mxu0 0
        %3324 = vmatmul.mubr.bf16.gmra.mrb[0].mxu0 %v3166
        %v3325 = vpop.f32.mrb[0].mxu0
        %v3326 = vadd.f32 0.0, %v3325
        %v3327 = vpop.f32.mrb[0].mxu0
        %v3328 = vpop.f32.mrb[0].mxu0
        %v3329 = vadd.f32 0.0, %v3328
        %v3330 = vpop.f32.mrb[0].mxu0
        %3331 = vdwg.mxu0
        %v3332 = vld [vmem:[%s8] sm:$0x1]
        %v3334 = vlaneseq
        %v3335 = vshrl.u32 %v3334, 7
        %v3336 = vsub.s32 0, %v3335
        %v3337 = vrot.slane %v3332, %v3336
        %v3339 = vmul.f32 %v3206, %v3337
        %v3340 = vmul.f32 %v3209, %v3337
        %v3341 = vmul.f32 %v3214, %v3337
        %v3342 = vmul.f32 %v3217, %v3337
        %v3343 = vmul.f32 %v3222, %v3337
        %v3344 = vmul.f32 %v3225, %v3337
        %v3345 = vmul.f32 %v3230, %v3337
        %v3346 = vmul.f32 %v3233, %v3337
        %v3347 = vmul.f32 %v3238, %v3337
        %v3348 = vmul.f32 %v3241, %v3337
        %v3349 = vmul.f32 %v3246, %v3337
        %v3350 = vmul.f32 %v3249, %v3337
        %v3351 = vmul.f32 %v3254, %v3337
        %v3352 = vmul.f32 %v3257, %v3337
        %v3353 = vmul.f32 %v3262, %v3337
        %v3354 = vmul.f32 %v3265, %v3337
        %v3355 = vmul.f32 %v3270, %v3337
        %v3356 = vmul.f32 %v3273, %v3337
        %v3357 = vmul.f32 %v3278, %v3337
        %v3358 = vmul.f32 %v3281, %v3337
        %v3359 = vmul.f32 %v3286, %v3337
        %v3360 = vmul.f32 %v3289, %v3337
        %v3361 = vmul.f32 %v3294, %v3337
        %v3362 = vmul.f32 %v3297, %v3337
        %v3363 = vmul.f32 %v3302, %v3337
        %v3364 = vmul.f32 %v3305, %v3337
        %v3365 = vmul.f32 %v3310, %v3337
        %v3366 = vmul.f32 %v3313, %v3337
        %v3367 = vmul.f32 %v3318, %v3337
        %v3368 = vmul.f32 %v3321, %v3337
        %v3369 = vmul.f32 %v3326, %v3337
        %v3370 = vmul.f32 %v3329, %v3337
        %v3371 = vld [vmem:[%s9] sm:$0x1]
        %v3373 = vlaneseq
        %v3374 = vshrl.u32 %v3373, 7
        %v3375 = vsub.s32 0, %v3374
        %v3376 = vrot.slane %v3371, %v3375
        %v3378 = vadd.f32 %v3339, %v3376
        %v3379 = vadd.f32 %v3340, %v3376
        %v3380 = vadd.f32 %v3341, %v3376
        %v3381 = vadd.f32 %v3342, %v3376
        %v3382 = vadd.f32 %v3343, %v3376
        %v3383 = vadd.f32 %v3344, %v3376
        %v3384 = vadd.f32 %v3345, %v3376
        %v3385 = vadd.f32 %v3346, %v3376
        %v3386 = vadd.f32 %v3347, %v3376
        %v3387 = vadd.f32 %v3348, %v3376
        %v3388 = vadd.f32 %v3349, %v3376
        %v3389 = vadd.f32 %v3350, %v3376
        %v3390 = vadd.f32 %v3351, %v3376
        %v3391 = vadd.f32 %v3352, %v3376
        %v3392 = vadd.f32 %v3353, %v3376
        %v3393 = vadd.f32 %v3354, %v3376
        %v3394 = vadd.f32 %v3355, %v3376
        %v3395 = vadd.f32 %v3356, %v3376
        %v3396 = vadd.f32 %v3357, %v3376
        %v3397 = vadd.f32 %v3358, %v3376
        %v3398 = vadd.f32 %v3359, %v3376
        %v3399 = vadd.f32 %v3360, %v3376
        %v3400 = vadd.f32 %v3361, %v3376
        %v3401 = vadd.f32 %v3362, %v3376
        %v3402 = vadd.f32 %v3363, %v3376
        %v3403 = vadd.f32 %v3364, %v3376
        %v3404 = vadd.f32 %v3365, %v3376
        %v3405 = vadd.f32 %v3366, %v3376
        %v3406 = vadd.f32 %v3367, %v3376
        %v3407 = vadd.f32 %v3368, %v3376
        %v3408 = vadd.f32 %v3369, %v3376
        %v3409 = vadd.f32 %v3370, %v3376
        %v3410 = vmax.f32 %v3378, 0.0
        %v3411 = vmax.f32 %v3379, 0.0
        %v3412 = vmax.f32 %v3380, 0.0
        %v3413 = vmax.f32 %v3381, 0.0
        %v3414 = vmax.f32 %v3382, 0.0
        %v3415 = vmax.f32 %v3383, 0.0
        %v3416 = vmax.f32 %v3384, 0.0
        %v3417 = vmax.f32 %v3385, 0.0
        %v3418 = vmax.f32 %v3386, 0.0
        %v3419 = vmax.f32 %v3387, 0.0
        %v3420 = vmax.f32 %v3388, 0.0
        %v3421 = vmax.f32 %v3389, 0.0
        %v3422 = vmax.f32 %v3390, 0.0
        %v3423 = vmax.f32 %v3391, 0.0
        %v3424 = vmax.f32 %v3392, 0.0
        %v3425 = vmax.f32 %v3393, 0.0
        %v3426 = vmax.f32 %v3394, 0.0
        %v3427 = vmax.f32 %v3395, 0.0
        %v3428 = vmax.f32 %v3396, 0.0
        %v3429 = vmax.f32 %v3397, 0.0
        %v3430 = vmax.f32 %v3398, 0.0
        %v3431 = vmax.f32 %v3399, 0.0
        %v3432 = vmax.f32 %v3400, 0.0
        %v3433 = vmax.f32 %v3401, 0.0
        %v3434 = vmax.f32 %v3402, 0.0
        %v3435 = vmax.f32 %v3403, 0.0
        %v3436 = vmax.f32 %v3404, 0.0
        %v3437 = vmax.f32 %v3405, 0.0
        %v3438 = vmax.f32 %v3406, 0.0
        %v3439 = vmax.f32 %v3407, 0.0
        %v3440 = vmax.f32 %v3408, 0.0
        %v3441 = vmax.f32 %v3409, 0.0
        %3442 = vst.msk [vmem:[#allocation4] sm:$0xff] %vm570, 0.0
        %3443 = vst.msk [vmem:[#allocation4 + $0x8] sm:$0xff] %vm570, 0.0
        %3444 = vst.msk [vmem:[#allocation4 + $0x10] sm:$0x3] %vm896, 0.0
        %s3445 = scalar_lea.vmem [#allocation4], 408
        %3446 = vst.msk [vmem:[%s3445] sm:$0xff] %vm570, 0.0
        %3447 = vst.msk [vmem:[%s3445 + $0x8] sm:$0xff] %vm570, 0.0
        %3448 = vst.msk [vmem:[%s3445 + $0x10] sm:$0x3] %vm896, 0.0
        %s3449 = scalar_lea.vmem [#allocation4], 24
        %3450 = vst.msk [vmem:[%s3449] sm:$0x1] %vm903, 0.0
        %3451 = vst.msk [vmem:[%s3449 + $0x18] sm:$0x1] %vm903, 0.0
        %3452 = vst.msk [vmem:[%s3449 + $0x30] sm:$0x1] %vm903, 0.0
        %3453 = vst.msk [vmem:[%s3449 + $0x48] sm:$0x1] %vm903, 0.0
        %3454 = vst.msk [vmem:[%s3449 + $0x60] sm:$0x1] %vm903, 0.0
        %3455 = vst.msk [vmem:[%s3449 + $0x78] sm:$0x1] %vm903, 0.0
        %3456 = vst.msk [vmem:[%s3449 + $0x90] sm:$0x1] %vm903, 0.0
        %3457 = vst.msk [vmem:[%s3449 + $0xa8] sm:$0x1] %vm903, 0.0
        %3458 = vst.msk [vmem:[%s3449 + $0xc0] sm:$0x1] %vm903, 0.0
        %3459 = vst.msk [vmem:[%s3449 + $0xd8] sm:$0x1] %vm903, 0.0
        %3460 = vst.msk [vmem:[%s3449 + $0xf0] sm:$0x1] %vm903, 0.0
        %3461 = vst.msk [vmem:[%s3449 + $0x108] sm:$0x1] %vm903, 0.0
        %3462 = vst.msk [vmem:[%s3449 + $0x120] sm:$0x1] %vm903, 0.0
        %3463 = vst.msk [vmem:[%s3449 + $0x138] sm:$0x1] %vm903, 0.0
        %3464 = vst.msk [vmem:[%s3449 + $0x150] sm:$0x1] %vm903, 0.0
        %3465 = vst.msk [vmem:[%s3449 + $0x168] sm:$0x1] %vm903, 0.0
        %3466 = vst.msk [vmem:[%s3449 + $0x11] sm:$0x1] %vm903, 0.0
        %3467 = vst.msk [vmem:[%s3449 + $0x29] sm:$0x1] %vm903, 0.0
        %3468 = vst.msk [vmem:[%s3449 + $0x41] sm:$0x1] %vm903, 0.0
        %3469 = vst.msk [vmem:[%s3449 + $0x59] sm:$0x1] %vm903, 0.0
        %3470 = vst.msk [vmem:[%s3449 + $0x71] sm:$0x1] %vm903, 0.0
        %3471 = vst.msk [vmem:[%s3449 + $0x89] sm:$0x1] %vm903, 0.0
        %3472 = vst.msk [vmem:[%s3449 + $0xa1] sm:$0x1] %vm903, 0.0
        %3473 = vst.msk [vmem:[%s3449 + $0xb9] sm:$0x1] %vm903, 0.0
        %3474 = vst.msk [vmem:[%s3449 + $0xd1] sm:$0x1] %vm903, 0.0
        %3475 = vst.msk [vmem:[%s3449 + $0xe9] sm:$0x1] %vm903, 0.0
        %3476 = vst.msk [vmem:[%s3449 + $0x101] sm:$0x1] %vm903, 0.0
        %3477 = vst.msk [vmem:[%s3449 + $0x119] sm:$0x1] %vm903, 0.0
        %3478 = vst.msk [vmem:[%s3449 + $0x131] sm:$0x1] %vm903, 0.0
        %3479 = vst.msk [vmem:[%s3449 + $0x149] sm:$0x1] %vm903, 0.0
        %3480 = vst.msk [vmem:[%s3449 + $0x161] sm:$0x1] %vm903, 0.0
        %3481 = vst.msk [vmem:[%s3449 + $0x179] sm:$0x1] %vm903, 0.0
        %3482 = vst.msk [vmem:[%s3449 + $0x1] sm:$0xff] %vm570, %v3410
        %3483 = vst.msk [vmem:[%s3449 + $0x9] sm:$0xff] %vm570, %v3411
        %3484 = vst.msk [vmem:[%s3449 + $0x19] sm:$0xff] %vm570, %v3412
        %3485 = vst.msk [vmem:[%s3449 + $0x21] sm:$0xff] %vm570, %v3413
        %3486 = vst.msk [vmem:[%s3449 + $0x31] sm:$0xff] %vm570, %v3414
        %3487 = vst.msk [vmem:[%s3449 + $0x39] sm:$0xff] %vm570, %v3415
        %3488 = vst.msk [vmem:[%s3449 + $0x49] sm:$0xff] %vm570, %v3416
        %3489 = vst.msk [vmem:[%s3449 + $0x51] sm:$0xff] %vm570, %v3417
        %3490 = vst.msk [vmem:[%s3449 + $0x61] sm:$0xff] %vm570, %v3418
        %3491 = vst.msk [vmem:[%s3449 + $0x69] sm:$0xff] %vm570, %v3419
        %3492 = vst.msk [vmem:[%s3449 + $0x79] sm:$0xff] %vm570, %v3420
        %3493 = vst.msk [vmem:[%s3449 + $0x81] sm:$0xff] %vm570, %v3421
        %3494 = vst.msk [vmem:[%s3449 + $0x91] sm:$0xff] %vm570, %v3422
        %3495 = vst.msk [vmem:[%s3449 + $0x99] sm:$0xff] %vm570, %v3423
        %3496 = vst.msk [vmem:[%s3449 + $0xa9] sm:$0xff] %vm570, %v3424
        %3497 = vst.msk [vmem:[%s3449 + $0xb1] sm:$0xff] %vm570, %v3425
        %3498 = vst.msk [vmem:[%s3449 + $0xc1] sm:$0xff] %vm570, %v3426
        %3499 = vst.msk [vmem:[%s3449 + $0xc9] sm:$0xff] %vm570, %v3427
        %3500 = vst.msk [vmem:[%s3449 + $0xd9] sm:$0xff] %vm570, %v3428
        %3501 = vst.msk [vmem:[%s3449 + $0xe1] sm:$0xff] %vm570, %v3429
        %3502 = vst.msk [vmem:[%s3449 + $0xf1] sm:$0xff] %vm570, %v3430
        %3503 = vst.msk [vmem:[%s3449 + $0xf9] sm:$0xff] %vm570, %v3431
        %3504 = vst.msk [vmem:[%s3449 + $0x109] sm:$0xff] %vm570, %v3432
        %3505 = vst.msk [vmem:[%s3449 + $0x111] sm:$0xff] %vm570, %v3433
        %3506 = vst.msk [vmem:[%s3449 + $0x121] sm:$0xff] %vm570, %v3434
        %3507 = vst.msk [vmem:[%s3449 + $0x129] sm:$0xff] %vm570, %v3435
        %3508 = vst.msk [vmem:[%s3449 + $0x139] sm:$0xff] %vm570, %v3436
        %3509 = vst.msk [vmem:[%s3449 + $0x141] sm:$0xff] %vm570, %v3437
        %3510 = vst.msk [vmem:[%s3449 + $0x151] sm:$0xff] %vm570, %v3438
        %3511 = vst.msk [vmem:[%s3449 + $0x159] sm:$0xff] %vm570, %v3439
        %3512 = vst.msk [vmem:[%s3449 + $0x169] sm:$0xff] %vm570, %v3440
        %3513 = vst.msk [vmem:[%s3449 + $0x171] sm:$0xff] %vm570, %v3441
        %v3514 = vld [vmem:[#allocation4] sm:$0xff]
        %v3515 = vld [vmem:[#allocation4 + $0x8] sm:$0xff]
        %v3516 = vld [vmem:[#allocation4 + $0x18] sm:$0xff]
        %v3517 = vld [vmem:[#allocation4 + $0x20] sm:$0xff]
        %v3518 = vld [vmem:[#allocation4 + $0x30] sm:$0xff]
        %v3519 = vld [vmem:[#allocation4 + $0x38] sm:$0xff]
        %v3520 = vld [vmem:[#allocation4 + $0x48] sm:$0xff]
        %v3521 = vld [vmem:[#allocation4 + $0x50] sm:$0xff]
        %v3522 = vld [vmem:[#allocation4 + $0x60] sm:$0xff]
        %v3523 = vld [vmem:[#allocation4 + $0x68] sm:$0xff]
        %v3524 = vld [vmem:[#allocation4 + $0x78] sm:$0xff]
        %v3525 = vld [vmem:[#allocation4 + $0x80] sm:$0xff]
        %v3526 = vld [vmem:[#allocation4 + $0x90] sm:$0xff]
        %v3527 = vld [vmem:[#allocation4 + $0x98] sm:$0xff]
        %v3528 = vld [vmem:[#allocation4 + $0xa8] sm:$0xff]
        %v3529 = vld [vmem:[#allocation4 + $0xb0] sm:$0xff]
        %v3530 = vld [vmem:[#allocation4 + $0xc0] sm:$0xff]
        %v3531 = vld [vmem:[#allocation4 + $0xc8] sm:$0xff]
        %v3532 = vld [vmem:[#allocation4 + $0xd8] sm:$0xff]
        %v3533 = vld [vmem:[#allocation4 + $0xe0] sm:$0xff]
        %v3534 = vld [vmem:[#allocation4 + $0xf0] sm:$0xff]
        %v3535 = vld [vmem:[#allocation4 + $0xf8] sm:$0xff]
        %v3536 = vld [vmem:[#allocation4 + $0x108] sm:$0xff]
        %v3537 = vld [vmem:[#allocation4 + $0x110] sm:$0xff]
        %v3538 = vld [vmem:[#allocation4 + $0x120] sm:$0xff]
        %v3539 = vld [vmem:[#allocation4 + $0x128] sm:$0xff]
        %v3540 = vld [vmem:[#allocation4 + $0x138] sm:$0xff]
        %v3541 = vld [vmem:[#allocation4 + $0x140] sm:$0xff]
        %v3542 = vld [vmem:[#allocation4 + $0x150] sm:$0xff]
        %v3543 = vld [vmem:[#allocation4 + $0x158] sm:$0xff]
        %v3544 = vld [vmem:[#allocation4 + $0x168] sm:$0xff]
        %v3545 = vld [vmem:[#allocation4 + $0x170] sm:$0xff]
        %v3546 = vld [vmem:[#allocation4 + $0x180] sm:$0xff]
        %v3547 = vld [vmem:[#allocation4 + $0x188] sm:$0xff]
        %v3548 = vld [vmem:[#allocation4 + $0x198] sm:$0xff]
        %v3549 = vld [vmem:[#allocation4 + $0x1a0] sm:$0xff]
        %v3550 = vpack.c.bf16 %v3515, %v3514
        %v3551 = vpack.c.bf16 %v3517, %v3516
        %v3552 = vpack.c.bf16 %v3519, %v3518
        %v3553 = vpack.c.bf16 %v3521, %v3520
        %v3554 = vpack.c.bf16 %v3523, %v3522
        %v3555 = vpack.c.bf16 %v3525, %v3524
        %v3556 = vpack.c.bf16 %v3527, %v3526
        %v3557 = vpack.c.bf16 %v3529, %v3528
        %v3558 = vpack.c.bf16 %v3531, %v3530
        %v3559 = vpack.c.bf16 %v3533, %v3532
        %v3560 = vpack.c.bf16 %v3535, %v3534
        %v3561 = vpack.c.bf16 %v3537, %v3536
        %v3562 = vpack.c.bf16 %v3539, %v3538
        %v3563 = vpack.c.bf16 %v3541, %v3540
        %v3564 = vpack.c.bf16 %v3543, %v3542
        %v3565 = vpack.c.bf16 %v3545, %v3544
        %v3566 = vpack.c.bf16 %v3547, %v3546
        %v3567 = vpack.c.bf16 %v3549, %v3548
        %v3568 = vld [vmem:[#allocation4 + $0x1] sm:$0xff]
        %v3569 = vld [vmem:[#allocation4 + $0x9] sm:$0xff]
        %v3570 = vld [vmem:[#allocation4 + $0x19] sm:$0xff]
        %v3571 = vld [vmem:[#allocation4 + $0x21] sm:$0xff]
        %v3572 = vld [vmem:[#allocation4 + $0x31] sm:$0xff]
        %v3573 = vld [vmem:[#allocation4 + $0x39] sm:$0xff]
        %v3574 = vld [vmem:[#allocation4 + $0x49] sm:$0xff]
        %v3575 = vld [vmem:[#allocation4 + $0x51] sm:$0xff]
        %v3576 = vld [vmem:[#allocation4 + $0x61] sm:$0xff]
        %v3577 = vld [vmem:[#allocation4 + $0x69] sm:$0xff]
        %v3578 = vld [vmem:[#allocation4 + $0x79] sm:$0xff]
        %v3579 = vld [vmem:[#allocation4 + $0x81] sm:$0xff]
        %v3580 = vld [vmem:[#allocation4 + $0x91] sm:$0xff]
        %v3581 = vld [vmem:[#allocation4 + $0x99] sm:$0xff]
        %v3582 = vld [vmem:[#allocation4 + $0xa9] sm:$0xff]
        %v3583 = vld [vmem:[#allocation4 + $0xb1] sm:$0xff]
        %v3584 = vld [vmem:[#allocation4 + $0xc1] sm:$0xff]
        %v3585 = vld [vmem:[#allocation4 + $0xc9] sm:$0xff]
        %v3586 = vld [vmem:[#allocation4 + $0xd9] sm:$0xff]
        %v3587 = vld [vmem:[#allocation4 + $0xe1] sm:$0xff]
        %v3588 = vld [vmem:[#allocation4 + $0xf1] sm:$0xff]
        %v3589 = vld [vmem:[#allocation4 + $0xf9] sm:$0xff]
        %v3590 = vld [vmem:[#allocation4 + $0x109] sm:$0xff]
        %v3591 = vld [vmem:[#allocation4 + $0x111] sm:$0xff]
        %v3592 = vld [vmem:[#allocation4 + $0x121] sm:$0xff]
        %v3593 = vld [vmem:[#allocation4 + $0x129] sm:$0xff]
        %v3594 = vld [vmem:[#allocation4 + $0x139] sm:$0xff]
        %v3595 = vld [vmem:[#allocation4 + $0x141] sm:$0xff]
        %v3596 = vld [vmem:[#allocation4 + $0x151] sm:$0xff]
        %v3597 = vld [vmem:[#allocation4 + $0x159] sm:$0xff]
        %v3598 = vld [vmem:[#allocation4 + $0x169] sm:$0xff]
        %v3599 = vld [vmem:[#allocation4 + $0x171] sm:$0xff]
        %v3600 = vld [vmem:[#allocation4 + $0x181] sm:$0xff]
        %v3601 = vld [vmem:[#allocation4 + $0x189] sm:$0xff]
        %v3602 = vld [vmem:[#allocation4 + $0x199] sm:$0xff]
        %v3603 = vld [vmem:[#allocation4 + $0x1a1] sm:$0xff]
        %v3604 = vpack.c.bf16 %v3569, %v3568
        %v3605 = vpack.c.bf16 %v3571, %v3570
        %v3606 = vpack.c.bf16 %v3573, %v3572
        %v3607 = vpack.c.bf16 %v3575, %v3574
        %v3608 = vpack.c.bf16 %v3577, %v3576
        %v3609 = vpack.c.bf16 %v3579, %v3578
        %v3610 = vpack.c.bf16 %v3581, %v3580
        %v3611 = vpack.c.bf16 %v3583, %v3582
        %v3612 = vpack.c.bf16 %v3585, %v3584
        %v3613 = vpack.c.bf16 %v3587, %v3586
        %v3614 = vpack.c.bf16 %v3589, %v3588
        %v3615 = vpack.c.bf16 %v3591, %v3590
        %v3616 = vpack.c.bf16 %v3593, %v3592
        %v3617 = vpack.c.bf16 %v3595, %v3594
        %v3618 = vpack.c.bf16 %v3597, %v3596
        %v3619 = vpack.c.bf16 %v3599, %v3598
        %v3620 = vpack.c.bf16 %v3601, %v3600
        %v3621 = vpack.c.bf16 %v3603, %v3602
        %v3622 = vld [vmem:[#allocation4 + $0x2] sm:$0xff]
        %v3623 = vld [vmem:[#allocation4 + $0xa] sm:$0xff]
        %v3624 = vld [vmem:[#allocation4 + $0x1a] sm:$0xff]
        %v3625 = vld [vmem:[#allocation4 + $0x22] sm:$0xff]
        %v3626 = vld [vmem:[#allocation4 + $0x32] sm:$0xff]
        %v3627 = vld [vmem:[#allocation4 + $0x3a] sm:$0xff]
        %v3628 = vld [vmem:[#allocation4 + $0x4a] sm:$0xff]
        %v3629 = vld [vmem:[#allocation4 + $0x52] sm:$0xff]
        %v3630 = vld [vmem:[#allocation4 + $0x62] sm:$0xff]
        %v3631 = vld [vmem:[#allocation4 + $0x6a] sm:$0xff]
        %v3632 = vld [vmem:[#allocation4 + $0x7a] sm:$0xff]
        %v3633 = vld [vmem:[#allocation4 + $0x82] sm:$0xff]
        %v3634 = vld [vmem:[#allocation4 + $0x92] sm:$0xff]
        %v3635 = vld [vmem:[#allocation4 + $0x9a] sm:$0xff]
        %v3636 = vld [vmem:[#allocation4 + $0xaa] sm:$0xff]
        %v3637 = vld [vmem:[#allocation4 + $0xb2] sm:$0xff]
        %v3638 = vld [vmem:[#allocation4 + $0xc2] sm:$0xff]
        %v3639 = vld [vmem:[#allocation4 + $0xca] sm:$0xff]
        %v3640 = vld [vmem:[#allocation4 + $0xda] sm:$0xff]
        %v3641 = vld [vmem:[#allocation4 + $0xe2] sm:$0xff]
        %v3642 = vld [vmem:[#allocation4 + $0xf2] sm:$0xff]
        %v3643 = vld [vmem:[#allocation4 + $0xfa] sm:$0xff]
        %v3644 = vld [vmem:[#allocation4 + $0x10a] sm:$0xff]
        %v3645 = vld [vmem:[#allocation4 + $0x112] sm:$0xff]
        %v3646 = vld [vmem:[#allocation4 + $0x122] sm:$0xff]
        %v3647 = vld [vmem:[#allocation4 + $0x12a] sm:$0xff]
        %v3648 = vld [vmem:[#allocation4 + $0x13a] sm:$0xff]
        %v3649 = vld [vmem:[#allocation4 + $0x142] sm:$0xff]
        %v3650 = vld [vmem:[#allocation4 + $0x152] sm:$0xff]
        %v3651 = vld [vmem:[#allocation4 + $0x15a] sm:$0xff]
        %v3652 = vld [vmem:[#allocation4 + $0x16a] sm:$0xff]
        %v3653 = vld [vmem:[#allocation4 + $0x172] sm:$0xff]
        %v3654 = vld [vmem:[#allocation4 + $0x182] sm:$0xff]
        %v3655 = vld [vmem:[#allocation4 + $0x18a] sm:$0xff]
        %v3656 = vld [vmem:[#allocation4 + $0x19a] sm:$0xff]
        %v3657 = vld [vmem:[#allocation4 + $0x1a2] sm:$0xff]
        %v3658 = vpack.c.bf16 %v3623, %v3622
        %v3659 = vpack.c.bf16 %v3625, %v3624
        %v3660 = vpack.c.bf16 %v3627, %v3626
        %v3661 = vpack.c.bf16 %v3629, %v3628
        %v3662 = vpack.c.bf16 %v3631, %v3630
        %v3663 = vpack.c.bf16 %v3633, %v3632
        %v3664 = vpack.c.bf16 %v3635, %v3634
        %v3665 = vpack.c.bf16 %v3637, %v3636
        %v3666 = vpack.c.bf16 %v3639, %v3638
        %v3667 = vpack.c.bf16 %v3641, %v3640
        %v3668 = vpack.c.bf16 %v3643, %v3642
        %v3669 = vpack.c.bf16 %v3645, %v3644
        %v3670 = vpack.c.bf16 %v3647, %v3646
        %v3671 = vpack.c.bf16 %v3649, %v3648
        %v3672 = vpack.c.bf16 %v3651, %v3650
        %v3673 = vpack.c.bf16 %v3653, %v3652
        %v3674 = vpack.c.bf16 %v3655, %v3654
        %v3675 = vpack.c.bf16 %v3657, %v3656
        %3692 = vrot.lane.b32.xlu0 %v3604, 8
        %v3693 = vpop.permute.xlu0 %3692
        %3694 = vrot.lane.b32.xlu0 %v3605, 8
        %v3695 = vpop.permute.xlu0 %3694
        %3696 = vrot.lane.b32.xlu0 %v3606, 8
        %v3697 = vpop.permute.xlu0 %3696
        %3698 = vrot.lane.b32.xlu0 %v3607, 8
        %v3699 = vpop.permute.xlu0 %3698
        %3700 = vrot.lane.b32.xlu0 %v3608, 8
        %v3701 = vpop.permute.xlu0 %3700
        %3702 = vrot.lane.b32.xlu0 %v3609, 8
        %v3703 = vpop.permute.xlu0 %3702
        %3704 = vrot.lane.b32.xlu0 %v3610, 8
        %v3705 = vpop.permute.xlu0 %3704
        %3706 = vrot.lane.b32.xlu0 %v3611, 8
        %v3707 = vpop.permute.xlu0 %3706
        %3708 = vrot.lane.b32.xlu0 %v3612, 8
        %v3709 = vpop.permute.xlu0 %3708
        %3710 = vrot.lane.b32.xlu0 %v3613, 8
        %v3711 = vpop.permute.xlu0 %3710
        %3712 = vrot.lane.b32.xlu0 %v3614, 8
        %v3713 = vpop.permute.xlu0 %3712
        %3714 = vrot.lane.b32.xlu0 %v3615, 8
        %v3715 = vpop.permute.xlu0 %3714
        %3716 = vrot.lane.b32.xlu0 %v3616, 8
        %v3717 = vpop.permute.xlu0 %3716
        %3718 = vrot.lane.b32.xlu0 %v3617, 8
        %v3719 = vpop.permute.xlu0 %3718
        %3720 = vrot.lane.b32.xlu0 %v3618, 8
        %v3721 = vpop.permute.xlu0 %3720
        %3722 = vrot.lane.b32.xlu0 %v3619, 8
        %v3723 = vpop.permute.xlu0 %3722
        %3740 = vrot.lane.b32.xlu0 %v3658, 16
        %v3741 = vpop.permute.xlu0 %3740
        %3742 = vrot.lane.b32.xlu0 %v3659, 16
        %v3743 = vpop.permute.xlu0 %3742
        %3744 = vrot.lane.b32.xlu0 %v3660, 16
        %v3745 = vpop.permute.xlu0 %3744
        %3746 = vrot.lane.b32.xlu0 %v3661, 16
        %v3747 = vpop.permute.xlu0 %3746
        %3748 = vrot.lane.b32.xlu0 %v3662, 16
        %v3749 = vpop.permute.xlu0 %3748
        %3750 = vrot.lane.b32.xlu0 %v3663, 16
        %v3751 = vpop.permute.xlu0 %3750
        %3752 = vrot.lane.b32.xlu0 %v3664, 16
        %v3753 = vpop.permute.xlu0 %3752
        %3754 = vrot.lane.b32.xlu0 %v3665, 16
        %v3755 = vpop.permute.xlu0 %3754
        %3756 = vrot.lane.b32.xlu0 %v3666, 16
        %v3757 = vpop.permute.xlu0 %3756
        %3758 = vrot.lane.b32.xlu0 %v3667, 16
        %v3759 = vpop.permute.xlu0 %3758
        %3760 = vrot.lane.b32.xlu0 %v3668, 16
        %v3761 = vpop.permute.xlu0 %3760
        %3762 = vrot.lane.b32.xlu0 %v3669, 16
        %v3763 = vpop.permute.xlu0 %3762
        %3764 = vrot.lane.b32.xlu0 %v3670, 16
        %v3765 = vpop.permute.xlu0 %3764
        %3766 = vrot.lane.b32.xlu0 %v3671, 16
        %v3767 = vpop.permute.xlu0 %3766
        %3768 = vrot.lane.b32.xlu0 %v3672, 16
        %v3769 = vpop.permute.xlu0 %3768
        %3770 = vrot.lane.b32.xlu0 %v3673, 16
        %v3771 = vpop.permute.xlu0 %3770
        %3788 = vrot.lane.b32.xlu0 %v3551, 24
        %v3789 = vpop.permute.xlu0 %3788
        %3790 = vrot.lane.b32.xlu0 %v3552, 24
        %v3791 = vpop.permute.xlu0 %3790
        %3792 = vrot.lane.b32.xlu0 %v3553, 24
        %v3793 = vpop.permute.xlu0 %3792
        %3794 = vrot.lane.b32.xlu0 %v3554, 24
        %v3795 = vpop.permute.xlu0 %3794
        %3796 = vrot.lane.b32.xlu0 %v3555, 24
        %v3797 = vpop.permute.xlu0 %3796
        %3798 = vrot.lane.b32.xlu0 %v3556, 24
        %v3799 = vpop.permute.xlu0 %3798
        %3800 = vrot.lane.b32.xlu0 %v3557, 24
        %v3801 = vpop.permute.xlu0 %3800
        %3802 = vrot.lane.b32.xlu0 %v3558, 24
        %v3803 = vpop.permute.xlu0 %3802
        %3804 = vrot.lane.b32.xlu0 %v3559, 24
        %v3805 = vpop.permute.xlu0 %3804
        %3806 = vrot.lane.b32.xlu0 %v3560, 24
        %v3807 = vpop.permute.xlu0 %3806
        %3808 = vrot.lane.b32.xlu0 %v3561, 24
        %v3809 = vpop.permute.xlu0 %3808
        %3810 = vrot.lane.b32.xlu0 %v3562, 24
        %v3811 = vpop.permute.xlu0 %3810
        %3812 = vrot.lane.b32.xlu0 %v3563, 24
        %v3813 = vpop.permute.xlu0 %3812
        %3814 = vrot.lane.b32.xlu0 %v3564, 24
        %v3815 = vpop.permute.xlu0 %3814
        %3816 = vrot.lane.b32.xlu0 %v3565, 24
        %v3817 = vpop.permute.xlu0 %3816
        %3818 = vrot.lane.b32.xlu0 %v3566, 24
        %v3819 = vpop.permute.xlu0 %3818
        %3821 = vrot.lane.b32.xlu0 %v3605, 32
        %v3822 = vpop.permute.xlu0 %3821
        %3823 = vrot.lane.b32.xlu0 %v3606, 32
        %v3824 = vpop.permute.xlu0 %3823
        %3825 = vrot.lane.b32.xlu0 %v3607, 32
        %v3826 = vpop.permute.xlu0 %3825
        %3827 = vrot.lane.b32.xlu0 %v3608, 32
        %v3828 = vpop.permute.xlu0 %3827
        %3829 = vrot.lane.b32.xlu0 %v3609, 32
        %v3830 = vpop.permute.xlu0 %3829
        %3831 = vrot.lane.b32.xlu0 %v3610, 32
        %v3832 = vpop.permute.xlu0 %3831
        %3833 = vrot.lane.b32.xlu0 %v3611, 32
        %v3834 = vpop.permute.xlu0 %3833
        %3835 = vrot.lane.b32.xlu0 %v3612, 32
        %v3836 = vpop.permute.xlu0 %3835
        %3837 = vrot.lane.b32.xlu0 %v3613, 32
        %v3838 = vpop.permute.xlu0 %3837
        %3839 = vrot.lane.b32.xlu0 %v3614, 32
        %v3840 = vpop.permute.xlu0 %3839
        %3841 = vrot.lane.b32.xlu0 %v3615, 32
        %v3842 = vpop.permute.xlu0 %3841
        %3843 = vrot.lane.b32.xlu0 %v3616, 32
        %v3844 = vpop.permute.xlu0 %3843
        %3845 = vrot.lane.b32.xlu0 %v3617, 32
        %v3846 = vpop.permute.xlu0 %3845
        %3847 = vrot.lane.b32.xlu0 %v3618, 32
        %v3848 = vpop.permute.xlu0 %3847
        %3849 = vrot.lane.b32.xlu0 %v3619, 32
        %v3850 = vpop.permute.xlu0 %3849
        %3851 = vrot.lane.b32.xlu0 %v3620, 32
        %v3852 = vpop.permute.xlu0 %3851
        %3854 = vrot.lane.b32.xlu0 %v3659, 40
        %v3855 = vpop.permute.xlu0 %3854
        %3856 = vrot.lane.b32.xlu0 %v3660, 40
        %v3857 = vpop.permute.xlu0 %3856
        %3858 = vrot.lane.b32.xlu0 %v3661, 40
        %v3859 = vpop.permute.xlu0 %3858
        %3860 = vrot.lane.b32.xlu0 %v3662, 40
        %v3861 = vpop.permute.xlu0 %3860
        %3862 = vrot.lane.b32.xlu0 %v3663, 40
        %v3863 = vpop.permute.xlu0 %3862
        %3864 = vrot.lane.b32.xlu0 %v3664, 40
        %v3865 = vpop.permute.xlu0 %3864
        %3866 = vrot.lane.b32.xlu0 %v3665, 40
        %v3867 = vpop.permute.xlu0 %3866
        %3868 = vrot.lane.b32.xlu0 %v3666, 40
        %v3869 = vpop.permute.xlu0 %3868
        %3870 = vrot.lane.b32.xlu0 %v3667, 40
        %v3871 = vpop.permute.xlu0 %3870
        %3872 = vrot.lane.b32.xlu0 %v3668, 40
        %v3873 = vpop.permute.xlu0 %3872
        %3874 = vrot.lane.b32.xlu0 %v3669, 40
        %v3875 = vpop.permute.xlu0 %3874
        %3876 = vrot.lane.b32.xlu0 %v3670, 40
        %v3877 = vpop.permute.xlu0 %3876
        %3878 = vrot.lane.b32.xlu0 %v3671, 40
        %v3879 = vpop.permute.xlu0 %3878
        %3880 = vrot.lane.b32.xlu0 %v3672, 40
        %v3881 = vpop.permute.xlu0 %3880
        %3882 = vrot.lane.b32.xlu0 %v3673, 40
        %v3883 = vpop.permute.xlu0 %3882
        %3884 = vrot.lane.b32.xlu0 %v3674, 40
        %v3885 = vpop.permute.xlu0 %3884
        %3887 = vrot.lane.b32.xlu0 %v3552, 48
        %v3888 = vpop.permute.xlu0 %3887
        %3889 = vrot.lane.b32.xlu0 %v3553, 48
        %v3890 = vpop.permute.xlu0 %3889
        %3891 = vrot.lane.b32.xlu0 %v3554, 48
        %v3892 = vpop.permute.xlu0 %3891
        %3893 = vrot.lane.b32.xlu0 %v3555, 48
        %v3894 = vpop.permute.xlu0 %3893
        %3895 = vrot.lane.b32.xlu0 %v3556, 48
        %v3896 = vpop.permute.xlu0 %3895
        %3897 = vrot.lane.b32.xlu0 %v3557, 48
        %v3898 = vpop.permute.xlu0 %3897
        %3899 = vrot.lane.b32.xlu0 %v3558, 48
        %v3900 = vpop.permute.xlu0 %3899
        %3901 = vrot.lane.b32.xlu0 %v3559, 48
        %v3902 = vpop.permute.xlu0 %3901
        %3903 = vrot.lane.b32.xlu0 %v3560, 48
        %v3904 = vpop.permute.xlu0 %3903
        %3905 = vrot.lane.b32.xlu0 %v3561, 48
        %v3906 = vpop.permute.xlu0 %3905
        %3907 = vrot.lane.b32.xlu0 %v3562, 48
        %v3908 = vpop.permute.xlu0 %3907
        %3909 = vrot.lane.b32.xlu0 %v3563, 48
        %v3910 = vpop.permute.xlu0 %3909
        %3911 = vrot.lane.b32.xlu0 %v3564, 48
        %v3912 = vpop.permute.xlu0 %3911
        %3913 = vrot.lane.b32.xlu0 %v3565, 48
        %v3914 = vpop.permute.xlu0 %3913
        %3915 = vrot.lane.b32.xlu0 %v3566, 48
        %v3916 = vpop.permute.xlu0 %3915
        %3917 = vrot.lane.b32.xlu0 %v3567, 48
        %v3918 = vpop.permute.xlu0 %3917
        %3920 = vrot.lane.b32.xlu0 %v3606, 56
        %v3921 = vpop.permute.xlu0 %3920
        %3922 = vrot.lane.b32.xlu0 %v3607, 56
        %v3923 = vpop.permute.xlu0 %3922
        %3924 = vrot.lane.b32.xlu0 %v3608, 56
        %v3925 = vpop.permute.xlu0 %3924
        %3926 = vrot.lane.b32.xlu0 %v3609, 56
        %v3927 = vpop.permute.xlu0 %3926
        %3928 = vrot.lane.b32.xlu0 %v3610, 56
        %v3929 = vpop.permute.xlu0 %3928
        %3930 = vrot.lane.b32.xlu0 %v3611, 56
        %v3931 = vpop.permute.xlu0 %3930
        %3932 = vrot.lane.b32.xlu0 %v3612, 56
        %v3933 = vpop.permute.xlu0 %3932
        %3934 = vrot.lane.b32.xlu0 %v3613, 56
        %v3935 = vpop.permute.xlu0 %3934
        %3936 = vrot.lane.b32.xlu0 %v3614, 56
        %v3937 = vpop.permute.xlu0 %3936
        %3938 = vrot.lane.b32.xlu0 %v3615, 56
        %v3939 = vpop.permute.xlu0 %3938
        %3940 = vrot.lane.b32.xlu0 %v3616, 56
        %v3941 = vpop.permute.xlu0 %3940
        %3942 = vrot.lane.b32.xlu0 %v3617, 56
        %v3943 = vpop.permute.xlu0 %3942
        %3944 = vrot.lane.b32.xlu0 %v3618, 56
        %v3945 = vpop.permute.xlu0 %3944
        %3946 = vrot.lane.b32.xlu0 %v3619, 56
        %v3947 = vpop.permute.xlu0 %3946
        %3948 = vrot.lane.b32.xlu0 %v3620, 56
        %v3949 = vpop.permute.xlu0 %3948
        %3950 = vrot.lane.b32.xlu0 %v3621, 56
        %v3951 = vpop.permute.xlu0 %3950
        %3953 = vrot.lane.b32.xlu0 %v3660, 64
        %v3954 = vpop.permute.xlu0 %3953
        %3955 = vrot.lane.b32.xlu0 %v3661, 64
        %v3956 = vpop.permute.xlu0 %3955
        %3957 = vrot.lane.b32.xlu0 %v3662, 64
        %v3958 = vpop.permute.xlu0 %3957
        %3959 = vrot.lane.b32.xlu0 %v3663, 64
        %v3960 = vpop.permute.xlu0 %3959
        %3961 = vrot.lane.b32.xlu0 %v3664, 64
        %v3962 = vpop.permute.xlu0 %3961
        %3963 = vrot.lane.b32.xlu0 %v3665, 64
        %v3964 = vpop.permute.xlu0 %3963
        %3965 = vrot.lane.b32.xlu0 %v3666, 64
        %v3966 = vpop.permute.xlu0 %3965
        %3967 = vrot.lane.b32.xlu0 %v3667, 64
        %v3968 = vpop.permute.xlu0 %3967
        %3969 = vrot.lane.b32.xlu0 %v3668, 64
        %v3970 = vpop.permute.xlu0 %3969
        %3971 = vrot.lane.b32.xlu0 %v3669, 64
        %v3972 = vpop.permute.xlu0 %3971
        %3973 = vrot.lane.b32.xlu0 %v3670, 64
        %v3974 = vpop.permute.xlu0 %3973
        %3975 = vrot.lane.b32.xlu0 %v3671, 64
        %v3976 = vpop.permute.xlu0 %3975
        %3977 = vrot.lane.b32.xlu0 %v3672, 64
        %v3978 = vpop.permute.xlu0 %3977
        %3979 = vrot.lane.b32.xlu0 %v3673, 64
        %v3980 = vpop.permute.xlu0 %3979
        %3981 = vrot.lane.b32.xlu0 %v3674, 64
        %v3982 = vpop.permute.xlu0 %3981
        %3983 = vrot.lane.b32.xlu0 %v3675, 64
        %v3984 = vpop.permute.xlu0 %3983
        %v3987 = vsel %vm570, %v3550, %v3693
        %v3990 = vsel %vm570, %v3551, %v3695
        %v3993 = vsel %vm570, %v3552, %v3697
        %v3996 = vsel %vm570, %v3553, %v3699
        %v3999 = vsel %vm570, %v3554, %v3701
        %v4002 = vsel %vm570, %v3555, %v3703
        %v4005 = vsel %vm570, %v3556, %v3705
        %v4008 = vsel %vm570, %v3557, %v3707
        %v4011 = vsel %vm570, %v3558, %v3709
        %v4014 = vsel %vm570, %v3559, %v3711
        %v4017 = vsel %vm570, %v3560, %v3713
        %v4020 = vsel %vm570, %v3561, %v3715
        %v4023 = vsel %vm570, %v3562, %v3717
        %v4026 = vsel %vm570, %v3563, %v3719
        %v4029 = vsel %vm570, %v3564, %v3721
        %v4032 = vsel %vm570, %v3565, %v3723
        %v4034 = vsel %vm1615, %v3987, %v3741
        %v4036 = vsel %vm1615, %v3990, %v3743
        %v4038 = vsel %vm1615, %v3993, %v3745
        %v4040 = vsel %vm1615, %v3996, %v3747
        %v4042 = vsel %vm1615, %v3999, %v3749
        %v4044 = vsel %vm1615, %v4002, %v3751
        %v4046 = vsel %vm1615, %v4005, %v3753
        %v4048 = vsel %vm1615, %v4008, %v3755
        %v4050 = vsel %vm1615, %v4011, %v3757
        %v4052 = vsel %vm1615, %v4014, %v3759
        %v4054 = vsel %vm1615, %v4017, %v3761
        %v4056 = vsel %vm1615, %v4020, %v3763
        %v4058 = vsel %vm1615, %v4023, %v3765
        %v4060 = vsel %vm1615, %v4026, %v3767
        %v4062 = vsel %vm1615, %v4029, %v3769
        %v4064 = vsel %vm1615, %v4032, %v3771
        %v4066 = vsel %vm1648, %v4034, %v3789
        %v4068 = vsel %vm1648, %v4036, %v3791
        %v4070 = vsel %vm1648, %v4038, %v3793
        %v4072 = vsel %vm1648, %v4040, %v3795
        %v4074 = vsel %vm1648, %v4042, %v3797
        %v4076 = vsel %vm1648, %v4044, %v3799
        %v4078 = vsel %vm1648, %v4046, %v3801
        %v4080 = vsel %vm1648, %v4048, %v3803
        %v4082 = vsel %vm1648, %v4050, %v3805
        %v4084 = vsel %vm1648, %v4052, %v3807
        %v4086 = vsel %vm1648, %v4054, %v3809
        %v4088 = vsel %vm1648, %v4056, %v3811
        %v4090 = vsel %vm1648, %v4058, %v3813
        %v4092 = vsel %vm1648, %v4060, %v3815
        %v4094 = vsel %vm1648, %v4062, %v3817
        %v4096 = vsel %vm1648, %v4064, %v3819
        %v4098 = vsel %vm1681, %v4066, %v3822
        %v4100 = vsel %vm1681, %v4068, %v3824
        %v4102 = vsel %vm1681, %v4070, %v3826
        %v4104 = vsel %vm1681, %v4072, %v3828
        %v4106 = vsel %vm1681, %v4074, %v3830
        %v4108 = vsel %vm1681, %v4076, %v3832
        %v4110 = vsel %vm1681, %v4078, %v3834
        %v4112 = vsel %vm1681, %v4080, %v3836
        %v4114 = vsel %vm1681, %v4082, %v3838
        %v4116 = vsel %vm1681, %v4084, %v3840
        %v4118 = vsel %vm1681, %v4086, %v3842
        %v4120 = vsel %vm1681, %v4088, %v3844
        %v4122 = vsel %vm1681, %v4090, %v3846
        %v4124 = vsel %vm1681, %v4092, %v3848
        %v4126 = vsel %vm1681, %v4094, %v3850
        %v4128 = vsel %vm1681, %v4096, %v3852
        %v4130 = vsel %vm1714, %v4098, %v3855
        %v4132 = vsel %vm1714, %v4100, %v3857
        %v4134 = vsel %vm1714, %v4102, %v3859
        %v4136 = vsel %vm1714, %v4104, %v3861
        %v4138 = vsel %vm1714, %v4106, %v3863
        %v4140 = vsel %vm1714, %v4108, %v3865
        %v4142 = vsel %vm1714, %v4110, %v3867
        %v4144 = vsel %vm1714, %v4112, %v3869
        %v4146 = vsel %vm1714, %v4114, %v3871
        %v4148 = vsel %vm1714, %v4116, %v3873
        %v4150 = vsel %vm1714, %v4118, %v3875
        %v4152 = vsel %vm1714, %v4120, %v3877
        %v4154 = vsel %vm1714, %v4122, %v3879
        %v4156 = vsel %vm1714, %v4124, %v3881
        %v4158 = vsel %vm1714, %v4126, %v3883
        %v4160 = vsel %vm1714, %v4128, %v3885
        %v4162 = vsel %vm1747, %v4130, %v3888
        %v4164 = vsel %vm1747, %v4132, %v3890
        %v4166 = vsel %vm1747, %v4134, %v3892
        %v4168 = vsel %vm1747, %v4136, %v3894
        %v4170 = vsel %vm1747, %v4138, %v3896
        %v4172 = vsel %vm1747, %v4140, %v3898
        %v4174 = vsel %vm1747, %v4142, %v3900
        %v4176 = vsel %vm1747, %v4144, %v3902
        %v4178 = vsel %vm1747, %v4146, %v3904
        %v4180 = vsel %vm1747, %v4148, %v3906
        %v4182 = vsel %vm1747, %v4150, %v3908
        %v4184 = vsel %vm1747, %v4152, %v3910
        %v4186 = vsel %vm1747, %v4154, %v3912
        %v4188 = vsel %vm1747, %v4156, %v3914
        %v4190 = vsel %vm1747, %v4158, %v3916
        %v4192 = vsel %vm1747, %v4160, %v3918
        %v4194 = vsel %vm1780, %v4162, %v3921
        %v4196 = vsel %vm1780, %v4164, %v3923
        %v4198 = vsel %vm1780, %v4166, %v3925
        %v4200 = vsel %vm1780, %v4168, %v3927
        %v4202 = vsel %vm1780, %v4170, %v3929
        %v4204 = vsel %vm1780, %v4172, %v3931
        %v4206 = vsel %vm1780, %v4174, %v3933
        %v4208 = vsel %vm1780, %v4176, %v3935
        %v4210 = vsel %vm1780, %v4178, %v3937
        %v4212 = vsel %vm1780, %v4180, %v3939
        %v4214 = vsel %vm1780, %v4182, %v3941
        %v4216 = vsel %vm1780, %v4184, %v3943
        %v4218 = vsel %vm1780, %v4186, %v3945
        %v4220 = vsel %vm1780, %v4188, %v3947
        %v4222 = vsel %vm1780, %v4190, %v3949
        %v4224 = vsel %vm1780, %v4192, %v3951
        %v4226 = vsel %vm1813, %v4194, %v3954
        %v4228 = vsel %vm1813, %v4196, %v3956
        %v4230 = vsel %vm1813, %v4198, %v3958
        %v4232 = vsel %vm1813, %v4200, %v3960
        %v4234 = vsel %vm1813, %v4202, %v3962
        %v4236 = vsel %vm1813, %v4204, %v3964
        %v4238 = vsel %vm1813, %v4206, %v3966
        %v4240 = vsel %vm1813, %v4208, %v3968
        %v4242 = vsel %vm1813, %v4210, %v3970
        %v4244 = vsel %vm1813, %v4212, %v3972
        %v4246 = vsel %vm1813, %v4214, %v3974
        %v4248 = vsel %vm1813, %v4216, %v3976
        %v4250 = vsel %vm1813, %v4218, %v3978
        %v4252 = vsel %vm1813, %v4220, %v3980
        %v4254 = vsel %vm1813, %v4222, %v3982
        %v4256 = vsel %vm1813, %v4224, %v3984
        %v4257 = vld [vmem:[%s10] sm:$0xf]
        %v4258 = vld [vmem:[%s10 + $0x4] sm:$0xf]
        %v4259 = vld [vmem:[%s10 + $0x8] sm:$0xf]
        %v4260 = vld [vmem:[%s10 + $0xc] sm:$0xf]
        %v4261 = vld [vmem:[%s10 + $0x10] sm:$0xf]
        %v4262 = vld [vmem:[%s10 + $0x14] sm:$0xf]
        %v4263 = vld [vmem:[%s10 + $0x18] sm:$0xf]
        %v4264 = vld [vmem:[%s10 + $0x1c] sm:$0xf]
        %v4265 = vld [vmem:[%s10 + $0x20] sm:$0xf]
        %v4275 = vunpack.c.l.b16 %v4257
        %v4276 = vunpack.c.l.b16 %v4258
        %v4277 = vunpack.c.l.b16 %v4259
        %v4278 = vunpack.c.l.b16 %v4260
        %v4279 = vunpack.c.l.b16 %v4261
        %v4280 = vunpack.c.l.b16 %v4262
        %v4281 = vunpack.c.l.b16 %v4263
        %v4282 = vunpack.c.l.b16 %v4264
        %v4283 = vunpack.c.l.b16 %v4265
        %v4284 = vpack.c.b16 %v4276, %v4275
        %v4285 = vpack.c.b16 %v4278, %v4277
        %v4286 = vpack.c.b16 %v4280, %v4279
        %v4287 = vpack.c.b16 %v4282, %v4281
        %v4288 = vpack.c.b16 %v4283, %v4283
        %v4293 = vsel %vm1882, %v4226, 0
        %v4295 = vsel %vm1882, %v4228, 0
        %v4297 = vsel %vm1882, %v4230, 0
        %v4299 = vsel %vm1882, %v4232, 0
        %v4301 = vsel %vm1882, %v4234, 0
        %v4303 = vsel %vm1882, %v4236, 0
        %v4305 = vsel %vm1882, %v4238, 0
        %v4307 = vsel %vm1882, %v4240, 0
        %v4309 = vsel %vm1882, %v4242, 0
        %v4311 = vsel %vm1882, %v4244, 0
        %v4313 = vsel %vm1882, %v4246, 0
        %v4315 = vsel %vm1882, %v4248, 0
        %v4317 = vsel %vm1882, %v4250, 0
        %v4319 = vsel %vm1882, %v4252, 0
        %v4321 = vsel %vm1882, %v4254, 0
        %v4323 = vsel %vm1882, %v4256, 0
        %v4326 = vsel %vm619, %v4288, 0
        %4328 = vmatprep.subr.bf16.mxu0 0
        %4329 = vmatpush1.bf16.msra.mxu0 %v4284
        %4330 = vmatprep.subr.bf16.mxu0 0
        %4331 = vmatpush1.bf16.msra.mxu0 %v4285
        %4332 = vmatprep.subr.bf16.mxu0 0
        %4333 = vmatpush1.bf16.msra.mxu0 %v4286
        %4334 = vmatprep.subr.bf16.mxu0 0
        %4335 = vmatpush1.bf16.msra.mxu0 %v4287
        %4336 = vmatprep.subr.bf16.mxu0 0
        %4337 = vmatpush1.bf16.msra.mxu0 %v4326
        %4338 = vmatprep.subr.bf16.mxu0 0
        %4339 = vmatpush1.bf16.msra.mxu0 0
        %4340 = vmatprep.subr.bf16.mxu0 0
        %4341 = vmatpush1.bf16.msra.mxu0 0
        %4342 = vmatprep.subr.bf16.mxu0 0
        %4343 = vmatpush1.bf16.msra.mxu0 0
        %4344 = vmatprep.subr.bf16.mxu0 0
        %4345 = vmatpush1.bf16.msra.mxu0 0
        %4346 = vmatprep.subr.bf16.mxu0 0
        %4347 = vmatpush1.bf16.msra.mxu0 0
        %4348 = vmatprep.subr.bf16.mxu0 0
        %4349 = vmatpush1.bf16.msra.mxu0 0
        %4350 = vmatprep.subr.bf16.mxu0 0
        %4351 = vmatpush1.bf16.msra.mxu0 0
        %4352 = vmatprep.subr.bf16.mxu0 0
        %4353 = vmatpush1.bf16.msra.mxu0 0
        %4354 = vmatprep.subr.bf16.mxu0 0
        %4355 = vmatpush1.bf16.msra.mxu0 0
        %4356 = vmatprep.subr.bf16.mxu0 0
        %4357 = vmatpush1.bf16.msra.mxu0 0
        %4358 = vmatprep.subr.bf16.mxu0 0
        %4359 = vmatpush1.bf16.msra.mxu0 0
        %4360 = vmatprep.mubr.bf16.mxu0 0
        %4361 = vmatmul.mubr.bf16.gmra.mrb[0].mxu0 %v4293
        %v4362 = vpop.f32.mrb[0].mxu0
        %v4363 = vadd.f32 0.0, %v4362
        %v4364 = vpop.f32.mrb[0].mxu0
        %v4365 = vpop.f32.mrb[0].mxu0
        %v4366 = vadd.f32 0.0, %v4365
        %v4367 = vpop.f32.mrb[0].mxu0
        %4368 = vmatprep.mubr.bf16.mxu0 0
        %4369 = vmatmul.mubr.bf16.gmra.mrb[0].mxu0 %v4295
        %v4370 = vpop.f32.mrb[0].mxu0
        %v4371 = vadd.f32 0.0, %v4370
        %v4372 = vpop.f32.mrb[0].mxu0
        %v4373 = vpop.f32.mrb[0].mxu0
        %v4374 = vadd.f32 0.0, %v4373
        %v4375 = vpop.f32.mrb[0].mxu0
        %4376 = vmatprep.mubr.bf16.mxu0 0
        %4377 = vmatmul.mubr.bf16.gmra.mrb[0].mxu0 %v4297
        %v4378 = vpop.f32.mrb[0].mxu0
        %v4379 = vadd.f32 0.0, %v4378
        %v4380 = vpop.f32.mrb[0].mxu0
        %v4381 = vpop.f32.mrb[0].mxu0
        %v4382 = vadd.f32 0.0, %v4381
        %v4383 = vpop.f32.mrb[0].mxu0
        %4384 = vmatprep.mubr.bf16.mxu0 0
        %4385 = vmatmul.mubr.bf16.gmra.mrb[0].mxu0 %v4299
        %v4386 = vpop.f32.mrb[0].mxu0
        %v4387 = vadd.f32 0.0, %v4386
        %v4388 = vpop.f32.mrb[0].mxu0
        %v4389 = vpop.f32.mrb[0].mxu0
        %v4390 = vadd.f32 0.0, %v4389
        %v4391 = vpop.f32.mrb[0].mxu0
        %4392 = vmatprep.mubr.bf16.mxu0 0
        %4393 = vmatmul.mubr.bf16.gmra.mrb[0].mxu0 %v4301
        %v4394 = vpop.f32.mrb[0].mxu0
        %v4395 = vadd.f32 0.0, %v4394
        %v4396 = vpop.f32.mrb[0].mxu0
        %v4397 = vpop.f32.mrb[0].mxu0
        %v4398 = vadd.f32 0.0, %v4397
        %v4399 = vpop.f32.mrb[0].mxu0
        %4400 = vmatprep.mubr.bf16.mxu0 0
        %4401 = vmatmul.mubr.bf16.gmra.mrb[0].mxu0 %v4303
        %v4402 = vpop.f32.mrb[0].mxu0
        %v4403 = vadd.f32 0.0, %v4402
        %v4404 = vpop.f32.mrb[0].mxu0
        %v4405 = vpop.f32.mrb[0].mxu0
        %v4406 = vadd.f32 0.0, %v4405
        %v4407 = vpop.f32.mrb[0].mxu0
        %4408 = vmatprep.mubr.bf16.mxu0 0
        %4409 = vmatmul.mubr.bf16.gmra.mrb[0].mxu0 %v4305
        %v4410 = vpop.f32.mrb[0].mxu0
        %v4411 = vadd.f32 0.0, %v4410
        %v4412 = vpop.f32.mrb[0].mxu0
        %v4413 = vpop.f32.mrb[0].mxu0
        %v4414 = vadd.f32 0.0, %v4413
        %v4415 = vpop.f32.mrb[0].mxu0
        %4416 = vmatprep.mubr.bf16.mxu0 0
        %4417 = vmatmul.mubr.bf16.gmra.mrb[0].mxu0 %v4307
        %v4418 = vpop.f32.mrb[0].mxu0
        %v4419 = vadd.f32 0.0, %v4418
        %v4420 = vpop.f32.mrb[0].mxu0
        %v4421 = vpop.f32.mrb[0].mxu0
        %v4422 = vadd.f32 0.0, %v4421
        %v4423 = vpop.f32.mrb[0].mxu0
        %4424 = vmatprep.mubr.bf16.mxu0 0
        %4425 = vmatmul.mubr.bf16.gmra.mrb[0].mxu0 %v4309
        %v4426 = vpop.f32.mrb[0].mxu0
        %v4427 = vadd.f32 0.0, %v4426
        %v4428 = vpop.f32.mrb[0].mxu0
        %v4429 = vpop.f32.mrb[0].mxu0
        %v4430 = vadd.f32 0.0, %v4429
        %v4431 = vpop.f32.mrb[0].mxu0
        %4432 = vmatprep.mubr.bf16.mxu0 0
        %4433 = vmatmul.mubr.bf16.gmra.mrb[0].mxu0 %v4311
        %v4434 = vpop.f32.mrb[0].mxu0
        %v4435 = vadd.f32 0.0, %v4434
        %v4436 = vpop.f32.mrb[0].mxu0
        %v4437 = vpop.f32.mrb[0].mxu0
        %v4438 = vadd.f32 0.0, %v4437
        %v4439 = vpop.f32.mrb[0].mxu0
        %4440 = vmatprep.mubr.bf16.mxu0 0
        %4441 = vmatmul.mubr.bf16.gmra.mrb[0].mxu0 %v4313
        %v4442 = vpop.f32.mrb[0].mxu0
        %v4443 = vadd.f32 0.0, %v4442
        %v4444 = vpop.f32.mrb[0].mxu0
        %v4445 = vpop.f32.mrb[0].mxu0
        %v4446 = vadd.f32 0.0, %v4445
        %v4447 = vpop.f32.mrb[0].mxu0
        %4448 = vmatprep.mubr.bf16.mxu0 0
        %4449 = vmatmul.mubr.bf16.gmra.mrb[0].mxu0 %v4315
        %v4450 = vpop.f32.mrb[0].mxu0
        %v4451 = vadd.f32 0.0, %v4450
        %v4452 = vpop.f32.mrb[0].mxu0
        %v4453 = vpop.f32.mrb[0].mxu0
        %v4454 = vadd.f32 0.0, %v4453
        %v4455 = vpop.f32.mrb[0].mxu0
        %4456 = vmatprep.mubr.bf16.mxu0 0
        %4457 = vmatmul.mubr.bf16.gmra.mrb[0].mxu0 %v4317
        %v4458 = vpop.f32.mrb[0].mxu0
        %v4459 = vadd.f32 0.0, %v4458
        %v4460 = vpop.f32.mrb[0].mxu0
        %v4461 = vpop.f32.mrb[0].mxu0
        %v4462 = vadd.f32 0.0, %v4461
        %v4463 = vpop.f32.mrb[0].mxu0
        %4464 = vmatprep.mubr.bf16.mxu0 0
        %4465 = vmatmul.mubr.bf16.gmra.mrb[0].mxu0 %v4319
        %v4466 = vpop.f32.mrb[0].mxu0
        %v4467 = vadd.f32 0.0, %v4466
        %v4468 = vpop.f32.mrb[0].mxu0
        %v4469 = vpop.f32.mrb[0].mxu0
        %v4470 = vadd.f32 0.0, %v4469
        %v4471 = vpop.f32.mrb[0].mxu0
        %4472 = vmatprep.mubr.bf16.mxu0 0
        %4473 = vmatmul.mubr.bf16.gmra.mrb[0].mxu0 %v4321
        %v4474 = vpop.f32.mrb[0].mxu0
        %v4475 = vadd.f32 0.0, %v4474
        %v4476 = vpop.f32.mrb[0].mxu0
        %v4477 = vpop.f32.mrb[0].mxu0
        %v4478 = vadd.f32 0.0, %v4477
        %v4479 = vpop.f32.mrb[0].mxu0
        %4480 = vmatprep.mubr.bf16.mxu0 0
        %4481 = vmatmul.mubr.bf16.gmra.mrb[0].mxu0 %v4323
        %v4482 = vpop.f32.mrb[0].mxu0
        %v4483 = vadd.f32 0.0, %v4482
        %v4484 = vpop.f32.mrb[0].mxu0
        %v4485 = vpop.f32.mrb[0].mxu0
        %v4486 = vadd.f32 0.0, %v4485
        %v4487 = vpop.f32.mrb[0].mxu0
        %4488 = vdwg.mxu0
        %v4489 = vld [vmem:[%s11] sm:$0x1]
        %v4491 = vlaneseq
        %v4492 = vshrl.u32 %v4491, 7
        %v4493 = vsub.s32 0, %v4492
        %v4494 = vrot.slane %v4489, %v4493
        %v4496 = vmul.f32 %v4363, %v4494
        %v4497 = vmul.f32 %v4366, %v4494
        %v4498 = vmul.f32 %v4371, %v4494
        %v4499 = vmul.f32 %v4374, %v4494
        %v4500 = vmul.f32 %v4379, %v4494
        %v4501 = vmul.f32 %v4382, %v4494
        %v4502 = vmul.f32 %v4387, %v4494
        %v4503 = vmul.f32 %v4390, %v4494
        %v4504 = vmul.f32 %v4395, %v4494
        %v4505 = vmul.f32 %v4398, %v4494
        %v4506 = vmul.f32 %v4403, %v4494
        %v4507 = vmul.f32 %v4406, %v4494
        %v4508 = vmul.f32 %v4411, %v4494
        %v4509 = vmul.f32 %v4414, %v4494
        %v4510 = vmul.f32 %v4419, %v4494
        %v4511 = vmul.f32 %v4422, %v4494
        %v4512 = vmul.f32 %v4427, %v4494
        %v4513 = vmul.f32 %v4430, %v4494
        %v4514 = vmul.f32 %v4435, %v4494
        %v4515 = vmul.f32 %v4438, %v4494
        %v4516 = vmul.f32 %v4443, %v4494
        %v4517 = vmul.f32 %v4446, %v4494
        %v4518 = vmul.f32 %v4451, %v4494
        %v4519 = vmul.f32 %v4454, %v4494
        %v4520 = vmul.f32 %v4459, %v4494
        %v4521 = vmul.f32 %v4462, %v4494
        %v4522 = vmul.f32 %v4467, %v4494
        %v4523 = vmul.f32 %v4470, %v4494
        %v4524 = vmul.f32 %v4475, %v4494
        %v4525 = vmul.f32 %v4478, %v4494
        %v4526 = vmul.f32 %v4483, %v4494
        %v4527 = vmul.f32 %v4486, %v4494
        %v4528 = vld [vmem:[%s12] sm:$0x1]
        %v4530 = vlaneseq
        %v4531 = vshrl.u32 %v4530, 7
        %v4532 = vsub.s32 0, %v4531
        %v4533 = vrot.slane %v4528, %v4532
        %v4535 = vadd.f32 %v4496, %v4533
        %v4536 = vadd.f32 %v4497, %v4533
        %v4537 = vadd.f32 %v4498, %v4533
        %v4538 = vadd.f32 %v4499, %v4533
        %v4539 = vadd.f32 %v4500, %v4533
        %v4540 = vadd.f32 %v4501, %v4533
        %v4541 = vadd.f32 %v4502, %v4533
        %v4542 = vadd.f32 %v4503, %v4533
        %v4543 = vadd.f32 %v4504, %v4533
        %v4544 = vadd.f32 %v4505, %v4533
        %v4545 = vadd.f32 %v4506, %v4533
        %v4546 = vadd.f32 %v4507, %v4533
        %v4547 = vadd.f32 %v4508, %v4533
        %v4548 = vadd.f32 %v4509, %v4533
        %v4549 = vadd.f32 %v4510, %v4533
        %v4550 = vadd.f32 %v4511, %v4533
        %v4551 = vadd.f32 %v4512, %v4533
        %v4552 = vadd.f32 %v4513, %v4533
        %v4553 = vadd.f32 %v4514, %v4533
        %v4554 = vadd.f32 %v4515, %v4533
        %v4555 = vadd.f32 %v4516, %v4533
        %v4556 = vadd.f32 %v4517, %v4533
        %v4557 = vadd.f32 %v4518, %v4533
        %v4558 = vadd.f32 %v4519, %v4533
        %v4559 = vadd.f32 %v4520, %v4533
        %v4560 = vadd.f32 %v4521, %v4533
        %v4561 = vadd.f32 %v4522, %v4533
        %v4562 = vadd.f32 %v4523, %v4533
        %v4563 = vadd.f32 %v4524, %v4533
        %v4564 = vadd.f32 %v4525, %v4533
        %v4565 = vadd.f32 %v4526, %v4533
        %v4566 = vadd.f32 %v4527, %v4533
        %v4567 = vmax.f32 %v4535, 0.0
        %v4568 = vmax.f32 %v4536, 0.0
        %v4569 = vmax.f32 %v4537, 0.0
        %v4570 = vmax.f32 %v4538, 0.0
        %v4571 = vmax.f32 %v4539, 0.0
        %v4572 = vmax.f32 %v4540, 0.0
        %v4573 = vmax.f32 %v4541, 0.0
        %v4574 = vmax.f32 %v4542, 0.0
        %v4575 = vmax.f32 %v4543, 0.0
        %v4576 = vmax.f32 %v4544, 0.0
        %v4577 = vmax.f32 %v4545, 0.0
        %v4578 = vmax.f32 %v4546, 0.0
        %v4579 = vmax.f32 %v4547, 0.0
        %v4580 = vmax.f32 %v4548, 0.0
        %v4581 = vmax.f32 %v4549, 0.0
        %v4582 = vmax.f32 %v4550, 0.0
        %v4583 = vmax.f32 %v4551, 0.0
        %v4584 = vmax.f32 %v4552, 0.0
        %v4585 = vmax.f32 %v4553, 0.0
        %v4586 = vmax.f32 %v4554, 0.0
        %v4587 = vmax.f32 %v4555, 0.0
        %v4588 = vmax.f32 %v4556, 0.0
        %v4589 = vmax.f32 %v4557, 0.0
        %v4590 = vmax.f32 %v4558, 0.0
        %v4591 = vmax.f32 %v4559, 0.0
        %v4592 = vmax.f32 %v4560, 0.0
        %v4593 = vmax.f32 %v4561, 0.0
        %v4594 = vmax.f32 %v4562, 0.0
        %v4595 = vmax.f32 %v4563, 0.0
        %v4596 = vmax.f32 %v4564, 0.0
        %v4597 = vmax.f32 %v4565, 0.0
        %v4598 = vmax.f32 %v4566, 0.0
        %4599 = vst.msk [vmem:[#allocation5] sm:$0xff] %vm570, -inf
        %4600 = vst.msk [vmem:[#allocation5 + $0x8] sm:$0xff] %vm570, -inf
        %4601 = vst.msk [vmem:[#allocation5 + $0x10] sm:$0x3] %vm896, -inf
        %s4602 = scalar_lea.vmem [#allocation5], 408
        %4603 = vst.msk [vmem:[%s4602] sm:$0xff] %vm570, -inf
        %4604 = vst.msk [vmem:[%s4602 + $0x8] sm:$0xff] %vm570, -inf
        %4605 = vst.msk [vmem:[%s4602 + $0x10] sm:$0x3] %vm896, -inf
        %s4606 = scalar_lea.vmem [#allocation5], 24
        %4607 = vst.msk [vmem:[%s4606] sm:$0x1] %vm903, -inf
        %4608 = vst.msk [vmem:[%s4606 + $0x18] sm:$0x1] %vm903, -inf
        %4609 = vst.msk [vmem:[%s4606 + $0x30] sm:$0x1] %vm903, -inf
        %4610 = vst.msk [vmem:[%s4606 + $0x48] sm:$0x1] %vm903, -inf
        %4611 = vst.msk [vmem:[%s4606 + $0x60] sm:$0x1] %vm903, -inf
        %4612 = vst.msk [vmem:[%s4606 + $0x78] sm:$0x1] %vm903, -inf
        %4613 = vst.msk [vmem:[%s4606 + $0x90] sm:$0x1] %vm903, -inf
        %4614 = vst.msk [vmem:[%s4606 + $0xa8] sm:$0x1] %vm903, -inf
        %4615 = vst.msk [vmem:[%s4606 + $0xc0] sm:$0x1] %vm903, -inf
        %4616 = vst.msk [vmem:[%s4606 + $0xd8] sm:$0x1] %vm903, -inf
        %4617 = vst.msk [vmem:[%s4606 + $0xf0] sm:$0x1] %vm903, -inf
        %4618 = vst.msk [vmem:[%s4606 + $0x108] sm:$0x1] %vm903, -inf
        %4619 = vst.msk [vmem:[%s4606 + $0x120] sm:$0x1] %vm903, -inf
        %4620 = vst.msk [vmem:[%s4606 + $0x138] sm:$0x1] %vm903, -inf
        %4621 = vst.msk [vmem:[%s4606 + $0x150] sm:$0x1] %vm903, -inf
        %4622 = vst.msk [vmem:[%s4606 + $0x168] sm:$0x1] %vm903, -inf
        %4623 = vst.msk [vmem:[%s4606 + $0x11] sm:$0x1] %vm903, -inf
        %4624 = vst.msk [vmem:[%s4606 + $0x29] sm:$0x1] %vm903, -inf
        %4625 = vst.msk [vmem:[%s4606 + $0x41] sm:$0x1] %vm903, -inf
        %4626 = vst.msk [vmem:[%s4606 + $0x59] sm:$0x1] %vm903, -inf
        %4627 = vst.msk [vmem:[%s4606 + $0x71] sm:$0x1] %vm903, -inf
        %4628 = vst.msk [vmem:[%s4606 + $0x89] sm:$0x1] %vm903, -inf
        %4629 = vst.msk [vmem:[%s4606 + $0xa1] sm:$0x1] %vm903, -inf
        %4630 = vst.msk [vmem:[%s4606 + $0xb9] sm:$0x1] %vm903, -inf
        %4631 = vst.msk [vmem:[%s4606 + $0xd1] sm:$0x1] %vm903, -inf
        %4632 = vst.msk [vmem:[%s4606 + $0xe9] sm:$0x1] %vm903, -inf
        %4633 = vst.msk [vmem:[%s4606 + $0x101] sm:$0x1] %vm903, -inf
        %4634 = vst.msk [vmem:[%s4606 + $0x119] sm:$0x1] %vm903, -inf
        %4635 = vst.msk [vmem:[%s4606 + $0x131] sm:$0x1] %vm903, -inf
        %4636 = vst.msk [vmem:[%s4606 + $0x149] sm:$0x1] %vm903, -inf
        %4637 = vst.msk [vmem:[%s4606 + $0x161] sm:$0x1] %vm903, -inf
        %4638 = vst.msk [vmem:[%s4606 + $0x179] sm:$0x1] %vm903, -inf
        %4639 = vst.msk [vmem:[%s4606 + $0x1] sm:$0xff] %vm570, %v521
        %4640 = vst.msk [vmem:[%s4606 + $0x9] sm:$0xff] %vm570, %v522
        %4641 = vst.msk [vmem:[%s4606 + $0x19] sm:$0xff] %vm570, %v523
        %4642 = vst.msk [vmem:[%s4606 + $0x21] sm:$0xff] %vm570, %v524
        %4643 = vst.msk [vmem:[%s4606 + $0x31] sm:$0xff] %vm570, %v525
        %4644 = vst.msk [vmem:[%s4606 + $0x39] sm:$0xff] %vm570, %v526
        %4645 = vst.msk [vmem:[%s4606 + $0x49] sm:$0xff] %vm570, %v527
        %4646 = vst.msk [vmem:[%s4606 + $0x51] sm:$0xff] %vm570, %v528
        %4647 = vst.msk [vmem:[%s4606 + $0x61] sm:$0xff] %vm570, %v529
        %4648 = vst.msk [vmem:[%s4606 + $0x69] sm:$0xff] %vm570, %v530
        %4649 = vst.msk [vmem:[%s4606 + $0x79] sm:$0xff] %vm570, %v531
        %4650 = vst.msk [vmem:[%s4606 + $0x81] sm:$0xff] %vm570, %v532
        %4651 = vst.msk [vmem:[%s4606 + $0x91] sm:$0xff] %vm570, %v533
        %4652 = vst.msk [vmem:[%s4606 + $0x99] sm:$0xff] %vm570, %v534
        %4653 = vst.msk [vmem:[%s4606 + $0xa9] sm:$0xff] %vm570, %v535
        %4654 = vst.msk [vmem:[%s4606 + $0xb1] sm:$0xff] %vm570, %v536
        %4655 = vst.msk [vmem:[%s4606 + $0xc1] sm:$0xff] %vm570, %v537
        %4656 = vst.msk [vmem:[%s4606 + $0xc9] sm:$0xff] %vm570, %v538
        %4657 = vst.msk [vmem:[%s4606 + $0xd9] sm:$0xff] %vm570, %v539
        %4658 = vst.msk [vmem:[%s4606 + $0xe1] sm:$0xff] %vm570, %v540
        %4659 = vst.msk [vmem:[%s4606 + $0xf1] sm:$0xff] %vm570, %v541
        %4660 = vst.msk [vmem:[%s4606 + $0xf9] sm:$0xff] %vm570, %v542
        %4661 = vst.msk [vmem:[%s4606 + $0x109] sm:$0xff] %vm570, %v543
        %4662 = vst.msk [vmem:[%s4606 + $0x111] sm:$0xff] %vm570, %v544
        %4663 = vst.msk [vmem:[%s4606 + $0x121] sm:$0xff] %vm570, %v545
        %4664 = vst.msk [vmem:[%s4606 + $0x129] sm:$0xff] %vm570, %v546
        %4665 = vst.msk [vmem:[%s4606 + $0x139] sm:$0xff] %vm570, %v547
        %4666 = vst.msk [vmem:[%s4606 + $0x141] sm:$0xff] %vm570, %v548
        %4667 = vst.msk [vmem:[%s4606 + $0x151] sm:$0xff] %vm570, %v549
        %4668 = vst.msk [vmem:[%s4606 + $0x159] sm:$0xff] %vm570, %v550
        %4669 = vst.msk [vmem:[%s4606 + $0x169] sm:$0xff] %vm570, %v551
        %4670 = vst.msk [vmem:[%s4606 + $0x171] sm:$0xff] %vm570, %v552
        %v4671 = vld [vmem:[#allocation5] sm:$0xff]
        %v4672 = vld [vmem:[#allocation5 + $0x8] sm:$0xff]
        %v4673 = vld [vmem:[#allocation5 + $0x18] sm:$0xff]
        %v4674 = vld [vmem:[#allocation5 + $0x20] sm:$0xff]
        %v4675 = vld [vmem:[#allocation5 + $0x30] sm:$0xff]
        %v4676 = vld [vmem:[#allocation5 + $0x38] sm:$0xff]
        %v4677 = vld [vmem:[#allocation5 + $0x48] sm:$0xff]
        %v4678 = vld [vmem:[#allocation5 + $0x50] sm:$0xff]
        %v4679 = vld [vmem:[#allocation5 + $0x60] sm:$0xff]
        %v4680 = vld [vmem:[#allocation5 + $0x68] sm:$0xff]
        %v4681 = vld [vmem:[#allocation5 + $0x78] sm:$0xff]
        %v4682 = vld [vmem:[#allocation5 + $0x80] sm:$0xff]
        %v4683 = vld [vmem:[#allocation5 + $0x90] sm:$0xff]
        %v4684 = vld [vmem:[#allocation5 + $0x98] sm:$0xff]
        %v4685 = vld [vmem:[#allocation5 + $0xa8] sm:$0xff]
        %v4686 = vld [vmem:[#allocation5 + $0xb0] sm:$0xff]
        %v4687 = vld [vmem:[#allocation5 + $0xc0] sm:$0xff]
        %v4688 = vld [vmem:[#allocation5 + $0xc8] sm:$0xff]
        %v4689 = vld [vmem:[#allocation5 + $0xd8] sm:$0xff]
        %v4690 = vld [vmem:[#allocation5 + $0xe0] sm:$0xff]
        %v4691 = vld [vmem:[#allocation5 + $0xf0] sm:$0xff]
        %v4692 = vld [vmem:[#allocation5 + $0xf8] sm:$0xff]
        %v4693 = vld [vmem:[#allocation5 + $0x108] sm:$0xff]
        %v4694 = vld [vmem:[#allocation5 + $0x110] sm:$0xff]
        %v4695 = vld [vmem:[#allocation5 + $0x120] sm:$0xff]
        %v4696 = vld [vmem:[#allocation5 + $0x128] sm:$0xff]
        %v4697 = vld [vmem:[#allocation5 + $0x138] sm:$0xff]
        %v4698 = vld [vmem:[#allocation5 + $0x140] sm:$0xff]
        %v4699 = vld [vmem:[#allocation5 + $0x150] sm:$0xff]
        %v4700 = vld [vmem:[#allocation5 + $0x158] sm:$0xff]
        %v4701 = vld [vmem:[#allocation5 + $0x168] sm:$0xff]
        %v4702 = vld [vmem:[#allocation5 + $0x170] sm:$0xff]
        %v4703 = vld [vmem:[#allocation5 + $0x180] sm:$0xff]
        %v4704 = vld [vmem:[#allocation5 + $0x188] sm:$0xff]
        %v4705 = vld [vmem:[#allocation5 + $0x198] sm:$0xff]
        %v4706 = vld [vmem:[#allocation5 + $0x1a0] sm:$0xff]
        %v4707 = vmax.f32 %v4671, %v4673
        %v4708 = vmax.f32 %v4672, %v4674
        %v4709 = vmax.f32 %v4673, %v4675
        %v4710 = vmax.f32 %v4674, %v4676
        %v4711 = vmax.f32 %v4675, %v4677
        %v4712 = vmax.f32 %v4676, %v4678
        %v4713 = vmax.f32 %v4677, %v4679
        %v4714 = vmax.f32 %v4678, %v4680
        %v4715 = vmax.f32 %v4679, %v4681
        %v4716 = vmax.f32 %v4680, %v4682
        %v4717 = vmax.f32 %v4681, %v4683
        %v4718 = vmax.f32 %v4682, %v4684
        %v4719 = vmax.f32 %v4683, %v4685
        %v4720 = vmax.f32 %v4684, %v4686
        %v4721 = vmax.f32 %v4685, %v4687
        %v4722 = vmax.f32 %v4686, %v4688
        %v4723 = vmax.f32 %v4687, %v4689
        %v4724 = vmax.f32 %v4688, %v4690
        %v4725 = vmax.f32 %v4689, %v4691
        %v4726 = vmax.f32 %v4690, %v4692
        %v4727 = vmax.f32 %v4691, %v4693
        %v4728 = vmax.f32 %v4692, %v4694
        %v4729 = vmax.f32 %v4693, %v4695
        %v4730 = vmax.f32 %v4694, %v4696
        %v4731 = vmax.f32 %v4695, %v4697
        %v4732 = vmax.f32 %v4696, %v4698
        %v4733 = vmax.f32 %v4697, %v4699
        %v4734 = vmax.f32 %v4698, %v4700
        %v4735 = vmax.f32 %v4699, %v4701
        %v4736 = vmax.f32 %v4700, %v4702
        %v4737 = vmax.f32 %v4701, %v4703
        %v4738 = vmax.f32 %v4702, %v4704
        %v4739 = vmax.f32 %v4707, %v4675
        %v4740 = vmax.f32 %v4708, %v4676
        %v4741 = vmax.f32 %v4709, %v4677
        %v4742 = vmax.f32 %v4710, %v4678
        %v4743 = vmax.f32 %v4711, %v4679
        %v4744 = vmax.f32 %v4712, %v4680
        %v4745 = vmax.f32 %v4713, %v4681
        %v4746 = vmax.f32 %v4714, %v4682
        %v4747 = vmax.f32 %v4715, %v4683
        %v4748 = vmax.f32 %v4716, %v4684
        %v4749 = vmax.f32 %v4717, %v4685
        %v4750 = vmax.f32 %v4718, %v4686
        %v4751 = vmax.f32 %v4719, %v4687
        %v4752 = vmax.f32 %v4720, %v4688
        %v4753 = vmax.f32 %v4721, %v4689
        %v4754 = vmax.f32 %v4722, %v4690
        %v4755 = vmax.f32 %v4723, %v4691
        %v4756 = vmax.f32 %v4724, %v4692
        %v4757 = vmax.f32 %v4725, %v4693
        %v4758 = vmax.f32 %v4726, %v4694
        %v4759 = vmax.f32 %v4727, %v4695
        %v4760 = vmax.f32 %v4728, %v4696
        %v4761 = vmax.f32 %v4729, %v4697
        %v4762 = vmax.f32 %v4730, %v4698
        %v4763 = vmax.f32 %v4731, %v4699
        %v4764 = vmax.f32 %v4732, %v4700
        %v4765 = vmax.f32 %v4733, %v4701
        %v4766 = vmax.f32 %v4734, %v4702
        %v4767 = vmax.f32 %v4735, %v4703
        %v4768 = vmax.f32 %v4736, %v4704
        %v4769 = vmax.f32 %v4737, %v4705
        %v4770 = vmax.f32 %v4738, %v4706
        %v4771 = vld [vmem:[#allocation5 + $0x1] sm:$0xff]
        %v4772 = vld [vmem:[#allocation5 + $0x9] sm:$0xff]
        %v4773 = vld [vmem:[#allocation5 + $0x19] sm:$0xff]
        %v4774 = vld [vmem:[#allocation5 + $0x21] sm:$0xff]
        %v4775 = vld [vmem:[#allocation5 + $0x31] sm:$0xff]
        %v4776 = vld [vmem:[#allocation5 + $0x39] sm:$0xff]
        %v4777 = vld [vmem:[#allocation5 + $0x49] sm:$0xff]
        %v4778 = vld [vmem:[#allocation5 + $0x51] sm:$0xff]
        %v4779 = vld [vmem:[#allocation5 + $0x61] sm:$0xff]
        %v4780 = vld [vmem:[#allocation5 + $0x69] sm:$0xff]
        %v4781 = vld [vmem:[#allocation5 + $0x79] sm:$0xff]
        %v4782 = vld [vmem:[#allocation5 + $0x81] sm:$0xff]
        %v4783 = vld [vmem:[#allocation5 + $0x91] sm:$0xff]
        %v4784 = vld [vmem:[#allocation5 + $0x99] sm:$0xff]
        %v4785 = vld [vmem:[#allocation5 + $0xa9] sm:$0xff]
        %v4786 = vld [vmem:[#allocation5 + $0xb1] sm:$0xff]
        %v4787 = vld [vmem:[#allocation5 + $0xc1] sm:$0xff]
        %v4788 = vld [vmem:[#allocation5 + $0xc9] sm:$0xff]
        %v4789 = vld [vmem:[#allocation5 + $0xd9] sm:$0xff]
        %v4790 = vld [vmem:[#allocation5 + $0xe1] sm:$0xff]
        %v4791 = vld [vmem:[#allocation5 + $0xf1] sm:$0xff]
        %v4792 = vld [vmem:[#allocation5 + $0xf9] sm:$0xff]
        %v4793 = vld [vmem:[#allocation5 + $0x109] sm:$0xff]
        %v4794 = vld [vmem:[#allocation5 + $0x111] sm:$0xff]
        %v4795 = vld [vmem:[#allocation5 + $0x121] sm:$0xff]
        %v4796 = vld [vmem:[#allocation5 + $0x129] sm:$0xff]
        %v4797 = vld [vmem:[#allocation5 + $0x139] sm:$0xff]
        %v4798 = vld [vmem:[#allocation5 + $0x141] sm:$0xff]
        %v4799 = vld [vmem:[#allocation5 + $0x151] sm:$0xff]
        %v4800 = vld [vmem:[#allocation5 + $0x159] sm:$0xff]
        %v4801 = vld [vmem:[#allocation5 + $0x169] sm:$0xff]
        %v4802 = vld [vmem:[#allocation5 + $0x171] sm:$0xff]
        %v4803 = vld [vmem:[#allocation5 + $0x181] sm:$0xff]
        %v4804 = vld [vmem:[#allocation5 + $0x189] sm:$0xff]
        %v4805 = vld [vmem:[#allocation5 + $0x199] sm:$0xff]
        %v4806 = vld [vmem:[#allocation5 + $0x1a1] sm:$0xff]
        %v4807 = vmax.f32 %v4739, %v4771
        %v4808 = vmax.f32 %v4740, %v4772
        %v4809 = vmax.f32 %v4741, %v4773
        %v4810 = vmax.f32 %v4742, %v4774
        %v4811 = vmax.f32 %v4743, %v4775
        %v4812 = vmax.f32 %v4744, %v4776
        %v4813 = vmax.f32 %v4745, %v4777
        %v4814 = vmax.f32 %v4746, %v4778
        %v4815 = vmax.f32 %v4747, %v4779
        %v4816 = vmax.f32 %v4748, %v4780
        %v4817 = vmax.f32 %v4749, %v4781
        %v4818 = vmax.f32 %v4750, %v4782
        %v4819 = vmax.f32 %v4751, %v4783
        %v4820 = vmax.f32 %v4752, %v4784
        %v4821 = vmax.f32 %v4753, %v4785
        %v4822 = vmax.f32 %v4754, %v4786
        %v4823 = vmax.f32 %v4755, %v4787
        %v4824 = vmax.f32 %v4756, %v4788
        %v4825 = vmax.f32 %v4757, %v4789
        %v4826 = vmax.f32 %v4758, %v4790
        %v4827 = vmax.f32 %v4759, %v4791
        %v4828 = vmax.f32 %v4760, %v4792
        %v4829 = vmax.f32 %v4761, %v4793
        %v4830 = vmax.f32 %v4762, %v4794
        %v4831 = vmax.f32 %v4763, %v4795
        %v4832 = vmax.f32 %v4764, %v4796
        %v4833 = vmax.f32 %v4765, %v4797
        %v4834 = vmax.f32 %v4766, %v4798
        %v4835 = vmax.f32 %v4767, %v4799
        %v4836 = vmax.f32 %v4768, %v4800
        %v4837 = vmax.f32 %v4769, %v4801
        %v4838 = vmax.f32 %v4770, %v4802
        %v4839 = vmax.f32 %v4807, %v4773
        %v4840 = vmax.f32 %v4808, %v4774
        %v4841 = vmax.f32 %v4809, %v4775
        %v4842 = vmax.f32 %v4810, %v4776
        %v4843 = vmax.f32 %v4811, %v4777
        %v4844 = vmax.f32 %v4812, %v4778
        %v4845 = vmax.f32 %v4813, %v4779
        %v4846 = vmax.f32 %v4814, %v4780
        %v4847 = vmax.f32 %v4815, %v4781
        %v4848 = vmax.f32 %v4816, %v4782
        %v4849 = vmax.f32 %v4817, %v4783
        %v4850 = vmax.f32 %v4818, %v4784
        %v4851 = vmax.f32 %v4819, %v4785
        %v4852 = vmax.f32 %v4820, %v4786
        %v4853 = vmax.f32 %v4821, %v4787
        %v4854 = vmax.f32 %v4822, %v4788
        %v4855 = vmax.f32 %v4823, %v4789
        %v4856 = vmax.f32 %v4824, %v4790
        %v4857 = vmax.f32 %v4825, %v4791
        %v4858 = vmax.f32 %v4826, %v4792
        %v4859 = vmax.f32 %v4827, %v4793
        %v4860 = vmax.f32 %v4828, %v4794
        %v4861 = vmax.f32 %v4829, %v4795
        %v4862 = vmax.f32 %v4830, %v4796
        %v4863 = vmax.f32 %v4831, %v4797
        %v4864 = vmax.f32 %v4832, %v4798
        %v4865 = vmax.f32 %v4833, %v4799
        %v4866 = vmax.f32 %v4834, %v4800
        %v4867 = vmax.f32 %v4835, %v4801
        %v4868 = vmax.f32 %v4836, %v4802
        %v4869 = vmax.f32 %v4837, %v4803
        %v4870 = vmax.f32 %v4838, %v4804
        %v4871 = vmax.f32 %v4839, %v4775
        %v4872 = vmax.f32 %v4840, %v4776
        %v4873 = vmax.f32 %v4841, %v4777
        %v4874 = vmax.f32 %v4842, %v4778
        %v4875 = vmax.f32 %v4843, %v4779
        %v4876 = vmax.f32 %v4844, %v4780
        %v4877 = vmax.f32 %v4845, %v4781
        %v4878 = vmax.f32 %v4846, %v4782
        %v4879 = vmax.f32 %v4847, %v4783
        %v4880 = vmax.f32 %v4848, %v4784
        %v4881 = vmax.f32 %v4849, %v4785
        %v4882 = vmax.f32 %v4850, %v4786
        %v4883 = vmax.f32 %v4851, %v4787
        %v4884 = vmax.f32 %v4852, %v4788
        %v4885 = vmax.f32 %v4853, %v4789
        %v4886 = vmax.f32 %v4854, %v4790
        %v4887 = vmax.f32 %v4855, %v4791
        %v4888 = vmax.f32 %v4856, %v4792
        %v4889 = vmax.f32 %v4857, %v4793
        %v4890 = vmax.f32 %v4858, %v4794
        %v4891 = vmax.f32 %v4859, %v4795
        %v4892 = vmax.f32 %v4860, %v4796
        %v4893 = vmax.f32 %v4861, %v4797
        %v4894 = vmax.f32 %v4862, %v4798
        %v4895 = vmax.f32 %v4863, %v4799
        %v4896 = vmax.f32 %v4864, %v4800
        %v4897 = vmax.f32 %v4865, %v4801
        %v4898 = vmax.f32 %v4866, %v4802
        %v4899 = vmax.f32 %v4867, %v4803
        %v4900 = vmax.f32 %v4868, %v4804
        %v4901 = vmax.f32 %v4869, %v4805
        %v4902 = vmax.f32 %v4870, %v4806
        %v4903 = vld [vmem:[#allocation5 + $0x2] sm:$0xff]
        %v4904 = vld [vmem:[#allocation5 + $0xa] sm:$0xff]
        %v4905 = vld [vmem:[#allocation5 + $0x1a] sm:$0xff]
        %v4906 = vld [vmem:[#allocation5 + $0x22] sm:$0xff]
        %v4907 = vld [vmem:[#allocation5 + $0x32] sm:$0xff]
        %v4908 = vld [vmem:[#allocation5 + $0x3a] sm:$0xff]
        %v4909 = vld [vmem:[#allocation5 + $0x4a] sm:$0xff]
        %v4910 = vld [vmem:[#allocation5 + $0x52] sm:$0xff]
        %v4911 = vld [vmem:[#allocation5 + $0x62] sm:$0xff]
        %v4912 = vld [vmem:[#allocation5 + $0x6a] sm:$0xff]
        %v4913 = vld [vmem:[#allocation5 + $0x7a] sm:$0xff]
        %v4914 = vld [vmem:[#allocation5 + $0x82] sm:$0xff]
        %v4915 = vld [vmem:[#allocation5 + $0x92] sm:$0xff]
        %v4916 = vld [vmem:[#allocation5 + $0x9a] sm:$0xff]
        %v4917 = vld [vmem:[#allocation5 + $0xaa] sm:$0xff]
        %v4918 = vld [vmem:[#allocation5 + $0xb2] sm:$0xff]
        %v4919 = vld [vmem:[#allocation5 + $0xc2] sm:$0xff]
        %v4920 = vld [vmem:[#allocation5 + $0xca] sm:$0xff]
        %v4921 = vld [vmem:[#allocation5 + $0xda] sm:$0xff]
        %v4922 = vld [vmem:[#allocation5 + $0xe2] sm:$0xff]
        %v4923 = vld [vmem:[#allocation5 + $0xf2] sm:$0xff]
        %v4924 = vld [vmem:[#allocation5 + $0xfa] sm:$0xff]
        %v4925 = vld [vmem:[#allocation5 + $0x10a] sm:$0xff]
        %v4926 = vld [vmem:[#allocation5 + $0x112] sm:$0xff]
        %v4927 = vld [vmem:[#allocation5 + $0x122] sm:$0xff]
        %v4928 = vld [vmem:[#allocation5 + $0x12a] sm:$0xff]
        %v4929 = vld [vmem:[#allocation5 + $0x13a] sm:$0xff]
        %v4930 = vld [vmem:[#allocation5 + $0x142] sm:$0xff]
        %v4931 = vld [vmem:[#allocation5 + $0x152] sm:$0xff]
        %v4932 = vld [vmem:[#allocation5 + $0x15a] sm:$0xff]
        %v4933 = vld [vmem:[#allocation5 + $0x16a] sm:$0xff]
        %v4934 = vld [vmem:[#allocation5 + $0x172] sm:$0xff]
        %v4935 = vld [vmem:[#allocation5 + $0x182] sm:$0xff]
        %v4936 = vld [vmem:[#allocation5 + $0x18a] sm:$0xff]
        %v4937 = vld [vmem:[#allocation5 + $0x19a] sm:$0xff]
        %v4938 = vld [vmem:[#allocation5 + $0x1a2] sm:$0xff]
        %v4939 = vmax.f32 %v4871, %v4903
        %v4940 = vmax.f32 %v4872, %v4904
        %v4941 = vmax.f32 %v4873, %v4905
        %v4942 = vmax.f32 %v4874, %v4906
        %v4943 = vmax.f32 %v4875, %v4907
        %v4944 = vmax.f32 %v4876, %v4908
        %v4945 = vmax.f32 %v4877, %v4909
        %v4946 = vmax.f32 %v4878, %v4910
        %v4947 = vmax.f32 %v4879, %v4911
        %v4948 = vmax.f32 %v4880, %v4912
        %v4949 = vmax.f32 %v4881, %v4913
        %v4950 = vmax.f32 %v4882, %v4914
        %v4951 = vmax.f32 %v4883, %v4915
        %v4952 = vmax.f32 %v4884, %v4916
        %v4953 = vmax.f32 %v4885, %v4917
        %v4954 = vmax.f32 %v4886, %v4918
        %v4955 = vmax.f32 %v4887, %v4919
        %v4956 = vmax.f32 %v4888, %v4920
        %v4957 = vmax.f32 %v4889, %v4921
        %v4958 = vmax.f32 %v4890, %v4922
        %v4959 = vmax.f32 %v4891, %v4923
        %v4960 = vmax.f32 %v4892, %v4924
        %v4961 = vmax.f32 %v4893, %v4925
        %v4962 = vmax.f32 %v4894, %v4926
        %v4963 = vmax.f32 %v4895, %v4927
        %v4964 = vmax.f32 %v4896, %v4928
        %v4965 = vmax.f32 %v4897, %v4929
        %v4966 = vmax.f32 %v4898, %v4930
        %v4967 = vmax.f32 %v4899, %v4931
        %v4968 = vmax.f32 %v4900, %v4932
        %v4969 = vmax.f32 %v4901, %v4933
        %v4970 = vmax.f32 %v4902, %v4934
        %v4971 = vmax.f32 %v4939, %v4905
        %v4972 = vmax.f32 %v4940, %v4906
        %v4973 = vmax.f32 %v4941, %v4907
        %v4974 = vmax.f32 %v4942, %v4908
        %v4975 = vmax.f32 %v4943, %v4909
        %v4976 = vmax.f32 %v4944, %v4910
        %v4977 = vmax.f32 %v4945, %v4911
        %v4978 = vmax.f32 %v4946, %v4912
        %v4979 = vmax.f32 %v4947, %v4913
        %v4980 = vmax.f32 %v4948, %v4914
        %v4981 = vmax.f32 %v4949, %v4915
        %v4982 = vmax.f32 %v4950, %v4916
        %v4983 = vmax.f32 %v4951, %v4917
        %v4984 = vmax.f32 %v4952, %v4918
        %v4985 = vmax.f32 %v4953, %v4919
        %v4986 = vmax.f32 %v4954, %v4920
        %v4987 = vmax.f32 %v4955, %v4921
        %v4988 = vmax.f32 %v4956, %v4922
        %v4989 = vmax.f32 %v4957, %v4923
        %v4990 = vmax.f32 %v4958, %v4924
        %v4991 = vmax.f32 %v4959, %v4925
        %v4992 = vmax.f32 %v4960, %v4926
        %v4993 = vmax.f32 %v4961, %v4927
        %v4994 = vmax.f32 %v4962, %v4928
        %v4995 = vmax.f32 %v4963, %v4929
        %v4996 = vmax.f32 %v4964, %v4930
        %v4997 = vmax.f32 %v4965, %v4931
        %v4998 = vmax.f32 %v4966, %v4932
        %v4999 = vmax.f32 %v4967, %v4933
        %v5000 = vmax.f32 %v4968, %v4934
        %v5001 = vmax.f32 %v4969, %v4935
        %v5002 = vmax.f32 %v4970, %v4936
        %v5003 = vmax.f32 %v4971, %v4907
        %v5004 = vmax.f32 %v4972, %v4908
        %v5005 = vmax.f32 %v4973, %v4909
        %v5006 = vmax.f32 %v4974, %v4910
        %v5007 = vmax.f32 %v4975, %v4911
        %v5008 = vmax.f32 %v4976, %v4912
        %v5009 = vmax.f32 %v4977, %v4913
        %v5010 = vmax.f32 %v4978, %v4914
        %v5011 = vmax.f32 %v4979, %v4915
        %v5012 = vmax.f32 %v4980, %v4916
        %v5013 = vmax.f32 %v4981, %v4917
        %v5014 = vmax.f32 %v4982, %v4918
        %v5015 = vmax.f32 %v4983, %v4919
        %v5016 = vmax.f32 %v4984, %v4920
        %v5017 = vmax.f32 %v4985, %v4921
        %v5018 = vmax.f32 %v4986, %v4922
        %v5019 = vmax.f32 %v4987, %v4923
        %v5020 = vmax.f32 %v4988, %v4924
        %v5021 = vmax.f32 %v4989, %v4925
        %v5022 = vmax.f32 %v4990, %v4926
        %v5023 = vmax.f32 %v4991, %v4927
        %v5024 = vmax.f32 %v4992, %v4928
        %v5025 = vmax.f32 %v4993, %v4929
        %v5026 = vmax.f32 %v4994, %v4930
        %v5027 = vmax.f32 %v4995, %v4931
        %v5028 = vmax.f32 %v4996, %v4932
        %v5029 = vmax.f32 %v4997, %v4933
        %v5030 = vmax.f32 %v4998, %v4934
        %v5031 = vmax.f32 %v4999, %v4935
        %v5032 = vmax.f32 %v5000, %v4936
        %v5033 = vmax.f32 %v5001, %v4937
        %v5034 = vmax.f32 %v5002, %v4938
        %v5035 = vpack.c.bf16 %v5004, %v5003
        %v5036 = vpack.c.bf16 %v5006, %v5005
        %v5037 = vpack.c.bf16 %v5008, %v5007
        %v5038 = vpack.c.bf16 %v5010, %v5009
        %v5039 = vpack.c.bf16 %v5012, %v5011
        %v5040 = vpack.c.bf16 %v5014, %v5013
        %v5041 = vpack.c.bf16 %v5016, %v5015
        %v5042 = vpack.c.bf16 %v5018, %v5017
        %v5043 = vpack.c.bf16 %v5020, %v5019
        %v5044 = vpack.c.bf16 %v5022, %v5021
        %v5045 = vpack.c.bf16 %v5024, %v5023
        %v5046 = vpack.c.bf16 %v5026, %v5025
        %v5047 = vpack.c.bf16 %v5028, %v5027
        %v5048 = vpack.c.bf16 %v5030, %v5029
        %v5049 = vpack.c.bf16 %v5032, %v5031
        %v5050 = vpack.c.bf16 %v5034, %v5033
        %v5051 = vld [vmem:[%s13] sm:$0xf]
        %v5053 = vsel %vm570, %v5035, 0
        %v5056 = vsel %vm570, %v5036, 0
        %v5059 = vsel %vm570, %v5037, 0
        %v5062 = vsel %vm570, %v5038, 0
        %v5065 = vsel %vm570, %v5039, 0
        %v5068 = vsel %vm570, %v5040, 0
        %v5071 = vsel %vm570, %v5041, 0
        %v5074 = vsel %vm570, %v5042, 0
        %v5077 = vsel %vm570, %v5043, 0
        %v5080 = vsel %vm570, %v5044, 0
        %v5083 = vsel %vm570, %v5045, 0
        %v5086 = vsel %vm570, %v5046, 0
        %v5089 = vsel %vm570, %v5047, 0
        %v5092 = vsel %vm570, %v5048, 0
        %v5095 = vsel %vm570, %v5049, 0
        %v5098 = vsel %vm570, %v5050, 0
        %v5101 = vsel %vm619, %v5051, 0
        %5103 = vmatprep.subr.bf16.mxu0 0
        %5104 = vmatpush1.bf16.msra.mxu0 %v5101
        %5105 = vmatprep.subr.bf16.mxu0 0
        %5106 = vmatpush1.bf16.msra.mxu0 0
        %5107 = vmatprep.subr.bf16.mxu0 0
        %5108 = vmatpush1.bf16.msra.mxu0 0
        %5109 = vmatprep.subr.bf16.mxu0 0
        %5110 = vmatpush1.bf16.msra.mxu0 0
        %5111 = vmatprep.subr.bf16.mxu0 0
        %5112 = vmatpush1.bf16.msra.mxu0 0
        %5113 = vmatprep.subr.bf16.mxu0 0
        %5114 = vmatpush1.bf16.msra.mxu0 0
        %5115 = vmatprep.subr.bf16.mxu0 0
        %5116 = vmatpush1.bf16.msra.mxu0 0
        %5117 = vmatprep.subr.bf16.mxu0 0
        %5118 = vmatpush1.bf16.msra.mxu0 0
        %5119 = vmatprep.subr.bf16.mxu0 0
        %5120 = vmatpush1.bf16.msra.mxu0 0
        %5121 = vmatprep.subr.bf16.mxu0 0
        %5122 = vmatpush1.bf16.msra.mxu0 0
        %5123 = vmatprep.subr.bf16.mxu0 0
        %5124 = vmatpush1.bf16.msra.mxu0 0
        %5125 = vmatprep.subr.bf16.mxu0 0
        %5126 = vmatpush1.bf16.msra.mxu0 0
        %5127 = vmatprep.subr.bf16.mxu0 0
        %5128 = vmatpush1.bf16.msra.mxu0 0
        %5129 = vmatprep.subr.bf16.mxu0 0
        %5130 = vmatpush1.bf16.msra.mxu0 0
        %5131 = vmatprep.subr.bf16.mxu0 0
        %5132 = vmatpush1.bf16.msra.mxu0 0
        %5133 = vmatprep.subr.bf16.mxu0 0
        %5134 = vmatpush1.bf16.msra.mxu0 0
        %5135 = vmatprep.mubr.bf16.mxu0 0
        %5136 = vmatmul.mubr.bf16.gmra.mrb[0].mxu0 %v5053
        %v5137 = vpop.f32.mrb[0].mxu0
        %v5138 = vadd.f32 0.0, %v5137
        %v5139 = vpop.f32.mrb[0].mxu0
        %v5140 = vpop.f32.mrb[0].mxu0
        %v5141 = vadd.f32 0.0, %v5140
        %v5142 = vpop.f32.mrb[0].mxu0
        %5143 = vmatprep.mubr.bf16.mxu0 0
        %5144 = vmatmul.mubr.bf16.gmra.mrb[0].mxu0 %v5056
        %v5145 = vpop.f32.mrb[0].mxu0
        %v5146 = vadd.f32 0.0, %v5145
        %v5147 = vpop.f32.mrb[0].mxu0
        %v5148 = vpop.f32.mrb[0].mxu0
        %v5149 = vadd.f32 0.0, %v5148
        %v5150 = vpop.f32.mrb[0].mxu0
        %5151 = vmatprep.mubr.bf16.mxu0 0
        %5152 = vmatmul.mubr.bf16.gmra.mrb[0].mxu0 %v5059
        %v5153 = vpop.f32.mrb[0].mxu0
        %v5154 = vadd.f32 0.0, %v5153
        %v5155 = vpop.f32.mrb[0].mxu0
        %v5156 = vpop.f32.mrb[0].mxu0
        %v5157 = vadd.f32 0.0, %v5156
        %v5158 = vpop.f32.mrb[0].mxu0
        %5159 = vmatprep.mubr.bf16.mxu0 0
        %5160 = vmatmul.mubr.bf16.gmra.mrb[0].mxu0 %v5062
        %v5161 = vpop.f32.mrb[0].mxu0
        %v5162 = vadd.f32 0.0, %v5161
        %v5163 = vpop.f32.mrb[0].mxu0
        %v5164 = vpop.f32.mrb[0].mxu0
        %v5165 = vadd.f32 0.0, %v5164
        %v5166 = vpop.f32.mrb[0].mxu0
        %5167 = vmatprep.mubr.bf16.mxu0 0
        %5168 = vmatmul.mubr.bf16.gmra.mrb[0].mxu0 %v5065
        %v5169 = vpop.f32.mrb[0].mxu0
        %v5170 = vadd.f32 0.0, %v5169
        %v5171 = vpop.f32.mrb[0].mxu0
        %v5172 = vpop.f32.mrb[0].mxu0
        %v5173 = vadd.f32 0.0, %v5172
        %v5174 = vpop.f32.mrb[0].mxu0
        %5175 = vmatprep.mubr.bf16.mxu0 0
        %5176 = vmatmul.mubr.bf16.gmra.mrb[0].mxu0 %v5068
        %v5177 = vpop.f32.mrb[0].mxu0
        %v5178 = vadd.f32 0.0, %v5177
        %v5179 = vpop.f32.mrb[0].mxu0
        %v5180 = vpop.f32.mrb[0].mxu0
        %v5181 = vadd.f32 0.0, %v5180
        %v5182 = vpop.f32.mrb[0].mxu0
        %5183 = vmatprep.mubr.bf16.mxu0 0
        %5184 = vmatmul.mubr.bf16.gmra.mrb[0].mxu0 %v5071
        %v5185 = vpop.f32.mrb[0].mxu0
        %v5186 = vadd.f32 0.0, %v5185
        %v5187 = vpop.f32.mrb[0].mxu0
        %v5188 = vpop.f32.mrb[0].mxu0
        %v5189 = vadd.f32 0.0, %v5188
        %v5190 = vpop.f32.mrb[0].mxu0
        %5191 = vmatprep.mubr.bf16.mxu0 0
        %5192 = vmatmul.mubr.bf16.gmra.mrb[0].mxu0 %v5074
        %v5193 = vpop.f32.mrb[0].mxu0
        %v5194 = vadd.f32 0.0, %v5193
        %v5195 = vpop.f32.mrb[0].mxu0
        %v5196 = vpop.f32.mrb[0].mxu0
        %v5197 = vadd.f32 0.0, %v5196
        %v5198 = vpop.f32.mrb[0].mxu0
        %5199 = vmatprep.mubr.bf16.mxu0 0
        %5200 = vmatmul.mubr.bf16.gmra.mrb[0].mxu0 %v5077
        %v5201 = vpop.f32.mrb[0].mxu0
        %v5202 = vadd.f32 0.0, %v5201
        %v5203 = vpop.f32.mrb[0].mxu0
        %v5204 = vpop.f32.mrb[0].mxu0
        %v5205 = vadd.f32 0.0, %v5204
        %v5206 = vpop.f32.mrb[0].mxu0
        %5207 = vmatprep.mubr.bf16.mxu0 0
        %5208 = vmatmul.mubr.bf16.gmra.mrb[0].mxu0 %v5080
        %v5209 = vpop.f32.mrb[0].mxu0
        %v5210 = vadd.f32 0.0, %v5209
        %v5211 = vpop.f32.mrb[0].mxu0
        %v5212 = vpop.f32.mrb[0].mxu0
        %v5213 = vadd.f32 0.0, %v5212
        %v5214 = vpop.f32.mrb[0].mxu0
        %5215 = vmatprep.mubr.bf16.mxu0 0
        %5216 = vmatmul.mubr.bf16.gmra.mrb[0].mxu0 %v5083
        %v5217 = vpop.f32.mrb[0].mxu0
        %v5218 = vadd.f32 0.0, %v5217
        %v5219 = vpop.f32.mrb[0].mxu0
        %v5220 = vpop.f32.mrb[0].mxu0
        %v5221 = vadd.f32 0.0, %v5220
        %v5222 = vpop.f32.mrb[0].mxu0
        %5223 = vmatprep.mubr.bf16.mxu0 0
        %5224 = vmatmul.mubr.bf16.gmra.mrb[0].mxu0 %v5086
        %v5225 = vpop.f32.mrb[0].mxu0
        %v5226 = vadd.f32 0.0, %v5225
        %v5227 = vpop.f32.mrb[0].mxu0
        %v5228 = vpop.f32.mrb[0].mxu0
        %v5229 = vadd.f32 0.0, %v5228
        %v5230 = vpop.f32.mrb[0].mxu0
        %5231 = vmatprep.mubr.bf16.mxu0 0
        %5232 = vmatmul.mubr.bf16.gmra.mrb[0].mxu0 %v5089
        %v5233 = vpop.f32.mrb[0].mxu0
        %v5234 = vadd.f32 0.0, %v5233
        %v5235 = vpop.f32.mrb[0].mxu0
        %v5236 = vpop.f32.mrb[0].mxu0
        %v5237 = vadd.f32 0.0, %v5236
        %v5238 = vpop.f32.mrb[0].mxu0
        %5239 = vmatprep.mubr.bf16.mxu0 0
        %5240 = vmatmul.mubr.bf16.gmra.mrb[0].mxu0 %v5092
        %v5241 = vpop.f32.mrb[0].mxu0
        %v5242 = vadd.f32 0.0, %v5241
        %v5243 = vpop.f32.mrb[0].mxu0
        %v5244 = vpop.f32.mrb[0].mxu0
        %v5245 = vadd.f32 0.0, %v5244
        %v5246 = vpop.f32.mrb[0].mxu0
        %5247 = vmatprep.mubr.bf16.mxu0 0
        %5248 = vmatmul.mubr.bf16.gmra.mrb[0].mxu0 %v5095
        %v5249 = vpop.f32.mrb[0].mxu0
        %v5250 = vadd.f32 0.0, %v5249
        %v5251 = vpop.f32.mrb[0].mxu0
        %v5252 = vpop.f32.mrb[0].mxu0
        %v5253 = vadd.f32 0.0, %v5252
        %v5254 = vpop.f32.mrb[0].mxu0
        %5255 = vmatprep.mubr.bf16.mxu0 0
        %5256 = vmatmul.mubr.bf16.gmra.mrb[0].mxu0 %v5098
        %v5257 = vpop.f32.mrb[0].mxu0
        %v5258 = vadd.f32 0.0, %v5257
        %v5259 = vpop.f32.mrb[0].mxu0
        %v5260 = vpop.f32.mrb[0].mxu0
        %v5261 = vadd.f32 0.0, %v5260
        %v5262 = vpop.f32.mrb[0].mxu0
        %5263 = vdwg.mxu0
        %v5264 = vld [vmem:[%s14] sm:$0x1]
        %v5266 = vlaneseq
        %v5267 = vshrl.u32 %v5266, 7
        %v5268 = vsub.s32 0, %v5267
        %v5269 = vrot.slane %v5264, %v5268
        %v5271 = vmul.f32 %v5138, %v5269
        %v5272 = vmul.f32 %v5141, %v5269
        %v5273 = vmul.f32 %v5146, %v5269
        %v5274 = vmul.f32 %v5149, %v5269
        %v5275 = vmul.f32 %v5154, %v5269
        %v5276 = vmul.f32 %v5157, %v5269
        %v5277 = vmul.f32 %v5162, %v5269
        %v5278 = vmul.f32 %v5165, %v5269
        %v5279 = vmul.f32 %v5170, %v5269
        %v5280 = vmul.f32 %v5173, %v5269
        %v5281 = vmul.f32 %v5178, %v5269
        %v5282 = vmul.f32 %v5181, %v5269
        %v5283 = vmul.f32 %v5186, %v5269
        %v5284 = vmul.f32 %v5189, %v5269
        %v5285 = vmul.f32 %v5194, %v5269
        %v5286 = vmul.f32 %v5197, %v5269
        %v5287 = vmul.f32 %v5202, %v5269
        %v5288 = vmul.f32 %v5205, %v5269
        %v5289 = vmul.f32 %v5210, %v5269
        %v5290 = vmul.f32 %v5213, %v5269
        %v5291 = vmul.f32 %v5218, %v5269
        %v5292 = vmul.f32 %v5221, %v5269
        %v5293 = vmul.f32 %v5226, %v5269
        %v5294 = vmul.f32 %v5229, %v5269
        %v5295 = vmul.f32 %v5234, %v5269
        %v5296 = vmul.f32 %v5237, %v5269
        %v5297 = vmul.f32 %v5242, %v5269
        %v5298 = vmul.f32 %v5245, %v5269
        %v5299 = vmul.f32 %v5250, %v5269
        %v5300 = vmul.f32 %v5253, %v5269
        %v5301 = vmul.f32 %v5258, %v5269
        %v5302 = vmul.f32 %v5261, %v5269
        %v5303 = vld [vmem:[%s15] sm:$0x1]
        %v5305 = vlaneseq
        %v5306 = vshrl.u32 %v5305, 7
        %v5307 = vsub.s32 0, %v5306
        %v5308 = vrot.slane %v5303, %v5307
        %v5310 = vadd.f32 %v5271, %v5308
        %v5311 = vadd.f32 %v5272, %v5308
        %v5312 = vadd.f32 %v5273, %v5308
        %v5313 = vadd.f32 %v5274, %v5308
        %v5314 = vadd.f32 %v5275, %v5308
        %v5315 = vadd.f32 %v5276, %v5308
        %v5316 = vadd.f32 %v5277, %v5308
        %v5317 = vadd.f32 %v5278, %v5308
        %v5318 = vadd.f32 %v5279, %v5308
        %v5319 = vadd.f32 %v5280, %v5308
        %v5320 = vadd.f32 %v5281, %v5308
        %v5321 = vadd.f32 %v5282, %v5308
        %v5322 = vadd.f32 %v5283, %v5308
        %v5323 = vadd.f32 %v5284, %v5308
        %v5324 = vadd.f32 %v5285, %v5308
        %v5325 = vadd.f32 %v5286, %v5308
        %v5326 = vadd.f32 %v5287, %v5308
        %v5327 = vadd.f32 %v5288, %v5308
        %v5328 = vadd.f32 %v5289, %v5308
        %v5329 = vadd.f32 %v5290, %v5308
        %v5330 = vadd.f32 %v5291, %v5308
        %v5331 = vadd.f32 %v5292, %v5308
        %v5332 = vadd.f32 %v5293, %v5308
        %v5333 = vadd.f32 %v5294, %v5308
        %v5334 = vadd.f32 %v5295, %v5308
        %v5335 = vadd.f32 %v5296, %v5308
        %v5336 = vadd.f32 %v5297, %v5308
        %v5337 = vadd.f32 %v5298, %v5308
        %v5338 = vadd.f32 %v5299, %v5308
        %v5339 = vadd.f32 %v5300, %v5308
        %v5340 = vadd.f32 %v5301, %v5308
        %v5341 = vadd.f32 %v5302, %v5308
        %v5342 = vmax.f32 %v5310, 0.0
        %v5343 = vmax.f32 %v5311, 0.0
        %v5344 = vmax.f32 %v5312, 0.0
        %v5345 = vmax.f32 %v5313, 0.0
        %v5346 = vmax.f32 %v5314, 0.0
        %v5347 = vmax.f32 %v5315, 0.0
        %v5348 = vmax.f32 %v5316, 0.0
        %v5349 = vmax.f32 %v5317, 0.0
        %v5350 = vmax.f32 %v5318, 0.0
        %v5351 = vmax.f32 %v5319, 0.0
        %v5352 = vmax.f32 %v5320, 0.0
        %v5353 = vmax.f32 %v5321, 0.0
        %v5354 = vmax.f32 %v5322, 0.0
        %v5355 = vmax.f32 %v5323, 0.0
        %v5356 = vmax.f32 %v5324, 0.0
        %v5357 = vmax.f32 %v5325, 0.0
        %v5358 = vmax.f32 %v5326, 0.0
        %v5359 = vmax.f32 %v5327, 0.0
        %v5360 = vmax.f32 %v5328, 0.0
        %v5361 = vmax.f32 %v5329, 0.0
        %v5362 = vmax.f32 %v5330, 0.0
        %v5363 = vmax.f32 %v5331, 0.0
        %v5364 = vmax.f32 %v5332, 0.0
        %v5365 = vmax.f32 %v5333, 0.0
        %v5366 = vmax.f32 %v5334, 0.0
        %v5367 = vmax.f32 %v5335, 0.0
        %v5368 = vmax.f32 %v5336, 0.0
        %v5369 = vmax.f32 %v5337, 0.0
        %v5370 = vmax.f32 %v5338, 0.0
        %v5371 = vmax.f32 %v5339, 0.0
        %v5372 = vmax.f32 %v5340, 0.0
        %v5373 = vmax.f32 %v5341, 0.0
        %5406 = vrot.lane.b32.xlu0 %v2157, 16
        %v5407 = vpop.permute.xlu0 %5406
        %5408 = vrot.lane.b32.xlu0 %v2158, 16
        %v5409 = vpop.permute.xlu0 %5408
        %5410 = vrot.lane.b32.xlu0 %v2159, 16
        %v5411 = vpop.permute.xlu0 %5410
        %5412 = vrot.lane.b32.xlu0 %v2160, 16
        %v5413 = vpop.permute.xlu0 %5412
        %5414 = vrot.lane.b32.xlu0 %v2161, 16
        %v5415 = vpop.permute.xlu0 %5414
        %5416 = vrot.lane.b32.xlu0 %v2162, 16
        %v5417 = vpop.permute.xlu0 %5416
        %5418 = vrot.lane.b32.xlu0 %v2163, 16
        %v5419 = vpop.permute.xlu0 %5418
        %5420 = vrot.lane.b32.xlu0 %v2164, 16
        %v5421 = vpop.permute.xlu0 %5420
        %5422 = vrot.lane.b32.xlu0 %v2165, 16
        %v5423 = vpop.permute.xlu0 %5422
        %5424 = vrot.lane.b32.xlu0 %v2166, 16
        %v5425 = vpop.permute.xlu0 %5424
        %5426 = vrot.lane.b32.xlu0 %v2167, 16
        %v5427 = vpop.permute.xlu0 %5426
        %5428 = vrot.lane.b32.xlu0 %v2168, 16
        %v5429 = vpop.permute.xlu0 %5428
        %5430 = vrot.lane.b32.xlu0 %v2169, 16
        %v5431 = vpop.permute.xlu0 %5430
        %5432 = vrot.lane.b32.xlu0 %v2170, 16
        %v5433 = vpop.permute.xlu0 %5432
        %5434 = vrot.lane.b32.xlu0 %v2171, 16
        %v5435 = vpop.permute.xlu0 %5434
        %5436 = vrot.lane.b32.xlu0 %v2172, 16
        %v5437 = vpop.permute.xlu0 %5436
        %5438 = vrot.lane.b32.xlu0 %v2173, 16
        %v5439 = vpop.permute.xlu0 %5438
        %5440 = vrot.lane.b32.xlu0 %v2174, 16
        %v5441 = vpop.permute.xlu0 %5440
        %5442 = vrot.lane.b32.xlu0 %v2175, 16
        %v5443 = vpop.permute.xlu0 %5442
        %5444 = vrot.lane.b32.xlu0 %v2176, 16
        %v5445 = vpop.permute.xlu0 %5444
        %5446 = vrot.lane.b32.xlu0 %v2177, 16
        %v5447 = vpop.permute.xlu0 %5446
        %5448 = vrot.lane.b32.xlu0 %v2178, 16
        %v5449 = vpop.permute.xlu0 %5448
        %5450 = vrot.lane.b32.xlu0 %v2179, 16
        %v5451 = vpop.permute.xlu0 %5450
        %5452 = vrot.lane.b32.xlu0 %v2180, 16
        %v5453 = vpop.permute.xlu0 %5452
        %5454 = vrot.lane.b32.xlu0 %v2181, 16
        %v5455 = vpop.permute.xlu0 %5454
        %5456 = vrot.lane.b32.xlu0 %v2182, 16
        %v5457 = vpop.permute.xlu0 %5456
        %5458 = vrot.lane.b32.xlu0 %v2183, 16
        %v5459 = vpop.permute.xlu0 %5458
        %5460 = vrot.lane.b32.xlu0 %v2184, 16
        %v5461 = vpop.permute.xlu0 %5460
        %5462 = vrot.lane.b32.xlu0 %v2185, 16
        %v5463 = vpop.permute.xlu0 %5462
        %5464 = vrot.lane.b32.xlu0 %v2186, 16
        %v5465 = vpop.permute.xlu0 %5464
        %5466 = vrot.lane.b32.xlu0 %v2187, 16
        %v5467 = vpop.permute.xlu0 %5466
        %5468 = vrot.lane.b32.xlu0 %v2188, 16
        %v5469 = vpop.permute.xlu0 %5468
        %5534 = vrot.lane.b32.xlu0 %v4567, 32
        %v5535 = vpop.permute.xlu0 %5534
        %5536 = vrot.lane.b32.xlu0 %v4568, 32
        %v5537 = vpop.permute.xlu0 %5536
        %5538 = vrot.lane.b32.xlu0 %v4569, 32
        %v5539 = vpop.permute.xlu0 %5538
        %5540 = vrot.lane.b32.xlu0 %v4570, 32
        %v5541 = vpop.permute.xlu0 %5540
        %5542 = vrot.lane.b32.xlu0 %v4571, 32
        %v5543 = vpop.permute.xlu0 %5542
        %5544 = vrot.lane.b32.xlu0 %v4572, 32
        %v5545 = vpop.permute.xlu0 %5544
        %5546 = vrot.lane.b32.xlu0 %v4573, 32
        %v5547 = vpop.permute.xlu0 %5546
        %5548 = vrot.lane.b32.xlu0 %v4574, 32
        %v5549 = vpop.permute.xlu0 %5548
        %5550 = vrot.lane.b32.xlu0 %v4575, 32
        %v5551 = vpop.permute.xlu0 %5550
        %5552 = vrot.lane.b32.xlu0 %v4576, 32
        %v5553 = vpop.permute.xlu0 %5552
        %5554 = vrot.lane.b32.xlu0 %v4577, 32
        %v5555 = vpop.permute.xlu0 %5554
        %5556 = vrot.lane.b32.xlu0 %v4578, 32
        %v5557 = vpop.permute.xlu0 %5556
        %5558 = vrot.lane.b32.xlu0 %v4579, 32
        %v5559 = vpop.permute.xlu0 %5558
        %5560 = vrot.lane.b32.xlu0 %v4580, 32
        %v5561 = vpop.permute.xlu0 %5560
        %5562 = vrot.lane.b32.xlu0 %v4581, 32
        %v5563 = vpop.permute.xlu0 %5562
        %5564 = vrot.lane.b32.xlu0 %v4582, 32
        %v5565 = vpop.permute.xlu0 %5564
        %5566 = vrot.lane.b32.xlu0 %v4583, 32
        %v5567 = vpop.permute.xlu0 %5566
        %5568 = vrot.lane.b32.xlu0 %v4584, 32
        %v5569 = vpop.permute.xlu0 %5568
        %5570 = vrot.lane.b32.xlu0 %v4585, 32
        %v5571 = vpop.permute.xlu0 %5570
        %5572 = vrot.lane.b32.xlu0 %v4586, 32
        %v5573 = vpop.permute.xlu0 %5572
        %5574 = vrot.lane.b32.xlu0 %v4587, 32
        %v5575 = vpop.permute.xlu0 %5574
        %5576 = vrot.lane.b32.xlu0 %v4588, 32
        %v5577 = vpop.permute.xlu0 %5576
        %5578 = vrot.lane.b32.xlu0 %v4589, 32
        %v5579 = vpop.permute.xlu0 %5578
        %5580 = vrot.lane.b32.xlu0 %v4590, 32
        %v5581 = vpop.permute.xlu0 %5580
        %5582 = vrot.lane.b32.xlu0 %v4591, 32
        %v5583 = vpop.permute.xlu0 %5582
        %5584 = vrot.lane.b32.xlu0 %v4592, 32
        %v5585 = vpop.permute.xlu0 %5584
        %5586 = vrot.lane.b32.xlu0 %v4593, 32
        %v5587 = vpop.permute.xlu0 %5586
        %5588 = vrot.lane.b32.xlu0 %v4594, 32
        %v5589 = vpop.permute.xlu0 %5588
        %5590 = vrot.lane.b32.xlu0 %v4595, 32
        %v5591 = vpop.permute.xlu0 %5590
        %5592 = vrot.lane.b32.xlu0 %v4596, 32
        %v5593 = vpop.permute.xlu0 %5592
        %5594 = vrot.lane.b32.xlu0 %v4597, 32
        %v5595 = vpop.permute.xlu0 %5594
        %5596 = vrot.lane.b32.xlu0 %v4598, 32
        %v5597 = vpop.permute.xlu0 %5596
        %5662 = vrot.lane.b32.xlu0 %v5342, 48
        %v5663 = vpop.permute.xlu0 %5662
        %5664 = vrot.lane.b32.xlu0 %v5343, 48
        %v5665 = vpop.permute.xlu0 %5664
        %5666 = vrot.lane.b32.xlu0 %v5344, 48
        %v5667 = vpop.permute.xlu0 %5666
        %5668 = vrot.lane.b32.xlu0 %v5345, 48
        %v5669 = vpop.permute.xlu0 %5668
        %5670 = vrot.lane.b32.xlu0 %v5346, 48
        %v5671 = vpop.permute.xlu0 %5670
        %5672 = vrot.lane.b32.xlu0 %v5347, 48
        %v5673 = vpop.permute.xlu0 %5672
        %5674 = vrot.lane.b32.xlu0 %v5348, 48
        %v5675 = vpop.permute.xlu0 %5674
        %5676 = vrot.lane.b32.xlu0 %v5349, 48
        %v5677 = vpop.permute.xlu0 %5676
        %5678 = vrot.lane.b32.xlu0 %v5350, 48
        %v5679 = vpop.permute.xlu0 %5678
        %5680 = vrot.lane.b32.xlu0 %v5351, 48
        %v5681 = vpop.permute.xlu0 %5680
        %5682 = vrot.lane.b32.xlu0 %v5352, 48
        %v5683 = vpop.permute.xlu0 %5682
        %5684 = vrot.lane.b32.xlu0 %v5353, 48
        %v5685 = vpop.permute.xlu0 %5684
        %5686 = vrot.lane.b32.xlu0 %v5354, 48
        %v5687 = vpop.permute.xlu0 %5686
        %5688 = vrot.lane.b32.xlu0 %v5355, 48
        %v5689 = vpop.permute.xlu0 %5688
        %5690 = vrot.lane.b32.xlu0 %v5356, 48
        %v5691 = vpop.permute.xlu0 %5690
        %5692 = vrot.lane.b32.xlu0 %v5357, 48
        %v5693 = vpop.permute.xlu0 %5692
        %5694 = vrot.lane.b32.xlu0 %v5358, 48
        %v5695 = vpop.permute.xlu0 %5694
        %5696 = vrot.lane.b32.xlu0 %v5359, 48
        %v5697 = vpop.permute.xlu0 %5696
        %5698 = vrot.lane.b32.xlu0 %v5360, 48
        %v5699 = vpop.permute.xlu0 %5698
        %5700 = vrot.lane.b32.xlu0 %v5361, 48
        %v5701 = vpop.permute.xlu0 %5700
        %5702 = vrot.lane.b32.xlu0 %v5362, 48
        %v5703 = vpop.permute.xlu0 %5702
        %5704 = vrot.lane.b32.xlu0 %v5363, 48
        %v5705 = vpop.permute.xlu0 %5704
        %5706 = vrot.lane.b32.xlu0 %v5364, 48
        %v5707 = vpop.permute.xlu0 %5706
        %5708 = vrot.lane.b32.xlu0 %v5365, 48
        %v5709 = vpop.permute.xlu0 %5708
        %5710 = vrot.lane.b32.xlu0 %v5366, 48
        %v5711 = vpop.permute.xlu0 %5710
        %5712 = vrot.lane.b32.xlu0 %v5367, 48
        %v5713 = vpop.permute.xlu0 %5712
        %5714 = vrot.lane.b32.xlu0 %v5368, 48
        %v5715 = vpop.permute.xlu0 %5714
        %5716 = vrot.lane.b32.xlu0 %v5369, 48
        %v5717 = vpop.permute.xlu0 %5716
        %5718 = vrot.lane.b32.xlu0 %v5370, 48
        %v5719 = vpop.permute.xlu0 %5718
        %5720 = vrot.lane.b32.xlu0 %v5371, 48
        %v5721 = vpop.permute.xlu0 %5720
        %5722 = vrot.lane.b32.xlu0 %v5372, 48
        %v5723 = vpop.permute.xlu0 %5722
        %5724 = vrot.lane.b32.xlu0 %v5373, 48
        %v5725 = vpop.permute.xlu0 %5724
        %v5758 = vsel %vm1615, %v862, %v5407
        %v5759 = vsel %vm1615, %v863, %v5409
        %v5760 = vsel %vm1615, %v864, %v5411
        %v5761 = vsel %vm1615, %v865, %v5413
        %v5762 = vsel %vm1615, %v866, %v5415
        %v5763 = vsel %vm1615, %v867, %v5417
        %v5764 = vsel %vm1615, %v868, %v5419
        %v5765 = vsel %vm1615, %v869, %v5421
        %v5766 = vsel %vm1615, %v870, %v5423
        %v5767 = vsel %vm1615, %v871, %v5425
        %v5768 = vsel %vm1615, %v872, %v5427
        %v5769 = vsel %vm1615, %v873, %v5429
        %v5770 = vsel %vm1615, %v874, %v5431
        %v5771 = vsel %vm1615, %v875, %v5433
        %v5772 = vsel %vm1615, %v876, %v5435
        %v5773 = vsel %vm1615, %v877, %v5437
        %v5774 = vsel %vm1615, %v878, %v5439
        %v5775 = vsel %vm1615, %v879, %v5441
        %v5776 = vsel %vm1615, %v880, %v5443
        %v5777 = vsel %vm1615, %v881, %v5445
        %v5778 = vsel %vm1615, %v882, %v5447
        %v5779 = vsel %vm1615, %v883, %v5449
        %v5780 = vsel %vm1615, %v884, %v5451
        %v5781 = vsel %vm1615, %v885, %v5453
        %v5782 = vsel %vm1615, %v886, %v5455
        %v5783 = vsel %vm1615, %v887, %v5457
        %v5784 = vsel %vm1615, %v888, %v5459
        %v5785 = vsel %vm1615, %v889, %v5461
        %v5786 = vsel %vm1615, %v890, %v5463
        %v5787 = vsel %vm1615, %v891, %v5465
        %v5788 = vsel %vm1615, %v892, %v5467
        %v5789 = vsel %vm1615, %v893, %v5469
        %v5790 = vsel %vm1681, %v5758, %v5535
        %v5791 = vsel %vm1681, %v5759, %v5537
        %v5792 = vsel %vm1681, %v5760, %v5539
        %v5793 = vsel %vm1681, %v5761, %v5541
        %v5794 = vsel %vm1681, %v5762, %v5543
        %v5795 = vsel %vm1681, %v5763, %v5545
        %v5796 = vsel %vm1681, %v5764, %v5547
        %v5797 = vsel %vm1681, %v5765, %v5549
        %v5798 = vsel %vm1681, %v5766, %v5551
        %v5799 = vsel %vm1681, %v5767, %v5553
        %v5800 = vsel %vm1681, %v5768, %v5555
        %v5801 = vsel %vm1681, %v5769, %v5557
        %v5802 = vsel %vm1681, %v5770, %v5559
        %v5803 = vsel %vm1681, %v5771, %v5561
        %v5804 = vsel %vm1681, %v5772, %v5563
        %v5805 = vsel %vm1681, %v5773, %v5565
        %v5806 = vsel %vm1681, %v5774, %v5567
        %v5807 = vsel %vm1681, %v5775, %v5569
        %v5808 = vsel %vm1681, %v5776, %v5571
        %v5809 = vsel %vm1681, %v5777, %v5573
        %v5810 = vsel %vm1681, %v5778, %v5575
        %v5811 = vsel %vm1681, %v5779, %v5577
        %v5812 = vsel %vm1681, %v5780, %v5579
        %v5813 = vsel %vm1681, %v5781, %v5581
        %v5814 = vsel %vm1681, %v5782, %v5583
        %v5815 = vsel %vm1681, %v5783, %v5585
        %v5816 = vsel %vm1681, %v5784, %v5587
        %v5817 = vsel %vm1681, %v5785, %v5589
        %v5818 = vsel %vm1681, %v5786, %v5591
        %v5819 = vsel %vm1681, %v5787, %v5593
        %v5820 = vsel %vm1681, %v5788, %v5595
        %v5821 = vsel %vm1681, %v5789, %v5597
        %v5822 = vsel %vm1747, %v5790, %v5663
        %v5823 = vsel %vm1747, %v5791, %v5665
        %v5824 = vsel %vm1747, %v5792, %v5667
        %v5825 = vsel %vm1747, %v5793, %v5669
        %v5826 = vsel %vm1747, %v5794, %v5671
        %v5827 = vsel %vm1747, %v5795, %v5673
        %v5828 = vsel %vm1747, %v5796, %v5675
        %v5829 = vsel %vm1747, %v5797, %v5677
        %v5830 = vsel %vm1747, %v5798, %v5679
        %v5831 = vsel %vm1747, %v5799, %v5681
        %v5832 = vsel %vm1747, %v5800, %v5683
        %v5833 = vsel %vm1747, %v5801, %v5685
        %v5834 = vsel %vm1747, %v5802, %v5687
        %v5835 = vsel %vm1747, %v5803, %v5689
        %v5836 = vsel %vm1747, %v5804, %v5691
        %v5837 = vsel %vm1747, %v5805, %v5693
        %v5838 = vsel %vm1747, %v5806, %v5695
        %v5839 = vsel %vm1747, %v5807, %v5697
        %v5840 = vsel %vm1747, %v5808, %v5699
        %v5841 = vsel %vm1747, %v5809, %v5701
        %v5842 = vsel %vm1747, %v5810, %v5703
        %v5843 = vsel %vm1747, %v5811, %v5705
        %v5844 = vsel %vm1747, %v5812, %v5707
        %v5845 = vsel %vm1747, %v5813, %v5709
        %v5846 = vsel %vm1747, %v5814, %v5711
        %v5847 = vsel %vm1747, %v5815, %v5713
        %v5848 = vsel %vm1747, %v5816, %v5715
        %v5849 = vsel %vm1747, %v5817, %v5717
        %v5850 = vsel %vm1747, %v5818, %v5719
        %v5851 = vsel %vm1747, %v5819, %v5721
        %v5852 = vsel %vm1747, %v5820, %v5723
        %v5853 = vsel %vm1747, %v5821, %v5725
        %5854 = vst.msk [vmem:[%s514] sm:$0xff] %vm1813, %v5822
        %5855 = vst.msk [vmem:[%s514 + $0x8] sm:$0xff] %vm1813, %v5823
        %5856 = vst.msk [vmem:[%s514 + $0x10] sm:$0xff] %vm1813, %v5824
        %5857 = vst.msk [vmem:[%s514 + $0x18] sm:$0xff] %vm1813, %v5825
        %5858 = vst.msk [vmem:[%s514 + $0x20] sm:$0xff] %vm1813, %v5826
        %5859 = vst.msk [vmem:[%s514 + $0x28] sm:$0xff] %vm1813, %v5827
        %5860 = vst.msk [vmem:[%s514 + $0x30] sm:$0xff] %vm1813, %v5828
        %5861 = vst.msk [vmem:[%s514 + $0x38] sm:$0xff] %vm1813, %v5829
        %5862 = vst.msk [vmem:[%s514 + $0x40] sm:$0xff] %vm1813, %v5830
        %5863 = vst.msk [vmem:[%s514 + $0x48] sm:$0xff] %vm1813, %v5831
        %5864 = vst.msk [vmem:[%s514 + $0x50] sm:$0xff] %vm1813, %v5832
        %5865 = vst.msk [vmem:[%s514 + $0x58] sm:$0xff] %vm1813, %v5833
        %5866 = vst.msk [vmem:[%s514 + $0x60] sm:$0xff] %vm1813, %v5834
        %5867 = vst.msk [vmem:[%s514 + $0x68] sm:$0xff] %vm1813, %v5835
        %5868 = vst.msk [vmem:[%s514 + $0x70] sm:$0xff] %vm1813, %v5836
        %5869 = vst.msk [vmem:[%s514 + $0x78] sm:$0xff] %vm1813, %v5837
        %5870 = vst.msk [vmem:[%s514 + $0x80] sm:$0xff] %vm1813, %v5838
        %5871 = vst.msk [vmem:[%s514 + $0x88] sm:$0xff] %vm1813, %v5839
        %5872 = vst.msk [vmem:[%s514 + $0x90] sm:$0xff] %vm1813, %v5840
        %5873 = vst.msk [vmem:[%s514 + $0x98] sm:$0xff] %vm1813, %v5841
        %5874 = vst.msk [vmem:[%s514 + $0xa0] sm:$0xff] %vm1813, %v5842
        %5875 = vst.msk [vmem:[%s514 + $0xa8] sm:$0xff] %vm1813, %v5843
        %5876 = vst.msk [vmem:[%s514 + $0xb0] sm:$0xff] %vm1813, %v5844
        %5877 = vst.msk [vmem:[%s514 + $0xb8] sm:$0xff] %vm1813, %v5845
        %5878 = vst.msk [vmem:[%s514 + $0xc0] sm:$0xff] %vm1813, %v5846
        %5879 = vst.msk [vmem:[%s514 + $0xc8] sm:$0xff] %vm1813, %v5847
        %5880 = vst.msk [vmem:[%s514 + $0xd0] sm:$0xff] %vm1813, %v5848
        %5881 = vst.msk [vmem:[%s514 + $0xd8] sm:$0xff] %vm1813, %v5849
        %5882 = vst.msk [vmem:[%s514 + $0xe0] sm:$0xff] %vm1813, %v5850
        %5883 = vst.msk [vmem:[%s514 + $0xe8] sm:$0xff] %vm1813, %v5851
        %5884 = vst.msk [vmem:[%s514 + $0xf0] sm:$0xff] %vm1813, %v5852
        %5885 = vst.msk [vmem:[%s514 + $0xf8] sm:$0xff] %vm1813, %v5853
        %s5886 = sand.u32 %s379, 1
        %s5887 = scalar_lea.sflag [#allocation7], %s5886
        %s5888 = sand.u32 %s379, 1
        %s5889 = smul.addr %s5888, 256
        %s5890 = scalar_lea.vmem [#allocation6], %s5889
        // Predicated region
        $region85: #{inception_forward.1} parent=83 // pred_check
          %p5891 = pneg %p389
        $region86: #{inception_forward.1} parent=83 // pred_check_branch
          %5893 = sbr.rel (%p5891) target = $region88
        $region87: #{inception_forward.1} parent=83 // pred_region
          %s5895 = ssub.s32 4096, 4096
          %5896 = vsyncadd %s5887, %s5895
          %s5897 = smul.addr %s30, 32
          %s5898 = smul.addr %s5897, 128
          %s5899 = scalar_lea.hbm %s16, %s5898
          %s5900 = sshll.u32 %s5890, 4
          %s5901 = int_to_ptr.vmem [resolvable:$true] %s5900
          %5906 = dma.vmem_to_hbm [thread:$0]  %s5901, 4096, %s5899, %s5887, 128, 128, 8
        $region88: #{inception_forward.1} parent=83 // pred_fallthru
          _
      $region84: #{inception_forward.1} parent=5 // pred_fallthru
        _
      %p5907 = scmp.le.s32.totalorder 2, %s25
      // Predicated region
      $region89: #{inception_forward.1} parent=5 // pred_check
        %p5908 = pneg %p5907
      $region90: #{inception_forward.1} parent=5 // pred_check_branch
        %5910 = sbr.rel (%p5908) target = $region92
      $region91: #{inception_forward.1} parent=5 // pred_region
        %s5911 = ssub.s32 %s25, 2
        // Predicated region
        $region93: #{inception_forward.1} parent=91 // pred_check
          %p5912 = pneg %p395
        $region94: #{inception_forward.1} parent=91 // pred_check_branch
          %5914 = sbr.rel (%p5912) target = $region96
        $region95: #{inception_forward.1} parent=91 // pred_region
          %s5915 = sand.u32 %s380, 1
          %s5916 = scalar_lea.sflag [#allocation7], %s5915
          %s5917 = sand.u32 %s380, 1
          %s5918 = smul.addr %s5917, 256
          %s5919 = scalar_lea.vmem [#allocation6], %s5918
          %5920 = dma.done %s5916, 4096
        $region96: #{inception_forward.1} parent=91 // pred_fallthru
          _
      $region92: #{inception_forward.1} parent=5 // pred_fallthru
        _
    $region6: #{inception_forward.1} parent=1 // loop_footer
      %s29 = sadd.s32 1, %s25
    $region7: #{inception_forward.1} parent=1 // loop_footer_branch
      %24 = sbr.rel target = $region3
    $region8: #{inception_forward.1} parent=1 // loop_exit
      _
    %5921 = vsyncpa [#allocation7], 1
    %s5922 = scalar_lea.sflag [#allocation7], 1
    %5923 = vsyncpa %s5922, 1

</llo_original>
